<compile_context>
chip_gen: v7x
topology: tpu7x:2x2x1
jax: 0.10.0
libtpu: 0.0.40
codegen_flags: <defaults>
</compile_context>

<pallas_src>
import functools

import jax
import jax.numpy as jnp
from jax import lax
from jax.experimental import pallas as pl
from jax.experimental.pallas import tpu as pltpu


# --------------------------------------------------------------------------- #
# Fused graph branch:                                                          #
#   GATConv(heads=H) -> ELU -> GATConv(heads=1) -> ReLU -> gmp -> fc_g1 -> ReLU#
# One pallas_call over grid=(B,) -- everything for one N=16 graph fits in VMEM.#
# --------------------------------------------------------------------------- #
def _graph_branch_kernel(x_ref, adj_ref,
                         w1_ref, a1s_ref, a1d_ref, b1_ref,
                         w2_ref, a2s_ref, a2d_ref, b2_ref,
                         wg_ref, bg_ref, o_ref, *, heads1, f1, gout):
    x = x_ref[0]                                   # [N, Fin]   f32
    mask = adj_ref[0] > 0                          # [N, N]     (hoisted, computed once)

    def gat(x_in, w_ref_, asrc_bd_ref, adst_bd_ref, b_ref_, heads, fout, act):
        # w: [Fin, H*Fout] bf16; asrc_bd/adst_bd: [H*Fout, H] block-diagonal f32.
        xw = jnp.dot(x_in.astype(jnp.bfloat16), w_ref_[...],
                     preferred_element_type=jnp.float32)             # [N, H*Fout]
        # attention logits for ALL heads at once: 2 matmuls instead of 2*H dot_generals
        a_dst = jnp.dot(xw, adst_bd_ref[...], preferred_element_type=jnp.float32)  # [N, H]
        a_src = jnp.dot(xw, asrc_bd_ref[...], preferred_element_type=jnp.float32)  # [N, H]
        e = a_dst.T[:, :, None] + a_src.T[:, None, :]                # [H, N, N]
        e = jnp.where(e > 0, e, 0.2 * e)                             # LeakyReLU(0.2)
        e = jnp.where(mask[None, :, :], e, jnp.float32(-1e30))       # softmax math stays f32
        m = jnp.max(e, axis=-1, keepdims=True)                       # softmax over source nodes
        p = jnp.exp(e - m)
        alpha = p / jnp.sum(p, axis=-1, keepdims=True)               # [H, N, N] (dropout = id)
        outs = []
        for h in range(heads):                                       # tiny per-head f32 matmuls
            xh = xw[:, h * fout:(h + 1) * fout]                      # [N, Fout]
            outs.append(jnp.dot(alpha[h], xh, preferred_element_type=jnp.float32))
        out = (outs[0] if heads == 1 else jnp.concatenate(outs, axis=1)) + b_ref_[...]
        if act == "elu":
            out = jnp.where(out > 0, out, jnp.exp(jnp.minimum(out, 0.0)) - 1.0)
        else:
            out = jnp.maximum(out, 0.0)
        return out                                                   # single lane-dense value

    h1 = gat(x, w1_ref, a1s_ref, a1d_ref, b1_ref, heads1, f1, "elu")   # [N, H*F]
    h2 = gat(h1, w2_ref, a2s_ref, a2d_ref, b2_ref, 1, gout, "relu")    # [N, GOUT]
    pooled = jnp.max(h2, axis=0, keepdims=True)                        # global_max_pool [1, GOUT]
    y = jnp.dot(pooled.astype(jnp.bfloat16), wg_ref[...],
                preferred_element_type=jnp.float32) + bg_ref[...]
    o_ref[0] = jnp.maximum(y, 0.0)


def graph_branch(x, adj, w1, a1s, a1d, b1, w2, a2s, a2d, b2, wg, bg, *, heads):
    B, N, fin = x.shape
    f1 = w1.shape[1] // heads
    gout = wg.shape[1]
    kernel = functools.partial(_graph_branch_kernel, heads1=heads, f1=f1, gout=gout)
    out = pl.pallas_call(
        kernel,
        out_shape=jax.ShapeDtypeStruct((B, 1, gout), jnp.float32),
        grid=(B,),
        in_specs=[
            pl.BlockSpec((1, N, fin), lambda b: (b, 0, 0)),
            pl.BlockSpec((1, N, N), lambda b: (b, 0, 0)),
            pl.BlockSpec(w1.shape, lambda b: (0, 0)),
            pl.BlockSpec(a1s.shape, lambda b: (0, 0)),
            pl.BlockSpec(a1d.shape, lambda b: (0, 0)),
            pl.BlockSpec(b1.shape, lambda b: (0, 0)),
            pl.BlockSpec(w2.shape, lambda b: (0, 0)),
            pl.BlockSpec(a2s.shape, lambda b: (0, 0)),
            pl.BlockSpec(a2d.shape, lambda b: (0, 0)),
            pl.BlockSpec(b2.shape, lambda b: (0, 0)),
            pl.BlockSpec(wg.shape, lambda b: (0, 0)),
            pl.BlockSpec(bg.shape, lambda b: (0, 0)),
        ],
        out_specs=pl.BlockSpec((1, 1, gout), lambda b: (b, 0, 0)),
        compiler_params=pltpu.CompilerParams(dimension_semantics=("parallel",)),
    )(x, adj, w1, a1s, a1d, b1, w2, a2s, a2d, b2, wg, bg)
    return out[:, 0, :]                                              # [B, GOUT]


def _att_block_diag(att):
    """[H, F] GAT attention vectors -> block-diagonal [H*F, H] so one matmul gives all heads."""
    H, F = att.shape
    head = jnp.arange(H * F) // F
    return jax.nn.one_hot(head, H, dtype=jnp.float32) * att.reshape(-1)[:, None]


# --------------------------------------------------------------------------- #
# Fused SeqNet conv stack: 4 x (Conv1d valid + bias + ReLU + MaxPool1d(2, 2))  #
# channels-last; each conv is ONE im2col matmul; intermediates stay in VMEM.   #
# --------------------------------------------------------------------------- #
def _seq_conv_kernel(x_ref, w1_ref, b1_ref, w2_ref, b2_ref,
                     w3_ref, b3_ref, w4_ref, b4_ref, o_ref, *, ks):
    def stage(x, w_ref_, b_ref_, k):
        lin = x.shape[0]
        co = w_ref_.shape[1]
        lout = lin - k + 1
        p = lout // 2
        # im2col: [lout, k*Ci] so the conv is a single wide-contraction matmul.
        xcat = jnp.concatenate([x[i:i + lout, :] for i in range(k)], axis=1)
        acc = jnp.dot(xcat.astype(jnp.bfloat16), w_ref_[...],
                      preferred_element_type=jnp.float32)            # [lout, co]
        acc = jnp.maximum(acc + b_ref_[...], 0.0)                    # bias + ReLU
        y = acc[:2 * p, :].reshape(p, 2, co)                         # MaxPool1d(2, 2) (floor)
        return jnp.max(y, axis=1)                                    # [p, co]

    x = x_ref[0]                                                     # [L, Cin]
    x = stage(x, w1_ref, b1_ref, ks[0])
    x = stage(x, w2_ref, b2_ref, ks[1])
    x = stage(x, w3_ref, b3_ref, ks[2])
    x = stage(x, w4_ref, b4_ref, ks[3])
    o_ref[0] = x                                                     # [P_final, Co_final]


def seq_conv_chain(x, ws, bs, *, ks):
    # x: [B, L, Ci] f32; ws[i]: [Ki*Ci_i, Co_i] bf16; bs[i]: [1, Co_i] f32
    B, L, Ci = x.shape
    lin = L
    for k in ks:
        lin = (lin - k + 1) // 2
    p_final = lin
    co_final = ws[-1].shape[1]
    kernel = functools.partial(_seq_conv_kernel, ks=ks)
    in_specs = [pl.BlockSpec((1, L, Ci), lambda b: (b, 0, 0))]
    for w, bias in zip(ws, bs):
        in_specs.append(pl.BlockSpec(w.shape, lambda b: (0, 0)))
        in_specs.append(pl.BlockSpec(bias.shape, lambda b: (0, 0)))
    flat_args = [a for pair in zip(ws, bs) for a in pair]
    return pl.pallas_call(
        kernel,
        out_shape=jax.ShapeDtypeStruct((B, p_final, co_final), jnp.float32),
        grid=(B,),
        in_specs=in_specs,
        out_specs=pl.BlockSpec((1, p_final, co_final), lambda b: (b, 0, 0)),
        compiler_params=pltpu.CompilerParams(
            dimension_semantics=("parallel",),
            vmem_limit_bytes=32 * 1024 * 1024),
    )(x, *flat_args)


# --------------------------------------------------------------------------- #
# Generic Linear (+ optional ReLU) -- bf16 weight, f32 accumulate              #
# --------------------------------------------------------------------------- #
def _linear_kernel(x_ref, w_ref, b_ref, o_ref, *, relu):
    y = jnp.dot(x_ref[...].astype(jnp.bfloat16), w_ref[...],
                preferred_element_type=jnp.float32) + b_ref[...]
    if relu:
        y = jnp.maximum(y, 0.0)
    o_ref[...] = y


def linear(x, w, b, *, relu=False):
    M, K = x.shape
    N = w.shape[1]
    kernel = functools.partial(_linear_kernel, relu=relu)
    return pl.pallas_call(
        kernel,
        out_shape=jax.ShapeDtypeStruct((M, N), jnp.float32),
        grid=(1,),
        in_specs=[pl.BlockSpec((M, K), lambda i: (0, 0)),
                  pl.BlockSpec((K, N), lambda i: (0, 0)),
                  pl.BlockSpec((1, N), lambda i: (0, 0))],
        out_specs=pl.BlockSpec((M, N), lambda i: (0, 0)),
    )(x, w, b)


# --------------------------------------------------------------------------- #
# Final MLP head: fc1 -> ReLU -> (dropout=id) -> fc2 -> ReLU -> out            #
# --------------------------------------------------------------------------- #
def _head_kernel(x_ref, w1_ref, b1_ref, w2_ref, b2_ref, w3_ref, b3_ref, o_ref):
    h = jnp.dot(x_ref[...].astype(jnp.bfloat16), w1_ref[...],
                preferred_element_type=jnp.float32) + b1_ref[...]
    h = jnp.maximum(h, 0.0)
    h = jnp.dot(h.astype(jnp.bfloat16), w2_ref[...],
                preferred_element_type=jnp.float32) + b2_ref[...]
    h = jnp.maximum(h, 0.0)
    o_ref[...] = jnp.dot(h, w3_ref[...], preferred_element_type=jnp.float32) + b3_ref[...]


def mlp_head(x, w1, b1, w2, b2, w3, b3):
    B, D = x.shape
    D1, D2 = w1.shape[1], w2.shape[1]
    return pl.pallas_call(
        _head_kernel,
        out_shape=jax.ShapeDtypeStruct((B, 1), jnp.float32),
        grid=(1,),
        in_specs=[pl.BlockSpec((B, D), lambda i: (0, 0)),
                  pl.BlockSpec((D, D1), lambda i: (0, 0)),
                  pl.BlockSpec((1, D1), lambda i: (0, 0)),
                  pl.BlockSpec((D1, D2), lambda i: (0, 0)),
                  pl.BlockSpec((1, D2), lambda i: (0, 0)),
                  pl.BlockSpec((D2, 1), lambda i: (0, 0)),
                  pl.BlockSpec((1, 1), lambda i: (0, 0))],
        out_specs=pl.BlockSpec((B, 1), lambda i: (0, 0)),
    )(x, w1, b1, w2, b2, w3, b3)


# --------------------------------------------------------------------------- #
# BiLSTM (hidden=64, bidirectional, zero init state) -- tiny recurrence (glue) #
# Input projection hoisted out of the scan into one matmul per direction.      #
# --------------------------------------------------------------------------- #
def bilstm(x_seq, p):
    H = 64

    def run(Wih, Whh, bih, bhh, reverse):
        z_in = x_seq @ Wih.T + (bih + bhh)            # [T, 4H], precomputed outside the scan

        def step(carry, z_x):
            h, c = carry
            z = z_x + Whh @ h                          # PyTorch gate order i, f, g, o
            i = jax.nn.sigmoid(z[0:H])
            f = jax.nn.sigmoid(z[H:2 * H])
            g = jnp.tanh(z[2 * H:3 * H])
            o = jax.nn.sigmoid(z[3 * H:4 * H])
            c = f * c + i * g
            h = o * jnp.tanh(c)
            return (h, c), h

        init = (jnp.zeros((H,), jnp.float32), jnp.zeros((H,), jnp.float32))
        _, hs = lax.scan(step, init, z_in, reverse=reverse)
        return hs

    hf = run(p["lstm_Wih_f"], p["lstm_Whh_f"], p["lstm_bih_f"], p["lstm_bhh_f"], False)
    hb = run(p["lstm_Wih_b"], p["lstm_Whh_b"], p["lstm_bih_b"], p["lstm_bhh_b"], True)
    return jnp.concatenate([hf, hb], axis=1)          # [T, 128]


# --------------------------------------------------------------------------- #
# Full DGSDTA forward (graphNet = 'GAT')                                       #
# --------------------------------------------------------------------------- #
def dgsdta_forward(graph_x, adj, seq_embed, p, *, heads, fin, gout):
    bf16 = jnp.bfloat16

    # --- GATNet (fused: gat1 + gat2 + gmp + fc_g1) ---
    a1s = _att_block_diag(p["gat1_asrc"])
    a1d = _att_block_diag(p["gat1_adst"])
    a2s = _att_block_diag(p["gat2_asrc"])
    a2d = _att_block_diag(p["gat2_adst"])
    graph_out = graph_branch(
        graph_x, adj,
        p["gat1_w"].astype(bf16), a1s, a1d, p["gat1_b"],
        p["gat2_w"].astype(bf16), a2s, a2d, p["gat2_b"],
        p["fcg1_w"].astype(bf16), p["fcg1_b"], heads=heads)          # [B, 128]

    # --- SeqNet (fused conv1..conv4 + relu + pool) ---
    conv_ws = [p["c1_w"], p["c2_w"], p["c3_w"], p["c4_w"]]
    conv_bs = [p["c1_b"], p["c2_b"], p["c3_b"], p["c4_b"]]
    ks = tuple(int(w.shape[0]) for w in conv_ws)
    conv_ws = [w.reshape(w.shape[0] * w.shape[1], w.shape[2]).astype(bf16) for w in conv_ws]
    xt = seq_conv_chain(seq_embed, conv_ws, conv_bs, ks=ks)          # [B, 61, 128]
    B = xt.shape[0]
    # Channels-last (l, c) flatten; fcxt_w rows are stored in the SAME (l, c) order, so no NCL
    # transpose is needed (PyTorch weights would be row-permuted offline: pt row c*61+l -> l*128+c).
    xt = xt.reshape(B, -1)                                           # [B, 7808]
    seq_out = linear(xt, p["fcxt_w"].astype(bf16), p["fcxt_b"], relu=True)   # [B, 128]

    # --- BiLSTM ---
    seq_out = bilstm(seq_out, p)                                     # [B, 128]

    # --- fusion head ---
    xc = jnp.concatenate([graph_out, seq_out], axis=1)               # [B, 256]
    return mlp_head(xc, p["fc1_w"].astype(bf16), p["fc1_b"],
                    p["fc2_w"].astype(bf16), p["fc2_b"],
                    p["out_w"], p["out_b"])                          # [B, 1]


# --------------------------------------------------------------------------- #
if __name__ == "__main__":
    # config (small, but shape-consistent with the hard-coded 128*61 / bilstm dims):
    B = 2          # graphs / sequences per batch
    N = 16         # nodes per graph
    FIN = 32       # graph_features_dim
    GOUT = 128     # graph_output_dim
    HEADS = 10
    C_EMB = 64     # seq_embed_dim
    L = 1024       # sequence length  ->  final pooled length 61 (matches Linear(128*61, .))
    NF = 256       # n_filters
    SOUT = 128     # seq_output_dim (128 so fc1(in=graph+seq) matches bilstm output)

    def normal(key, shape, scale=0.05):
        return scale * jax.random.normal(key, shape, jnp.float32)

    pkeys = jax.random.split(jax.random.PRNGKey(42), 40)
    ki = iter(pkeys)
    params = {
        # GATConv 1: in 32 -> 10 heads x 32
        "gat1_w": normal(next(ki), (FIN, HEADS * FIN)),
        "gat1_asrc": normal(next(ki), (HEADS, FIN)),
        "gat1_adst": normal(next(ki), (HEADS, FIN)),
        "gat1_b": normal(next(ki), (1, HEADS * FIN)),
        # GATConv 2: in 320 -> 128 (heads=1)
        "gat2_w": normal(next(ki), (HEADS * FIN, GOUT)),
        "gat2_asrc": normal(next(ki), (1, GOUT)),
        "gat2_adst": normal(next(ki), (1, GOUT)),
        "gat2_b": normal(next(ki), (1, GOUT)),
        # fc_g1
        "fcg1_w": normal(next(ki), (GOUT, GOUT)),
        "fcg1_b": normal(next(ki), (1, GOUT)),
        # SeqNet convs (stored [K, Cin, Cout], i.e. transposed PyTorch [Cout, Cin, K])
        "c1_w": normal(next(ki), (5, C_EMB, NF)), "c1_b": normal(next(ki), (1, NF)),
        "c2_w": normal(next(ki), (5, NF, C_EMB)), "c2_b": normal(next(ki), (1, C_EMB)),
        "c3_w": normal(next(ki), (5, C_EMB, NF)), "c3_b": normal(next(ki), (1, NF)),
        "c4_w": normal(next(ki), (3, NF, NF // 2)), "c4_b": normal(next(ki), (1, NF // 2)),
        # fc1_xt: 128*61 -> 128  (rows stored in channels-last (l, c) flatten order)
        "fcxt_w": normal(next(ki), (128 * 61, SOUT)),
        "fcxt_b": normal(next(ki), (1, SOUT)),
        # BiLSTM (input 128, hidden 64, bidirectional)
        "lstm_Wih_f": normal(next(ki), (4 * 64, SOUT)),
        "lstm_Whh_f": normal(next(ki), (4 * 64, 64)),
        "lstm_bih_f": normal(next(ki), (4 * 64,)),
        "lstm_bhh_f": normal(next(ki), (4 * 64,)),
        "lstm_Wih_b": normal(next(ki), (4 * 64, SOUT)),
        "lstm_Whh_b": normal(next(ki), (4 * 64, 64)),
        "lstm_bih_b": normal(next(ki), (4 * 64,)),
        "lstm_bhh_b": normal(next(ki), (4 * 64,)),
        # fusion head
        "fc1_w": normal(next(ki), (GOUT + SOUT, 1024)), "fc1_b": normal(next(ki), (1, 1024)),
        "fc2_w": normal(next(ki), (1024, 256)), "fc2_b": normal(next(ki), (1, 256)),
        "out_w": normal(next(ki), (256, 1)), "out_b": normal(next(ki), (1, 1)),
    }

    # deterministic inputs
    dkeys = jax.random.split(jax.random.PRNGKey(0), 2)
    graph_x = jax.random.normal(dkeys[0], (B, N, FIN), jnp.float32)
    seq_embed = jax.random.normal(dkeys[1], (B, L, C_EMB), jnp.float32)
    # ring graph + self loops (dense adjacency mask, same structure per graph)
    idx = jnp.arange(N)
    ring = ((idx[:, None] == idx[None, :])
            | (idx[:, None] == (idx[None, :] + 1) % N)
            | ((idx[:, None] + 1) % N == idx[None, :])).astype(jnp.float32)
    adj = jnp.broadcast_to(ring, (B, N, N))

    out = dgsdta_forward(graph_x, adj, seq_embed, params,
                         heads=HEADS, fin=FIN, gout=GOUT)
    out = jax.block_until_ready(out)
    assert out.shape == (B, 1) and out.dtype == jnp.float32
    print("KERNEL_OK")
</pallas_src>

<mosaic_0001>
module attributes {stable_mosaic.version = 11 : i64} {
  func.func @_graph_branch_kernel(%arg0: i32, %arg1: memref<1x16x32xf32, #tpu.memory_space<vmem>>, %arg2: memref<1x16x16xf32, #tpu.memory_space<vmem>>, %arg3: memref<32x320xbf16, #tpu.memory_space<vmem>>, %arg4: memref<320x10xf32, #tpu.memory_space<vmem>>, %arg5: memref<320x10xf32, #tpu.memory_space<vmem>>, %arg6: memref<1x320xf32, #tpu.memory_space<vmem>>, %arg7: memref<320x128xbf16, #tpu.memory_space<vmem>>, %arg8: memref<128x1xf32, #tpu.memory_space<vmem>>, %arg9: memref<128x1xf32, #tpu.memory_space<vmem>>, %arg10: memref<1x128xf32, #tpu.memory_space<vmem>>, %arg11: memref<128x128xbf16, #tpu.memory_space<vmem>>, %arg12: memref<1x128xf32, #tpu.memory_space<vmem>>, %arg13: memref<1x1x128xf32, #tpu.memory_space<vmem>>) attributes {dimension_semantics = [#tpu.dimension_semantics<parallel>], iteration_bounds = array<i64: 2>, scalar_prefetch = 0 : i64, scratch_operands = 0 : i64, tpu.core_type = #tpu.core_type<tc>, window_params = [{transform_indices = @transform_0, window_bounds = array<i64: 1, 16, 32>}, {transform_indices = @transform_1, window_bounds = array<i64: 1, 16, 16>}, {pipeline_mode = #tpu.pipeline_mode<synchronous>, transform_indices = @transform_2, window_bounds = array<i64: 32, 320>}, {pipeline_mode = #tpu.pipeline_mode<synchronous>, transform_indices = @transform_3, window_bounds = array<i64: 320, 10>}, {pipeline_mode = #tpu.pipeline_mode<synchronous>, transform_indices = @transform_4, window_bounds = array<i64: 320, 10>}, {pipeline_mode = #tpu.pipeline_mode<synchronous>, transform_indices = @transform_5, window_bounds = array<i64: 1, 320>}, {pipeline_mode = #tpu.pipeline_mode<synchronous>, transform_indices = @transform_6, window_bounds = array<i64: 320, 128>}, {pipeline_mode = #tpu.pipeline_mode<synchronous>, transform_indices = @transform_7, window_bounds = array<i64: 128, 1>}, {pipeline_mode = #tpu.pipeline_mode<synchronous>, transform_indices = @transform_8, window_bounds = array<i64: 128, 1>}, {pipeline_mode = #tpu.pipeline_mode<synchronous>, transform_indices = @transform_9, window_bounds = array<i64: 1, 128>}, {pipeline_mode = #tpu.pipeline_mode<synchronous>, transform_indices = @transform_10, window_bounds = array<i64: 128, 128>}, {pipeline_mode = #tpu.pipeline_mode<synchronous>, transform_indices = @transform_11, window_bounds = array<i64: 1, 128>}, {transform_indices = @transform_12, window_bounds = array<i64: 1, 1, 128>}]} {
    %c0 = arith.constant 0 : index
    %c0_0 = arith.constant 0 : index
    %c0_1 = arith.constant 0 : index
    %0 = vector.load %arg1[%c0, %c0_0, %c0_1] : memref<1x16x32xf32, #tpu.memory_space<vmem>>, vector<1x16x32xf32>
    %1 = vector.shape_cast %0 : vector<1x16x32xf32> to vector<16x32xf32>
    %c0_2 = arith.constant 0 : index
    %c0_3 = arith.constant 0 : index
    %c0_4 = arith.constant 0 : index
    %2 = vector.load %arg2[%c0_2, %c0_3, %c0_4] : memref<1x16x16xf32, #tpu.memory_space<vmem>>, vector<1x16x16xf32>
    %3 = vector.shape_cast %2 : vector<1x16x16xf32> to vector<16x16xf32>
    %cst = arith.constant 0.000000e+00 : f32
    %4 = vector.broadcast %cst : f32 to vector<16x16xf32>
    %5 = arith.cmpf ogt, %3, %4 : vector<16x16xf32>
    %6 = arith.truncf %1 : vector<16x32xf32> to vector<16x32xbf16>
    %c0_5 = arith.constant 0 : index
    %c0_6 = arith.constant 0 : index
    %7 = vector.load %arg3[%c0_5, %c0_6] : memref<32x320xbf16, #tpu.memory_space<vmem>>, vector<32x320xbf16>
    %cst_7 = arith.constant dense<0.000000e+00> : vector<16x320xf32>
    %8 = tpu.matmul %6, %7, %cst_7 {dimension_numbers = #tpu.dot_dimension_numbers<[1], [0], [0], [1], [0, 0, 1, 1], [], []>} : vector<16x32xbf16>, vector<32x320xbf16>, vector<16x320xf32> -> vector<16x320xf32>
    %c0_8 = arith.constant 0 : index
    %c0_9 = arith.constant 0 : index
    %9 = vector.load %arg5[%c0_8, %c0_9] : memref<320x10xf32, #tpu.memory_space<vmem>>, vector<320x10xf32>
    %cst_10 = arith.constant dense<0.000000e+00> : vector<16x10xf32>
    %10 = tpu.matmul %8, %9, %cst_10 {dimension_numbers = #tpu.dot_dimension_numbers<[1], [0], [0], [1], [0, 0, 1, 1], [], []>} : vector<16x320xf32>, vector<320x10xf32>, vector<16x10xf32> -> vector<16x10xf32>
    %c0_11 = arith.constant 0 : index
    %c0_12 = arith.constant 0 : index
    %11 = vector.load %arg4[%c0_11, %c0_12] : memref<320x10xf32, #tpu.memory_space<vmem>>, vector<320x10xf32>
    %cst_13 = arith.constant dense<0.000000e+00> : vector<16x10xf32>
    %12 = tpu.matmul %8, %11, %cst_13 {dimension_numbers = #tpu.dot_dimension_numbers<[1], [0], [0], [1], [0, 0, 1, 1], [], []>} : vector<16x320xf32>, vector<320x10xf32>, vector<16x10xf32> -> vector<16x10xf32>
    %13 = tpu.transpose %10, [1, 0] : vector<16x10xf32> -> vector<10x16xf32>
    %14 = vector.shape_cast %13 : vector<10x16xf32> to vector<10x16x1xf32>
    %15 = tpu.transpose %12, [1, 0] : vector<16x10xf32> -> vector<10x16xf32>
    %16 = vector.shape_cast %15 : vector<10x16xf32> to vector<10x1x16xf32>
    %17 = vector.broadcast %14 : vector<10x16x1xf32> to vector<10x16x16xf32>
    %18 = vector.broadcast %16 : vector<10x1x16xf32> to vector<10x16x16xf32>
    %19 = arith.addf %17, %18 : vector<10x16x16xf32>
    %cst_14 = arith.constant 0.000000e+00 : f32
    %20 = vector.broadcast %cst_14 : f32 to vector<10x16x16xf32>
    %21 = arith.cmpf ogt, %19, %20 : vector<10x16x16xf32>
    %cst_15 = arith.constant 2.000000e-01 : f32
    %22 = vector.broadcast %cst_15 : f32 to vector<10x16x16xf32>
    %23 = arith.mulf %22, %19 : vector<10x16x16xf32>
    %24 = arith.select %21, %19, %23 : vector<10x16x16xi1>, vector<10x16x16xf32>
    %25 = vector.shape_cast %5 : vector<16x16xi1> to vector<1x16x16xi1>
    %cst_16 = arith.constant -1.000000e+30 : f32
    %26 = vector.shape_cast %25 : vector<1x16x16xi1> to vector<1x16x16xi1>
    %27 = vector.broadcast %26 : vector<1x16x16xi1> to vector<10x16x16xi1>
    %28 = vector.broadcast %cst_16 : f32 to vector<10x16x16xf32>
    %29 = arith.select %27, %24, %28 : vector<10x16x16xi1>, vector<10x16x16xf32>
    %cst_17 = arith.constant dense<0xFF800000> : vector<10x16xf32>
    %30 = vector.multi_reduction <maximumf>, %29, %cst_17 [2] : vector<10x16x16xf32> to vector<10x16xf32>
    %31 = vector.shape_cast %30 : vector<10x16xf32> to vector<10x16x1xf32>
    %32 = vector.broadcast %31 : vector<10x16x1xf32> to vector<10x16x16xf32>
    %33 = arith.subf %29, %32 : vector<10x16x16xf32>
    %34 = math.exp %33 : vector<10x16x16xf32>
    %cst_18 = arith.constant dense<0.000000e+00> : vector<10x16xf32>
    %35 = vector.multi_reduction <add>, %34, %cst_18 [2] : vector<10x16x16xf32> to vector<10x16xf32>
    %36 = vector.shape_cast %35 : vector<10x16xf32> to vector<10x16x1xf32>
    %37 = vector.broadcast %36 : vector<10x16x1xf32> to vector<10x16x16xf32>
    %38 = arith.divf %34, %37 : vector<10x16x16xf32>
    %39 = vector.extract_strided_slice %8 {offsets = [0, 0], sizes = [16, 32], strides = [1, 1]} : vector<16x320xf32> to vector<16x32xf32>
    %40 = vector.extract_strided_slice %38 {offsets = [0, 0, 0], sizes = [1, 16, 16], strides = [1, 1, 1]} : vector<10x16x16xf32> to vector<1x16x16xf32>
    %41 = vector.shape_cast %40 : vector<1x16x16xf32> to vector<16x16xf32>
    %cst_19 = arith.constant dense<0.000000e+00> : vector<16x32xf32>
    %42 = tpu.matmul %41, %39, %cst_19 {dimension_numbers = #tpu.dot_dimension_numbers<[1], [0], [0], [1], [0, 0, 1, 1], [], []>} : vector<16x16xf32>, vector<16x32xf32>, vector<16x32xf32> -> vector<16x32xf32>
    %43 = vector.extract_strided_slice %8 {offsets = [0, 32], sizes = [16, 32], strides = [1, 1]} : vector<16x320xf32> to vector<16x32xf32>
    %44 = vector.extract_strided_slice %38 {offsets = [1, 0, 0], sizes = [1, 16, 16], strides = [1, 1, 1]} : vector<10x16x16xf32> to vector<1x16x16xf32>
    %45 = vector.shape_cast %44 : vector<1x16x16xf32> to vector<16x16xf32>
    %cst_20 = arith.constant dense<0.000000e+00> : vector<16x32xf32>
    %46 = tpu.matmul %45, %43, %cst_20 {dimension_numbers = #tpu.dot_dimension_numbers<[1], [0], [0], [1], [0, 0, 1, 1], [], []>} : vector<16x16xf32>, vector<16x32xf32>, vector<16x32xf32> -> vector<16x32xf32>
    %47 = vector.extract_strided_slice %8 {offsets = [0, 64], sizes = [16, 32], strides = [1, 1]} : vector<16x320xf32> to vector<16x32xf32>
    %48 = vector.extract_strided_slice %38 {offsets = [2, 0, 0], sizes = [1, 16, 16], strides = [1, 1, 1]} : vector<10x16x16xf32> to vector<1x16x16xf32>
    %49 = vector.shape_cast %48 : vector<1x16x16xf32> to vector<16x16xf32>
    %cst_21 = arith.constant dense<0.000000e+00> : vector<16x32xf32>
    %50 = tpu.matmul %49, %47, %cst_21 {dimension_numbers = #tpu.dot_dimension_numbers<[1], [0], [0], [1], [0, 0, 1, 1], [], []>} : vector<16x16xf32>, vector<16x32xf32>, vector<16x32xf32> -> vector<16x32xf32>
    %51 = vector.extract_strided_slice %8 {offsets = [0, 96], sizes = [16, 32], strides = [1, 1]} : vector<16x320xf32> to vector<16x32xf32>
    %52 = vector.extract_strided_slice %38 {offsets = [3, 0, 0], sizes = [1, 16, 16], strides = [1, 1, 1]} : vector<10x16x16xf32> to vector<1x16x16xf32>
    %53 = vector.shape_cast %52 : vector<1x16x16xf32> to vector<16x16xf32>
    %cst_22 = arith.constant dense<0.000000e+00> : vector<16x32xf32>
    %54 = tpu.matmul %53, %51, %cst_22 {dimension_numbers = #tpu.dot_dimension_numbers<[1], [0], [0], [1], [0, 0, 1, 1], [], []>} : vector<16x16xf32>, vector<16x32xf32>, vector<16x32xf32> -> vector<16x32xf32>
    %55 = vector.extract_strided_slice %8 {offsets = [0, 128], sizes = [16, 32], strides = [1, 1]} : vector<16x320xf32> to vector<16x32xf32>
    %56 = vector.extract_strided_slice %38 {offsets = [4, 0, 0], sizes = [1, 16, 16], strides = [1, 1, 1]} : vector<10x16x16xf32> to vector<1x16x16xf32>
    %57 = vector.shape_cast %56 : vector<1x16x16xf32> to vector<16x16xf32>
    %cst_23 = arith.constant dense<0.000000e+00> : vector<16x32xf32>
    %58 = tpu.matmul %57, %55, %cst_23 {dimension_numbers = #tpu.dot_dimension_numbers<[1], [0], [0], [1], [0, 0, 1, 1], [], []>} : vector<16x16xf32>, vector<16x32xf32>, vector<16x32xf32> -> vector<16x32xf32>
    %59 = vector.extract_strided_slice %8 {offsets = [0, 160], sizes = [16, 32], strides = [1, 1]} : vector<16x320xf32> to vector<16x32xf32>
    %60 = vector.extract_strided_slice %38 {offsets = [5, 0, 0], sizes = [1, 16, 16], strides = [1, 1, 1]} : vector<10x16x16xf32> to vector<1x16x16xf32>
    %61 = vector.shape_cast %60 : vector<1x16x16xf32> to vector<16x16xf32>
    %cst_24 = arith.constant dense<0.000000e+00> : vector<16x32xf32>
    %62 = tpu.matmul %61, %59, %cst_24 {dimension_numbers = #tpu.dot_dimension_numbers<[1], [0], [0], [1], [0, 0, 1, 1], [], []>} : vector<16x16xf32>, vector<16x32xf32>, vector<16x32xf32> -> vector<16x32xf32>
    %63 = vector.extract_strided_slice %8 {offsets = [0, 192], sizes = [16, 32], strides = [1, 1]} : vector<16x320xf32> to vector<16x32xf32>
    %64 = vector.extract_strided_slice %38 {offsets = [6, 0, 0], sizes = [1, 16, 16], strides = [1, 1, 1]} : vector<10x16x16xf32> to vector<1x16x16xf32>
    %65 = vector.shape_cast %64 : vector<1x16x16xf32> to vector<16x16xf32>
    %cst_25 = arith.constant dense<0.000000e+00> : vector<16x32xf32>
    %66 = tpu.matmul %65, %63, %cst_25 {dimension_numbers = #tpu.dot_dimension_numbers<[1], [0], [0], [1], [0, 0, 1, 1], [], []>} : vector<16x16xf32>, vector<16x32xf32>, vector<16x32xf32> -> vector<16x32xf32>
    %67 = vector.extract_strided_slice %8 {offsets = [0, 224], sizes = [16, 32], strides = [1, 1]} : vector<16x320xf32> to vector<16x32xf32>
    %68 = vector.extract_strided_slice %38 {offsets = [7, 0, 0], sizes = [1, 16, 16], strides = [1, 1, 1]} : vector<10x16x16xf32> to vector<1x16x16xf32>
    %69 = vector.shape_cast %68 : vector<1x16x16xf32> to vector<16x16xf32>
    %cst_26 = arith.constant dense<0.000000e+00> : vector<16x32xf32>
    %70 = tpu.matmul %69, %67, %cst_26 {dimension_numbers = #tpu.dot_dimension_numbers<[1], [0], [0], [1], [0, 0, 1, 1], [], []>} : vector<16x16xf32>, vector<16x32xf32>, vector<16x32xf32> -> vector<16x32xf32>
    %71 = vector.extract_strided_slice %8 {offsets = [0, 256], sizes = [16, 32], strides = [1, 1]} : vector<16x320xf32> to vector<16x32xf32>
    %72 = vector.extract_strided_slice %38 {offsets = [8, 0, 0], sizes = [1, 16, 16], strides = [1, 1, 1]} : vector<10x16x16xf32> to vector<1x16x16xf32>
    %73 = vector.shape_cast %72 : vector<1x16x16xf32> to vector<16x16xf32>
    %cst_27 = arith.constant dense<0.000000e+00> : vector<16x32xf32>
    %74 = tpu.matmul %73, %71, %cst_27 {dimension_numbers = #tpu.dot_dimension_numbers<[1], [0], [0], [1], [0, 0, 1, 1], [], []>} : vector<16x16xf32>, vector<16x32xf32>, vector<16x32xf32> -> vector<16x32xf32>
    %75 = vector.extract_strided_slice %8 {offsets = [0, 288], sizes = [16, 32], strides = [1, 1]} : vector<16x320xf32> to vector<16x32xf32>
    %76 = vector.extract_strided_slice %38 {offsets = [9, 0, 0], sizes = [1, 16, 16], strides = [1, 1, 1]} : vector<10x16x16xf32> to vector<1x16x16xf32>
    %77 = vector.shape_cast %76 : vector<1x16x16xf32> to vector<16x16xf32>
    %cst_28 = arith.constant dense<0.000000e+00> : vector<16x32xf32>
    %78 = tpu.matmul %77, %75, %cst_28 {dimension_numbers = #tpu.dot_dimension_numbers<[1], [0], [0], [1], [0, 0, 1, 1], [], []>} : vector<16x16xf32>, vector<16x32xf32>, vector<16x32xf32> -> vector<16x32xf32>
    %79 = tpu.concatenate %42, %46, %50, %54, %58, %62, %66, %70, %74, %78 in 1 : vector<16x32xf32>, vector<16x32xf32>, vector<16x32xf32>, vector<16x32xf32>, vector<16x32xf32>, vector<16x32xf32>, vector<16x32xf32>, vector<16x32xf32>, vector<16x32xf32>, vector<16x32xf32> -> vector<16x320xf32>
    %c0_29 = arith.constant 0 : index
    %c0_30 = arith.constant 0 : index
    %80 = vector.load %arg6[%c0_29, %c0_30] : memref<1x320xf32, #tpu.memory_space<vmem>>, vector<1x320xf32>
    %81 = vector.broadcast %80 : vector<1x320xf32> to vector<16x320xf32>
    %82 = arith.addf %79, %81 : vector<16x320xf32>
    %cst_31 = arith.constant 0.000000e+00 : f32
    %83 = vector.broadcast %cst_31 : f32 to vector<16x320xf32>
    %84 = arith.cmpf ogt, %82, %83 : vector<16x320xf32>
    %cst_32 = arith.constant 0.000000e+00 : f32
    %85 = vector.broadcast %cst_32 : f32 to vector<16x320xf32>
    %86 = arith.minimumf %82, %85 : vector<16x320xf32>
    %87 = math.exp %86 : vector<16x320xf32>
    %cst_33 = arith.constant 1.000000e+00 : f32
    %88 = vector.broadcast %cst_33 : f32 to vector<16x320xf32>
    %89 = arith.subf %87, %88 : vector<16x320xf32>
    %90 = arith.select %84, %82, %89 : vector<16x320xi1>, vector<16x320xf32>
    %91 = arith.truncf %90 : vector<16x320xf32> to vector<16x320xbf16>
    %c0_34 = arith.constant 0 : index
    %c0_35 = arith.constant 0 : index
    %92 = vector.load %arg7[%c0_34, %c0_35] : memref<320x128xbf16, #tpu.memory_space<vmem>>, vector<320x128xbf16>
    %cst_36 = arith.constant dense<0.000000e+00> : vector<16x128xf32>
    %93 = tpu.matmul %91, %92, %cst_36 {dimension_numbers = #tpu.dot_dimension_numbers<[1], [0], [0], [1], [0, 0, 1, 1], [], []>} : vector<16x320xbf16>, vector<320x128xbf16>, vector<16x128xf32> -> vector<16x128xf32>
    %c0_37 = arith.constant 0 : index
    %c0_38 = arith.constant 0 : index
    %94 = vector.load %arg9[%c0_37, %c0_38] : memref<128x1xf32, #tpu.memory_space<vmem>>, vector<128x1xf32>
    %cst_39 = arith.constant dense<0.000000e+00> : vector<16x1xf32>
    %95 = tpu.matmul %93, %94, %cst_39 {dimension_numbers = #tpu.dot_dimension_numbers<[1], [0], [0], [1], [0, 0, 1, 1], [], []>} : vector<16x128xf32>, vector<128x1xf32>, vector<16x1xf32> -> vector<16x1xf32>
    %c0_40 = arith.constant 0 : index
    %c0_41 = arith.constant 0 : index
    %96 = vector.load %arg8[%c0_40, %c0_41] : memref<128x1xf32, #tpu.memory_space<vmem>>, vector<128x1xf32>
    %cst_42 = arith.constant dense<0.000000e+00> : vector<16x1xf32>
    %97 = tpu.matmul %93, %96, %cst_42 {dimension_numbers = #tpu.dot_dimension_numbers<[1], [0], [0], [1], [0, 0, 1, 1], [], []>} : vector<16x128xf32>, vector<128x1xf32>, vector<16x1xf32> -> vector<16x1xf32>
    %98 = tpu.transpose %95, [1, 0] : vector<16x1xf32> -> vector<1x16xf32>
    %99 = vector.shape_cast %98 : vector<1x16xf32> to vector<1x16x1xf32>
    %100 = tpu.transpose %97, [1, 0] : vector<16x1xf32> -> vector<1x16xf32>
    %101 = vector.shape_cast %100 : vector<1x16xf32> to vector<1x1x16xf32>
    %102 = vector.broadcast %99 : vector<1x16x1xf32> to vector<1x16x16xf32>
    %103 = vector.broadcast %101 : vector<1x1x16xf32> to vector<1x16x16xf32>
    %104 = arith.addf %102, %103 : vector<1x16x16xf32>
    %cst_43 = arith.constant 0.000000e+00 : f32
    %105 = vector.broadcast %cst_43 : f32 to vector<1x16x16xf32>
    %106 = arith.cmpf ogt, %104, %105 : vector<1x16x16xf32>
    %cst_44 = arith.constant 2.000000e-01 : f32
    %107 = vector.broadcast %cst_44 : f32 to vector<1x16x16xf32>
    %108 = arith.mulf %107, %104 : vector<1x16x16xf32>
    %109 = arith.select %106, %104, %108 : vector<1x16x16xi1>, vector<1x16x16xf32>
    %110 = vector.shape_cast %5 : vector<16x16xi1> to vector<1x16x16xi1>
    %cst_45 = arith.constant -1.000000e+30 : f32
    %111 = vector.broadcast %cst_45 : f32 to vector<1x16x16xf32>
    %112 = arith.select %110, %109, %111 : vector<1x16x16xi1>, vector<1x16x16xf32>
    %cst_46 = arith.constant dense<0xFF800000> : vector<1x16xf32>
    %113 = vector.multi_reduction <maximumf>, %112, %cst_46 [2] : vector<1x16x16xf32> to vector<1x16xf32>
    %114 = vector.shape_cast %113 : vector<1x16xf32> to vector<1x16x1xf32>
    %115 = vector.broadcast %114 : vector<1x16x1xf32> to vector<1x16x16xf32>
    %116 = arith.subf %112, %115 : vector<1x16x16xf32>
    %117 = math.exp %116 : vector<1x16x16xf32>
    %cst_47 = arith.constant dense<0.000000e+00> : vector<1x16xf32>
    %118 = vector.multi_reduction <add>, %117, %cst_47 [2] : vector<1x16x16xf32> to vector<1x16xf32>
    %119 = vector.shape_cast %118 : vector<1x16xf32> to vector<1x16x1xf32>
    %120 = vector.broadcast %119 : vector<1x16x1xf32> to vector<1x16x16xf32>
    %121 = arith.divf %117, %120 : vector<1x16x16xf32>
    %122 = vector.shape_cast %121 : vector<1x16x16xf32> to vector<16x16xf32>
    %cst_48 = arith.constant dense<0.000000e+00> : vector<16x128xf32>
    %123 = tpu.matmul %122, %93, %cst_48 {dimension_numbers = #tpu.dot_dimension_numbers<[1], [0], [0], [1], [0, 0, 1, 1], [], []>} : vector<16x16xf32>, vector<16x128xf32>, vector<16x128xf32> -> vector<16x128xf32>
    %c0_49 = arith.constant 0 : index
    %c0_50 = arith.constant 0 : index
    %124 = vector.load %arg10[%c0_49, %c0_50] : memref<1x128xf32, #tpu.memory_space<vmem>>, vector<1x128xf32>
    %125 = vector.broadcast %124 : vector<1x128xf32> to vector<16x128xf32>
    %126 = arith.addf %123, %125 : vector<16x128xf32>
    %cst_51 = arith.constant 0.000000e+00 : f32
    %127 = vector.broadcast %cst_51 : f32 to vector<16x128xf32>
    %128 = arith.maximumf %126, %127 : vector<16x128xf32>
    %cst_52 = arith.constant dense<0xFF800000> : vector<128xf32>
    %129 = vector.multi_reduction <maximumf>, %128, %cst_52 [0] : vector<16x128xf32> to vector<128xf32>
    %130 = vector.shape_cast %129 : vector<128xf32> to vector<1x128xf32>
    %131 = arith.truncf %130 : vector<1x128xf32> to vector<1x128xbf16>
    %c0_53 = arith.constant 0 : index
    %c0_54 = arith.constant 0 : index
    %132 = vector.load %arg11[%c0_53, %c0_54] : memref<128x128xbf16, #tpu.memory_space<vmem>>, vector<128x128xbf16>
    %cst_55 = arith.constant dense<0.000000e+00> : vector<1x128xf32>
    %133 = tpu.matmul %131, %132, %cst_55 {dimension_numbers = #tpu.dot_dimension_numbers<[1], [0], [0], [1], [0, 0, 1, 1], [], []>} : vector<1x128xbf16>, vector<128x128xbf16>, vector<1x128xf32> -> vector<1x128xf32>
    %c0_56 = arith.constant 0 : index
    %c0_57 = arith.constant 0 : index
    %134 = vector.load %arg12[%c0_56, %c0_57] : memref<1x128xf32, #tpu.memory_space<vmem>>, vector<1x128xf32>
    %135 = arith.addf %133, %134 : vector<1x128xf32>
    %cst_58 = arith.constant 0.000000e+00 : f32
    %136 = vector.broadcast %cst_58 : f32 to vector<1x128xf32>
    %137 = arith.maximumf %135, %136 : vector<1x128xf32>
    %c0_59 = arith.constant 0 : index
    %c0_60 = arith.constant 0 : index
    %c0_61 = arith.constant 0 : index
    %138 = vector.load %arg13[%c0_59, %c0_60, %c0_61] : memref<1x1x128xf32, #tpu.memory_space<vmem>>, vector<1x1x128xf32>
    %139 = vector.shape_cast %138 : vector<1x1x128xf32> to vector<1x128xf32>
    %140 = vector.shape_cast %137 : vector<1x128xf32> to vector<1x1x128xf32>
    tpu.vector_store %arg13[%c0_59, %c0_60, %c0_61], %140 {strides = array<i32>} : memref<1x1x128xf32, #tpu.memory_space<vmem>>, vector<1x1x128xf32>,
    return
  }
  func.func @transform_0(%arg0: i32) -> (i32, i32, i32) {
    %c0_i32 = arith.constant 0 : i32
    %c0_i32_0 = arith.constant 0 : i32
    %c0_i32_1 = arith.constant 0 : i32
    return %arg0, %c0_i32, %c0_i32_0 : i32, i32, i32
  }
  func.func @transform_1(%arg0: i32) -> (i32, i32, i32) {
    %c0_i32 = arith.constant 0 : i32
    %c0_i32_0 = arith.constant 0 : i32
    %c0_i32_1 = arith.constant 0 : i32
    return %arg0, %c0_i32, %c0_i32_0 : i32, i32, i32
  }
  func.func @transform_2(%arg0: i32) -> (i32, i32) {
    %c0_i32 = arith.constant 0 : i32
    %c0_i32_0 = arith.constant 0 : i32
    %c0_i32_1 = arith.constant 0 : i32
    return %c0_i32, %c0_i32_0 : i32, i32
  }
  func.func @transform_3(%arg0: i32) -> (i32, i32) {
    %c0_i32 = arith.constant 0 : i32
    %c0_i32_0 = arith.constant 0 : i32
    %c0_i32_1 = arith.constant 0 : i32
    return %c0_i32, %c0_i32_0 : i32, i32
  }
  func.func @transform_4(%arg0: i32) -> (i32, i32) {
    %c0_i32 = arith.constant 0 : i32
    %c0_i32_0 = arith.constant 0 : i32
    %c0_i32_1 = arith.constant 0 : i32
    return %c0_i32, %c0_i32_0 : i32, i32
  }
  func.func @transform_5(%arg0: i32) -> (i32, i32) {
    %c0_i32 = arith.constant 0 : i32
    %c0_i32_0 = arith.constant 0 : i32
    %c0_i32_1 = arith.constant 0 : i32
    return %c0_i32, %c0_i32_0 : i32, i32
  }
  func.func @transform_6(%arg0: i32) -> (i32, i32) {
    %c0_i32 = arith.constant 0 : i32
    %c0_i32_0 = arith.constant 0 : i32
    %c0_i32_1 = arith.constant 0 : i32
    return %c0_i32, %c0_i32_0 : i32, i32
  }
  func.func @transform_7(%arg0: i32) -> (i32, i32) {
    %c0_i32 = arith.constant 0 : i32
    %c0_i32_0 = arith.constant 0 : i32
    %c0_i32_1 = arith.constant 0 : i32
    return %c0_i32, %c0_i32_0 : i32, i32
  }
  func.func @transform_8(%arg0: i32) -> (i32, i32) {
    %c0_i32 = arith.constant 0 : i32
    %c0_i32_0 = arith.constant 0 : i32
    %c0_i32_1 = arith.constant 0 : i32
    return %c0_i32, %c0_i32_0 : i32, i32
  }
  func.func @transform_9(%arg0: i32) -> (i32, i32) {
    %c0_i32 = arith.constant 0 : i32
    %c0_i32_0 = arith.constant 0 : i32
    %c0_i32_1 = arith.constant 0 : i32
    return %c0_i32, %c0_i32_0 : i32, i32
  }
  func.func @transform_10(%arg0: i32) -> (i32, i32) {
    %c0_i32 = arith.constant 0 : i32
    %c0_i32_0 = arith.constant 0 : i32
    %c0_i32_1 = arith.constant 0 : i32
    return %c0_i32, %c0_i32_0 : i32, i32
  }
  func.func @transform_11(%arg0: i32) -> (i32, i32) {
    %c0_i32 = arith.constant 0 : i32
    %c0_i32_0 = arith.constant 0 : i32
    %c0_i32_1 = arith.constant 0 : i32
    return %c0_i32, %c0_i32_0 : i32, i32
  }
  func.func @transform_12(%arg0: i32) -> (i32, i32, i32) {
    %c0_i32 = arith.constant 0 : i32
    %c0_i32_0 = arith.constant 0 : i32
    %c0_i32_1 = arith.constant 0 : i32
    return %arg0, %c0_i32, %c0_i32_0 : i32, i32, i32
  }
}

</mosaic_0001>

<llo_original>
// kernel: tpu_custom_call.1
$region0: #{tpu_custom_call.1}
  #allocation0 [shape = 'u32[]', space=smem, size = 0x4, offset = 0x4, fixed_abs, tag = 'smem constant byte address 0x4 - core index']
  #allocation1 [shape = 'u32[144,128]{1,0:T(1,128)}', space=vmem, size = 0x12000, scoped, tag = 'internal scratch']
  %s0 = inlined_call_operand.vmem [shape: f32[2,16,32], index: 0, kind: input, shape index: {}]
  %s1 = inlined_call_operand.vmem [shape: f32[2,16,16], index: 1, kind: input, shape index: {}]
  %s2 = inlined_call_operand.vmem [shape: bf16[32,320], index: 2, kind: input, shape index: {}]
  %s3 = inlined_call_operand.vmem [shape: f32[320,10], index: 3, kind: input, shape index: {}]
  %s4 = inlined_call_operand.vmem [shape: f32[320,10], index: 4, kind: input, shape index: {}]
  %s5 = inlined_call_operand.vmem [shape: f32[1,320], index: 5, kind: input, shape index: {}]
  %s6 = inlined_call_operand.vmem [shape: bf16[320,128], index: 6, kind: input, shape index: {}]
  %s7 = inlined_call_operand.vmem [shape: f32[128,1], index: 7, kind: input, shape index: {}]
  %s8 = inlined_call_operand.vmem [shape: f32[128,1], index: 8, kind: input, shape index: {}]
  %s9 = inlined_call_operand.vmem [shape: f32[1,128], index: 9, kind: input, shape index: {}]
  %s10 = inlined_call_operand.vmem [shape: bf16[128,128], index: 10, kind: input, shape index: {}]
  %s11 = inlined_call_operand.vmem [shape: f32[1,128], index: 11, kind: input, shape index: {}]
  %s12 = inlined_call_operand.hbm [shape: f32[2,1,128], index: 12, kind: output, shape index: {}]
  %s13 = sld [smem:[#allocation0]]
  $region81: #{tpu_custom_call.1} parent=0
    _
  %s15 = ssub.s32 1, %s13
  %s16 = scalar_select 0, %s15, %s13
  $region1: #{tpu_custom_call.1} parent=0
    #allocation2 [shape = 'u8[1024]{0}', space=vmem, size = 0x400, scoped, tag = 'output window, operand 0']
    #allocation3 [shape = 's32[2]{0}', space=sflag, size = 0x8, scoped, tag = 'scoped memory for tpu_custom_call.1']
    %17 = vsyncpa [#allocation3], 0
    %s18 = scalar_lea.sflag [#allocation3], 1
    %19 = vsyncpa %s18, 0
    loop: start=0, step=1, limit=4
    $region2: #{tpu_custom_call.1} parent=1 // loop_pre_header
      _
    $region3: #{tpu_custom_call.1} parent=1 // loop_header
      %s21 = sphi 0, %s25
      %p22 = scmp.ge.s32.totalorder %s21, 4
      %s31 = sphi 0, %s33
      %s34 = sphi 0, %s31
      %s35 = sphi 0, %s34
      %s51 = sphi 0, %s35
      %s57 = sphi 0, %s59
      %s60 = sphi 0, %s57
      %s61 = sphi 0, %s60
      %s77 = sphi 0, %s61
      %s81 = sphi 0, %s81
      %s83 = sphi 0, %s81
      %s84 = sphi 0, %s83
      %s98 = sphi 0, %s84
      %s102 = sphi 0, %s102
      %s104 = sphi 0, %s102
      %s105 = sphi 0, %s104
      %s119 = sphi 0, %s105
      %s123 = sphi 0, %s123
      %s125 = sphi 0, %s123
      %s126 = sphi 0, %s125
      %s140 = sphi 0, %s126
      %s144 = sphi 0, %s144
      %s146 = sphi 0, %s144
      %s147 = sphi 0, %s146
      %s161 = sphi 0, %s147
      %s165 = sphi 0, %s165
      %s167 = sphi 0, %s165
      %s168 = sphi 0, %s167
      %s182 = sphi 0, %s168
      %s186 = sphi 0, %s186
      %s188 = sphi 0, %s186
      %s189 = sphi 0, %s188
      %s203 = sphi 0, %s189
      %s207 = sphi 0, %s207
      %s209 = sphi 0, %s207
      %s210 = sphi 0, %s209
      %s224 = sphi 0, %s210
      %s228 = sphi 0, %s228
      %s230 = sphi 0, %s228
      %s231 = sphi 0, %s230
      %s245 = sphi 0, %s231
      %s249 = sphi 0, %s249
      %s251 = sphi 0, %s249
      %s252 = sphi 0, %s251
      %s266 = sphi 0, %s252
      %s270 = sphi 0, %s270
      %s272 = sphi 0, %s270
      %s273 = sphi 0, %s272
      %s287 = sphi 0, %s273
      %s293 = sphi 0, %s295
      %s296 = sphi 0, %s293
      %s297 = sphi 0, %s296
      %s313 = sphi 0, %s297
    $region4: #{tpu_custom_call.1} parent=1 // loop_header_branch
      %24 = sbr.rel (%p22) target = $region8
    $region5: #{tpu_custom_call.1} parent=1 // loop_body
      %s26 = ssub.s32 %s21, 1
      %s27 = ssub.s32 %s21, 2
      %s28 = sadd.s32 %s21, 1
      %s29 = ssub.s32 %s21, %s28
      %p30 = scmp.eq.s32.totalorder %s29, 0
      %s32 = sadd.s32 %s31, 1
      %s33 = scalar_select %p30, %s31, %s32
      %p36 = pneg %p30
      %p37 = scmp.eq.s32.totalorder %s21, 1
      %p38 = por %p36, %p37
      %p39 = scmp.ne.s32.totalorder %s31, %s34
      %p40 = scmp.eq.s32.totalorder %s21, 0
      %p41 = por %p39, %p40
      %p42 = scmp.ne.s32.totalorder %s31, %s34
      %p43 = scmp.eq.s32.totalorder %s26, 1
      %p44 = por %p42, %p43
      %p45 = scmp.ne.s32.totalorder %s34, %s35
      %p46 = scmp.eq.s32.totalorder %s26, 0
      %p47 = por %p45, %p46
      %p48 = scmp.ne.s32.totalorder %s34, %s35
      %p49 = scmp.eq.s32.totalorder %s27, 1
      %p50 = por %p48, %p49
      %p52 = scmp.ne.s32.totalorder %s35, %s51
      %p53 = scmp.eq.s32.totalorder %s27, 0
      %p54 = por %p52, %p53
      %s55 = ssub.s32 %s21, %s28
      %p56 = scmp.eq.s32.totalorder %s55, 0
      %s58 = sadd.s32 %s57, 1
      %s59 = scalar_select %p56, %s57, %s58
      %p62 = pneg %p56
      %p63 = scmp.eq.s32.totalorder %s21, 1
      %p64 = por %p62, %p63
      %p65 = scmp.ne.s32.totalorder %s57, %s60
      %p66 = scmp.eq.s32.totalorder %s21, 0
      %p67 = por %p65, %p66
      %p68 = scmp.ne.s32.totalorder %s57, %s60
      %p69 = scmp.eq.s32.totalorder %s26, 1
      %p70 = por %p68, %p69
      %p71 = scmp.ne.s32.totalorder %s60, %s61
      %p72 = scmp.eq.s32.totalorder %s26, 0
      %p73 = por %p71, %p72
      %p74 = scmp.ne.s32.totalorder %s60, %s61
      %p75 = scmp.eq.s32.totalorder %s27, 1
      %p76 = por %p74, %p75
      %p78 = scmp.ne.s32.totalorder %s61, %s77
      %p79 = scmp.eq.s32.totalorder %s27, 0
      %p80 = por %p78, %p79
      %s82 = sadd.s32 %s81, 1
      %p85 = scmp.eq.s32.totalorder %s21, 1
      %p86 = scmp.ne.s32.totalorder %s81, %s83
      %p87 = scmp.eq.s32.totalorder %s21, 0
      %p88 = por %p86, %p87
      %p89 = scmp.ne.s32.totalorder %s81, %s83
      %p90 = scmp.eq.s32.totalorder %s26, 1
      %p91 = por %p89, %p90
      %p92 = scmp.ne.s32.totalorder %s83, %s84
      %p93 = scmp.eq.s32.totalorder %s26, 0
      %p94 = por %p92, %p93
      %p95 = scmp.ne.s32.totalorder %s83, %s84
      %p96 = scmp.eq.s32.totalorder %s27, 1
      %p97 = por %p95, %p96
      %p99 = scmp.ne.s32.totalorder %s84, %s98
      %p100 = scmp.eq.s32.totalorder %s27, 0
      %p101 = por %p99, %p100
      %s103 = sadd.s32 %s102, 1
      %p106 = scmp.eq.s32.totalorder %s21, 1
      %p107 = scmp.ne.s32.totalorder %s102, %s104
      %p108 = scmp.eq.s32.totalorder %s21, 0
      %p109 = por %p107, %p108
      %p110 = scmp.ne.s32.totalorder %s102, %s104
      %p111 = scmp.eq.s32.totalorder %s26, 1
      %p112 = por %p110, %p111
      %p113 = scmp.ne.s32.totalorder %s104, %s105
      %p114 = scmp.eq.s32.totalorder %s26, 0
      %p115 = por %p113, %p114
      %p116 = scmp.ne.s32.totalorder %s104, %s105
      %p117 = scmp.eq.s32.totalorder %s27, 1
      %p118 = por %p116, %p117
      %p120 = scmp.ne.s32.totalorder %s105, %s119
      %p121 = scmp.eq.s32.totalorder %s27, 0
      %p122 = por %p120, %p121
      %s124 = sadd.s32 %s123, 1
      %p127 = scmp.eq.s32.totalorder %s21, 1
      %p128 = scmp.ne.s32.totalorder %s123, %s125
      %p129 = scmp.eq.s32.totalorder %s21, 0
      %p130 = por %p128, %p129
      %p131 = scmp.ne.s32.totalorder %s123, %s125
      %p132 = scmp.eq.s32.totalorder %s26, 1
      %p133 = por %p131, %p132
      %p134 = scmp.ne.s32.totalorder %s125, %s126
      %p135 = scmp.eq.s32.totalorder %s26, 0
      %p136 = por %p134, %p135
      %p137 = scmp.ne.s32.totalorder %s125, %s126
      %p138 = scmp.eq.s32.totalorder %s27, 1
      %p139 = por %p137, %p138
      %p141 = scmp.ne.s32.totalorder %s126, %s140
      %p142 = scmp.eq.s32.totalorder %s27, 0
      %p143 = por %p141, %p142
      %s145 = sadd.s32 %s144, 1
      %p148 = scmp.eq.s32.totalorder %s21, 1
      %p149 = scmp.ne.s32.totalorder %s144, %s146
      %p150 = scmp.eq.s32.totalorder %s21, 0
      %p151 = por %p149, %p150
      %p152 = scmp.ne.s32.totalorder %s144, %s146
      %p153 = scmp.eq.s32.totalorder %s26, 1
      %p154 = por %p152, %p153
      %p155 = scmp.ne.s32.totalorder %s146, %s147
      %p156 = scmp.eq.s32.totalorder %s26, 0
      %p157 = por %p155, %p156
      %p158 = scmp.ne.s32.totalorder %s146, %s147
      %p159 = scmp.eq.s32.totalorder %s27, 1
      %p160 = por %p158, %p159
      %p162 = scmp.ne.s32.totalorder %s147, %s161
      %p163 = scmp.eq.s32.totalorder %s27, 0
      %p164 = por %p162, %p163
      %s166 = sadd.s32 %s165, 1
      %p169 = scmp.eq.s32.totalorder %s21, 1
      %p170 = scmp.ne.s32.totalorder %s165, %s167
      %p171 = scmp.eq.s32.totalorder %s21, 0
      %p172 = por %p170, %p171
      %p173 = scmp.ne.s32.totalorder %s165, %s167
      %p174 = scmp.eq.s32.totalorder %s26, 1
      %p175 = por %p173, %p174
      %p176 = scmp.ne.s32.totalorder %s167, %s168
      %p177 = scmp.eq.s32.totalorder %s26, 0
      %p178 = por %p176, %p177
      %p179 = scmp.ne.s32.totalorder %s167, %s168
      %p180 = scmp.eq.s32.totalorder %s27, 1
      %p181 = por %p179, %p180
      %p183 = scmp.ne.s32.totalorder %s168, %s182
      %p184 = scmp.eq.s32.totalorder %s27, 0
      %p185 = por %p183, %p184
      %s187 = sadd.s32 %s186, 1
      %p190 = scmp.eq.s32.totalorder %s21, 1
      %p191 = scmp.ne.s32.totalorder %s186, %s188
      %p192 = scmp.eq.s32.totalorder %s21, 0
      %p193 = por %p191, %p192
      %p194 = scmp.ne.s32.totalorder %s186, %s188
      %p195 = scmp.eq.s32.totalorder %s26, 1
      %p196 = por %p194, %p195
      %p197 = scmp.ne.s32.totalorder %s188, %s189
      %p198 = scmp.eq.s32.totalorder %s26, 0
      %p199 = por %p197, %p198
      %p200 = scmp.ne.s32.totalorder %s188, %s189
      %p201 = scmp.eq.s32.totalorder %s27, 1
      %p202 = por %p200, %p201
      %p204 = scmp.ne.s32.totalorder %s189, %s203
      %p205 = scmp.eq.s32.totalorder %s27, 0
      %p206 = por %p204, %p205
      %s208 = sadd.s32 %s207, 1
      %p211 = scmp.eq.s32.totalorder %s21, 1
      %p212 = scmp.ne.s32.totalorder %s207, %s209
      %p213 = scmp.eq.s32.totalorder %s21, 0
      %p214 = por %p212, %p213
      %p215 = scmp.ne.s32.totalorder %s207, %s209
      %p216 = scmp.eq.s32.totalorder %s26, 1
      %p217 = por %p215, %p216
      %p218 = scmp.ne.s32.totalorder %s209, %s210
      %p219 = scmp.eq.s32.totalorder %s26, 0
      %p220 = por %p218, %p219
      %p221 = scmp.ne.s32.totalorder %s209, %s210
      %p222 = scmp.eq.s32.totalorder %s27, 1
      %p223 = por %p221, %p222
      %p225 = scmp.ne.s32.totalorder %s210, %s224
      %p226 = scmp.eq.s32.totalorder %s27, 0
      %p227 = por %p225, %p226
      %s229 = sadd.s32 %s228, 1
      %p232 = scmp.eq.s32.totalorder %s21, 1
      %p233 = scmp.ne.s32.totalorder %s228, %s230
      %p234 = scmp.eq.s32.totalorder %s21, 0
      %p235 = por %p233, %p234
      %p236 = scmp.ne.s32.totalorder %s228, %s230
      %p237 = scmp.eq.s32.totalorder %s26, 1
      %p238 = por %p236, %p237
      %p239 = scmp.ne.s32.totalorder %s230, %s231
      %p240 = scmp.eq.s32.totalorder %s26, 0
      %p241 = por %p239, %p240
      %p242 = scmp.ne.s32.totalorder %s230, %s231
      %p243 = scmp.eq.s32.totalorder %s27, 1
      %p244 = por %p242, %p243
      %p246 = scmp.ne.s32.totalorder %s231, %s245
      %p247 = scmp.eq.s32.totalorder %s27, 0
      %p248 = por %p246, %p247
      %s250 = sadd.s32 %s249, 1
      %p253 = scmp.eq.s32.totalorder %s21, 1
      %p254 = scmp.ne.s32.totalorder %s249, %s251
      %p255 = scmp.eq.s32.totalorder %s21, 0
      %p256 = por %p254, %p255
      %p257 = scmp.ne.s32.totalorder %s249, %s251
      %p258 = scmp.eq.s32.totalorder %s26, 1
      %p259 = por %p257, %p258
      %p260 = scmp.ne.s32.totalorder %s251, %s252
      %p261 = scmp.eq.s32.totalorder %s26, 0
      %p262 = por %p260, %p261
      %p263 = scmp.ne.s32.totalorder %s251, %s252
      %p264 = scmp.eq.s32.totalorder %s27, 1
      %p265 = por %p263, %p264
      %p267 = scmp.ne.s32.totalorder %s252, %s266
      %p268 = scmp.eq.s32.totalorder %s27, 0
      %p269 = por %p267, %p268
      %s271 = sadd.s32 %s270, 1
      %p274 = scmp.eq.s32.totalorder %s21, 1
      %p275 = scmp.ne.s32.totalorder %s270, %s272
      %p276 = scmp.eq.s32.totalorder %s21, 0
      %p277 = por %p275, %p276
      %p278 = scmp.ne.s32.totalorder %s270, %s272
      %p279 = scmp.eq.s32.totalorder %s26, 1
      %p280 = por %p278, %p279
      %p281 = scmp.ne.s32.totalorder %s272, %s273
      %p282 = scmp.eq.s32.totalorder %s26, 0
      %p283 = por %p281, %p282
      %p284 = scmp.ne.s32.totalorder %s272, %s273
      %p285 = scmp.eq.s32.totalorder %s27, 1
      %p286 = por %p284, %p285
      %p288 = scmp.ne.s32.totalorder %s273, %s287
      %p289 = scmp.eq.s32.totalorder %s27, 0
      %p290 = por %p288, %p289
      %s291 = ssub.s32 %s21, %s28
      %p292 = scmp.eq.s32.totalorder %s291, 0
      %s294 = sadd.s32 %s293, 1
      %s295 = scalar_select %p292, %s293, %s294
      %p298 = pneg %p292
      %p299 = scmp.eq.s32.totalorder %s21, 1
      %p300 = por %p298, %p299
      %p301 = scmp.ne.s32.totalorder %s293, %s296
      %p302 = scmp.eq.s32.totalorder %s21, 0
      %p303 = por %p301, %p302
      %p304 = scmp.ne.s32.totalorder %s293, %s296
      %p305 = scmp.eq.s32.totalorder %s26, 1
      %p306 = por %p304, %p305
      %p307 = scmp.ne.s32.totalorder %s296, %s297
      %p308 = scmp.eq.s32.totalorder %s26, 0
      %p309 = por %p307, %p308
      %p310 = scmp.ne.s32.totalorder %s296, %s297
      %p311 = scmp.eq.s32.totalorder %s27, 1
      %p312 = por %p310, %p311
      %p314 = scmp.ne.s32.totalorder %s297, %s313
      %p315 = scmp.eq.s32.totalorder %s27, 0
      %p316 = por %p314, %p315
      %p317 = scmp.le.s32.totalorder 1, %s21
      %p318 = scmp.lt.s32.totalorder %s21, 3
      %p319 = pnand %p317, %p318
      %p320 = pneg %p319
      // Predicated region
      $region9: #{tpu_custom_call.1} parent=5 // pred_check
        _
      $region10: #{tpu_custom_call.1} parent=5 // pred_check_branch
        %322 = sbr.rel (%p319) target = $region12
      $region11: #{tpu_custom_call.1} parent=5 // pred_region
        %s323 = ssub.s32 %s21, 1
        // Predicated region
        $region13: #{tpu_custom_call.1} parent=11 // pred_check
          %p324 = pneg %p94
        $region14: #{tpu_custom_call.1} parent=11 // pred_check_branch
          %326 = sbr.rel (%p324) target = $region16
        $region15: #{tpu_custom_call.1} parent=11 // pred_region
          _
        $region16: #{tpu_custom_call.1} parent=11 // pred_fallthru
          _
        // Predicated region
        $region17: #{tpu_custom_call.1} parent=11 // pred_check
          %p327 = pneg %p115
        $region18: #{tpu_custom_call.1} parent=11 // pred_check_branch
          %329 = sbr.rel (%p327) target = $region20
        $region19: #{tpu_custom_call.1} parent=11 // pred_region
          _
        $region20: #{tpu_custom_call.1} parent=11 // pred_fallthru
          _
        // Predicated region
        $region21: #{tpu_custom_call.1} parent=11 // pred_check
          %p330 = pneg %p136
        $region22: #{tpu_custom_call.1} parent=11 // pred_check_branch
          %332 = sbr.rel (%p330) target = $region24
        $region23: #{tpu_custom_call.1} parent=11 // pred_region
          _
        $region24: #{tpu_custom_call.1} parent=11 // pred_fallthru
          _
        // Predicated region
        $region25: #{tpu_custom_call.1} parent=11 // pred_check
          %p333 = pneg %p157
        $region26: #{tpu_custom_call.1} parent=11 // pred_check_branch
          %335 = sbr.rel (%p333) target = $region28
        $region27: #{tpu_custom_call.1} parent=11 // pred_region
          _
        $region28: #{tpu_custom_call.1} parent=11 // pred_fallthru
          _
        // Predicated region
        $region29: #{tpu_custom_call.1} parent=11 // pred_check
          %p336 = pneg %p178
        $region30: #{tpu_custom_call.1} parent=11 // pred_check_branch
          %338 = sbr.rel (%p336) target = $region32
        $region31: #{tpu_custom_call.1} parent=11 // pred_region
          _
        $region32: #{tpu_custom_call.1} parent=11 // pred_fallthru
          _
        // Predicated region
        $region33: #{tpu_custom_call.1} parent=11 // pred_check
          %p339 = pneg %p199
        $region34: #{tpu_custom_call.1} parent=11 // pred_check_branch
          %341 = sbr.rel (%p339) target = $region36
        $region35: #{tpu_custom_call.1} parent=11 // pred_region
          _
        $region36: #{tpu_custom_call.1} parent=11 // pred_fallthru
          _
        // Predicated region
        $region37: #{tpu_custom_call.1} parent=11 // pred_check
          %p342 = pneg %p220
        $region38: #{tpu_custom_call.1} parent=11 // pred_check_branch
          %344 = sbr.rel (%p342) target = $region40
        $region39: #{tpu_custom_call.1} parent=11 // pred_region
          _
        $region40: #{tpu_custom_call.1} parent=11 // pred_fallthru
          _
        // Predicated region
        $region41: #{tpu_custom_call.1} parent=11 // pred_check
          %p345 = pneg %p241
        $region42: #{tpu_custom_call.1} parent=11 // pred_check_branch
          %347 = sbr.rel (%p345) target = $region44
        $region43: #{tpu_custom_call.1} parent=11 // pred_region
          _
        $region44: #{tpu_custom_call.1} parent=11 // pred_fallthru
          _
        // Predicated region
        $region45: #{tpu_custom_call.1} parent=11 // pred_check
          %p348 = pneg %p262
        $region46: #{tpu_custom_call.1} parent=11 // pred_check_branch
          %350 = sbr.rel (%p348) target = $region48
        $region47: #{tpu_custom_call.1} parent=11 // pred_region
          _
        $region48: #{tpu_custom_call.1} parent=11 // pred_fallthru
          _
        // Predicated region
        $region49: #{tpu_custom_call.1} parent=11 // pred_check
          %p351 = pneg %p283
        $region50: #{tpu_custom_call.1} parent=11 // pred_check_branch
          %353 = sbr.rel (%p351) target = $region52
        $region51: #{tpu_custom_call.1} parent=11 // pred_region
          _
        $region52: #{tpu_custom_call.1} parent=11 // pred_fallthru
          _
      $region12: #{tpu_custom_call.1} parent=5 // pred_fallthru
        _
      %p354 = scmp.lt.s32.totalorder %s21, 2
      // Predicated region
      $region53: #{tpu_custom_call.1} parent=5 // pred_check
        %p355 = pneg %p354
      $region54: #{tpu_custom_call.1} parent=5 // pred_check_branch
        %357 = sbr.rel (%p355) target = $region56
      $region55: #{tpu_custom_call.1} parent=5 // pred_region
        // Predicated region
        $region57: #{tpu_custom_call.1} parent=55 // pred_check
          %p358 = pneg %p41
        $region58: #{tpu_custom_call.1} parent=55 // pred_check_branch
          %360 = sbr.rel (%p358) target = $region60
        $region59: #{tpu_custom_call.1} parent=55 // pred_region
          %p361 = scmp.lt.s32.totalorder %s21, 1
          %s362 = scalar_select %p361, %s21, 1
          %s363 = smul.addr %s362, 2
          %s364 = smul.addr %s363, 8
          %s365 = scalar_lea.vmem %s0, %s364
        $region60: #{tpu_custom_call.1} parent=55 // pred_fallthru
          _
        // Predicated region
        $region61: #{tpu_custom_call.1} parent=55 // pred_check
          %p366 = pneg %p67
        $region62: #{tpu_custom_call.1} parent=55 // pred_check_branch
          %368 = sbr.rel (%p366) target = $region64
        $region63: #{tpu_custom_call.1} parent=55 // pred_region
          %p369 = scmp.lt.s32.totalorder %s21, 1
          %s370 = scalar_select %p369, %s21, 1
          %s371 = smul.addr %s370, 2
          %s372 = smul.addr %s371, 8
          %s373 = scalar_lea.vmem %s1, %s372
        $region64: #{tpu_custom_call.1} parent=55 // pred_fallthru
          _
      $region56: #{tpu_custom_call.1} parent=5 // pred_fallthru
        _
      %p374 = scmp.le.s32.totalorder 1, %s21
      %p375 = scmp.lt.s32.totalorder %s21, 3
      %p376 = pnand %p374, %p375
      %p377 = pneg %p376
      // Predicated region
      $region65: #{tpu_custom_call.1} parent=5 // pred_check
        _
      $region66: #{tpu_custom_call.1} parent=5 // pred_check_branch
        %379 = sbr.rel (%p376) target = $region68
      $region67: #{tpu_custom_call.1} parent=5 // pred_region
        %s380 = ssub.s32 %s21, 1
        %p381 = scmp.lt.s32.totalorder %s26, 1
        %s382 = scalar_select %p381, %s26, 1
        %s383 = smul.addr %s382, 2
        %s384 = smul.addr %s383, 8
        %s385 = scalar_lea.vmem %s0, %s384
        %p386 = pneg %p47
        %p387 = pneg %p44
        %p388 = scmp.lt.s32.totalorder %s26, 1
        %s389 = scalar_select %p388, %s26, 1
        %s390 = smul.addr %s389, 2
        %s391 = smul.addr %s390, 8
        %s392 = scalar_lea.vmem %s1, %s391
        %p393 = pneg %p73
        %p394 = pneg %p70
        %p395 = pneg %p94
        %p396 = pneg %p91
        %p397 = pneg %p115
        %p398 = pneg %p112
        %p399 = pneg %p136
        %p400 = pneg %p133
        %p401 = pneg %p157
        %p402 = pneg %p154
        %p403 = pneg %p178
        %p404 = pneg %p175
        %p405 = pneg %p199
        %p406 = pneg %p196
        %p407 = pneg %p220
        %p408 = pneg %p217
        %p409 = pneg %p241
        %p410 = pneg %p238
        %p411 = pneg %p262
        %p412 = pneg %p259
        %p413 = pneg %p283
        %p414 = pneg %p280
        %p415 = pneg %p309
        %p416 = pneg %p306
        %s417 = sand.u32 %s296, 1
        %s418 = scalar_lea.sflag [#allocation3], %s417
        %s419 = sand.u32 %s296, 1
        %s420 = scalar_lea.vmem [#allocation2], %s419
        %p421 = scmp.lt.s32.totalorder %s26, 1
        %s422 = scalar_select %p421, %s26, 1
        %s423 = smul.addr %s422, 2
        %s424 = smul.addr %s423, 8
        %s425 = scalar_lea.vmem %s0, %s424
        %p426 = scmp.lt.s32.totalorder %s26, 1
        %s427 = scalar_select %p426, %s26, 1
        %s428 = smul.addr %s427, 2
        %s429 = smul.addr %s428, 8
        %s430 = scalar_lea.vmem %s1, %s429
        %v432 = vld [vmem:[%s425] sm:$0xff]
        %v433 = vld [vmem:[%s425 + $0x8] sm:$0xff]
        %v434 = vld [vmem:[%s430] sm:$0xff]
        %v435 = vld [vmem:[%s430 + $0x8] sm:$0xff]
        %vm436 = vcmp.gt.f32.partialorder %v434, 0.0
        %vm437 = vcmp.gt.f32.partialorder %v435, 0.0
        %v438 = vpack.c.bf16 %v433, %v432
        %v439 = vld [vmem:[%s2] sm:$0xff]
        %v440 = vld [vmem:[%s2 + $0x8] sm:$0xf]
        %v441 = vld [vmem:[%s2 + $0xc] sm:$0xff]
        %v442 = vld [vmem:[%s2 + $0x14] sm:$0xf]
        %v443 = vld [vmem:[%s2 + $0x18] sm:$0xff]
        %v444 = vld [vmem:[%s2 + $0x20] sm:$0xf]
        %v445 = vld [vmem:[%s2 + $0x24] sm:$0xff]
        %v446 = vld [vmem:[%s2 + $0x2c] sm:$0xf]
        %v455 = vunpack.c.l.b16 %v439
        %v456 = vunpack.c.h.b16 %v439
        %v457 = vunpack.c.l.b16 %v440
        %v458 = vunpack.c.l.b16 %v441
        %v459 = vunpack.c.h.b16 %v441
        %v460 = vunpack.c.l.b16 %v442
        %v461 = vunpack.c.l.b16 %v443
        %v462 = vunpack.c.h.b16 %v443
        %v463 = vunpack.c.l.b16 %v444
        %v464 = vunpack.c.l.b16 %v445
        %v465 = vunpack.c.h.b16 %v445
        %v466 = vunpack.c.l.b16 %v446
        %v467 = vpack.c.b16 %v458, %v455
        %v468 = vpack.c.b16 %v459, %v456
        %v469 = vpack.c.b16 %v460, %v457
        %v470 = vpack.c.b16 %v464, %v461
        %v471 = vpack.c.b16 %v465, %v462
        %v472 = vpack.c.b16 %v466, %v463
        %vm479 = vcmask 261120
        %v481 = vsel %vm479, %v438, 0
        %483 = vmatprep.subr.bf16.mxu0 %v468
        %484 = vmatpush1.bf16.msra.mxu0 %v467
        %485 = vmatprep.subr.bf16.mxu0 %v471
        %486 = vmatpush1.bf16.msra.mxu0 %v470
        %487 = vmatprep.subr.bf16.mxu0 0
        %488 = vmatpush1.bf16.msra.mxu0 0
        %489 = vmatprep.subr.bf16.mxu0 0
        %490 = vmatpush1.bf16.msra.mxu0 0
        %491 = vmatprep.subr.bf16.mxu0 0
        %492 = vmatpush1.bf16.msra.mxu0 0
        %493 = vmatprep.subr.bf16.mxu0 0
        %494 = vmatpush1.bf16.msra.mxu0 0
        %495 = vmatprep.subr.bf16.mxu0 0
        %496 = vmatpush1.bf16.msra.mxu0 0
        %497 = vmatprep.subr.bf16.mxu0 0
        %498 = vmatpush1.bf16.msra.mxu0 0
        %499 = vmatprep.subr.bf16.mxu0 0
        %500 = vmatpush1.bf16.msra.mxu0 0
        %501 = vmatprep.subr.bf16.mxu0 0
        %502 = vmatpush1.bf16.msra.mxu0 0
        %503 = vmatprep.subr.bf16.mxu0 0
        %504 = vmatpush1.bf16.msra.mxu0 0
        %505 = vmatprep.subr.bf16.mxu0 0
        %506 = vmatpush1.bf16.msra.mxu0 0
        %507 = vmatprep.subr.bf16.mxu0 0
        %508 = vmatpush1.bf16.msra.mxu0 0
        %509 = vmatprep.subr.bf16.mxu0 0
        %510 = vmatpush1.bf16.msra.mxu0 0
        %511 = vmatprep.subr.bf16.mxu0 0
        %512 = vmatpush1.bf16.msra.mxu0 0
        %513 = vmatprep.subr.bf16.mxu0 0
        %514 = vmatpush1.bf16.msra.mxu0 0
        %515 = vmatprep.mubr.bf16.mxu0 0
        %516 = vmatmul.mubr.bf16.gmra.mrb[0].mxu0 %v481
        %v517 = vpop.f32.mrb[0].mxu0
        %v518 = vadd.f32 0.0, %v517
        %v519 = vpop.f32.mrb[0].mxu0
        %v520 = vadd.f32 0.0, %v519
        %v521 = vpop.f32.mrb[0].mxu0
        %v522 = vadd.f32 0.0, %v521
        %v523 = vpop.f32.mrb[0].mxu0
        %v524 = vadd.f32 0.0, %v523
        %525 = vdwg.mxu0
        %526 = vmatprep.subr.bf16.mxu0 0
        %527 = vmatpush1.bf16.msra.mxu0 %v469
        %528 = vmatprep.subr.bf16.mxu0 0
        %529 = vmatpush1.bf16.msra.mxu0 %v472
        %530 = vmatprep.subr.bf16.mxu0 0
        %531 = vmatpush1.bf16.msra.mxu0 0
        %532 = vmatprep.subr.bf16.mxu0 0
        %533 = vmatpush1.bf16.msra.mxu0 0
        %534 = vmatprep.subr.bf16.mxu0 0
        %535 = vmatpush1.bf16.msra.mxu0 0
        %536 = vmatprep.subr.bf16.mxu0 0
        %537 = vmatpush1.bf16.msra.mxu0 0
        %538 = vmatprep.subr.bf16.mxu0 0
        %539 = vmatpush1.bf16.msra.mxu0 0
        %540 = vmatprep.subr.bf16.mxu0 0
        %541 = vmatpush1.bf16.msra.mxu0 0
        %542 = vmatprep.subr.bf16.mxu0 0
        %543 = vmatpush1.bf16.msra.mxu0 0
        %544 = vmatprep.subr.bf16.mxu0 0
        %545 = vmatpush1.bf16.msra.mxu0 0
        %546 = vmatprep.subr.bf16.mxu0 0
        %547 = vmatpush1.bf16.msra.mxu0 0
        %548 = vmatprep.subr.bf16.mxu0 0
        %549 = vmatpush1.bf16.msra.mxu0 0
        %550 = vmatprep.subr.bf16.mxu0 0
        %551 = vmatpush1.bf16.msra.mxu0 0
        %552 = vmatprep.subr.bf16.mxu0 0
        %553 = vmatpush1.bf16.msra.mxu0 0
        %554 = vmatprep.subr.bf16.mxu0 0
        %555 = vmatpush1.bf16.msra.mxu0 0
        %556 = vmatprep.subr.bf16.mxu0 0
        %557 = vmatpush1.bf16.msra.mxu0 0
        %558 = vmatprep.mubr.bf16.mxu0 0
        %559 = vmatmul.mubr.bf16.gmra.mrb[0].mxu0 %v481
        %v560 = vpop.f32.mrb[0].mxu0
        %v561 = vadd.f32 0.0, %v560
        %v562 = vpop.f32.mrb[0].mxu0
        %v563 = vpop.f32.mrb[0].mxu0
        %v564 = vadd.f32 0.0, %v563
        %v565 = vpop.f32.mrb[0].mxu0
        %566 = vdwg.mxu0
        %v567 = vld [vmem:[%s4] sm:$0xff]
        %v568 = vld [vmem:[%s4 + $0x8] sm:$0xff]
        %v569 = vld [vmem:[%s4 + $0x10] sm:$0xff]
        %v570 = vld [vmem:[%s4 + $0x18] sm:$0xff]
        %v571 = vld [vmem:[%s4 + $0x20] sm:$0xff]
        %v572 = vld [vmem:[%s4 + $0x28] sm:$0xff]
        %v573 = vld [vmem:[%s4 + $0x30] sm:$0xff]
        %v574 = vld [vmem:[%s4 + $0x38] sm:$0xff]
        %v575 = vld [vmem:[%s4 + $0x40] sm:$0xff]
        %v576 = vld [vmem:[%s4 + $0x48] sm:$0xff]
        %v577 = vld [vmem:[%s4 + $0x50] sm:$0xff]
        %v578 = vld [vmem:[%s4 + $0x58] sm:$0xff]
        %v579 = vld [vmem:[%s4 + $0x60] sm:$0xff]
        %v580 = vld [vmem:[%s4 + $0x68] sm:$0xff]
        %v581 = vld [vmem:[%s4 + $0x70] sm:$0xff]
        %v582 = vld [vmem:[%s4 + $0x78] sm:$0xff]
        %v583 = vld [vmem:[%s4 + $0x80] sm:$0xff]
        %v584 = vld [vmem:[%s4 + $0x88] sm:$0xff]
        %v585 = vld [vmem:[%s4 + $0x90] sm:$0xff]
        %v586 = vld [vmem:[%s4 + $0x98] sm:$0xff]
        %v587 = vld [vmem:[%s4 + $0xa0] sm:$0xff]
        %v588 = vld [vmem:[%s4 + $0xa8] sm:$0xff]
        %v589 = vld [vmem:[%s4 + $0xb0] sm:$0xff]
        %v590 = vld [vmem:[%s4 + $0xb8] sm:$0xff]
        %v591 = vld [vmem:[%s4 + $0xc0] sm:$0xff]
        %v592 = vld [vmem:[%s4 + $0xc8] sm:$0xff]
        %v593 = vld [vmem:[%s4 + $0xd0] sm:$0xff]
        %v594 = vld [vmem:[%s4 + $0xd8] sm:$0xff]
        %v595 = vld [vmem:[%s4 + $0xe0] sm:$0xff]
        %v596 = vld [vmem:[%s4 + $0xe8] sm:$0xff]
        %v597 = vld [vmem:[%s4 + $0xf0] sm:$0xff]
        %v598 = vld [vmem:[%s4 + $0xf8] sm:$0xff]
        %v599 = vld [vmem:[%s4 + $0x100] sm:$0xff]
        %v600 = vld [vmem:[%s4 + $0x108] sm:$0xff]
        %v601 = vld [vmem:[%s4 + $0x110] sm:$0xff]
        %v602 = vld [vmem:[%s4 + $0x118] sm:$0xff]
        %v603 = vld [vmem:[%s4 + $0x120] sm:$0xff]
        %v604 = vld [vmem:[%s4 + $0x128] sm:$0xff]
        %v605 = vld [vmem:[%s4 + $0x130] sm:$0xff]
        %v606 = vld [vmem:[%s4 + $0x138] sm:$0xff]
        %vm607 = vcmask 523264
        %v609 = vsel %vm607, %v561, 0
        %v612 = vsel %vm607, %v564, 0
        %614 = vmatprep.subr.mxu0 0.0
        %615 = vmatpush1.msra.mxu0 %v567
        %616 = vmatprep.subr.mxu0 0.0
        %617 = vmatpush1.msra.mxu0 %v568
        %618 = vmatprep.subr.mxu0 0.0
        %619 = vmatpush1.msra.mxu0 %v569
        %620 = vmatprep.subr.mxu0 0.0
        %621 = vmatpush1.msra.mxu0 %v570
        %622 = vmatprep.subr.mxu0 0.0
        %623 = vmatpush1.msra.mxu0 %v571
        %624 = vmatprep.subr.mxu0 0.0
        %625 = vmatpush1.msra.mxu0 %v572
        %626 = vmatprep.subr.mxu0 0.0
        %627 = vmatpush1.msra.mxu0 %v573
        %628 = vmatprep.subr.mxu0 0.0
        %629 = vmatpush1.msra.mxu0 %v574
        %630 = vmatprep.subr.mxu0 0.0
        %631 = vmatpush1.msra.mxu0 %v575
        %632 = vmatprep.subr.mxu0 0.0
        %633 = vmatpush1.msra.mxu0 %v576
        %634 = vmatprep.subr.mxu0 0.0
        %635 = vmatpush1.msra.mxu0 %v577
        %636 = vmatprep.subr.mxu0 0.0
        %637 = vmatpush1.msra.mxu0 %v578
        %638 = vmatprep.subr.mxu0 0.0
        %639 = vmatpush1.msra.mxu0 %v579
        %640 = vmatprep.subr.mxu0 0.0
        %641 = vmatpush1.msra.mxu0 %v580
        %642 = vmatprep.subr.mxu0 0.0
        %643 = vmatpush1.msra.mxu0 %v581
        %644 = vmatprep.subr.mxu0 0.0
        %645 = vmatpush1.msra.mxu0 %v582
        %646 = vmatprep.subr.mxu0 0.0
        %647 = vmatpush1.msra.mxu0 %v583
        %648 = vmatprep.subr.mxu0 0.0
        %649 = vmatpush1.msra.mxu0 %v584
        %650 = vmatprep.subr.mxu0 0.0
        %651 = vmatpush1.msra.mxu0 %v585
        %652 = vmatprep.subr.mxu0 0.0
        %653 = vmatpush1.msra.mxu0 %v586
        %654 = vmatprep.subr.mxu0 0.0
        %655 = vmatpush1.msra.mxu0 %v587
        %656 = vmatprep.subr.mxu0 0.0
        %657 = vmatpush1.msra.mxu0 %v588
        %658 = vmatprep.subr.mxu0 0.0
        %659 = vmatpush1.msra.mxu0 %v589
        %660 = vmatprep.subr.mxu0 0.0
        %661 = vmatpush1.msra.mxu0 %v590
        %662 = vmatprep.subr.mxu0 0.0
        %663 = vmatpush1.msra.mxu0 %v591
        %664 = vmatprep.subr.mxu0 0.0
        %665 = vmatpush1.msra.mxu0 %v592
        %666 = vmatprep.subr.mxu0 0.0
        %667 = vmatpush1.msra.mxu0 %v593
        %668 = vmatprep.subr.mxu0 0.0
        %669 = vmatpush1.msra.mxu0 %v594
        %670 = vmatprep.subr.mxu0 0.0
        %671 = vmatpush1.msra.mxu0 %v595
        %672 = vmatprep.subr.mxu0 0.0
        %673 = vmatpush1.msra.mxu0 %v596
        %674 = vmatprep.subr.mxu0 0.0
        %675 = vmatpush1.msra.mxu0 %v597
        %676 = vmatprep.subr.mxu0 0.0
        %677 = vmatpush1.msra.mxu0 %v598
        %678 = vmatprep.mubr.f32.mxu0 %v520
        %679 = vmatmul.mubr.f32.gmra.mrb[0].mxu0 %v518
        %v680 = vpop.f32.mrb[0].mxu0
        %v681 = vadd.f32 0.0, %v680
        %v682 = vpop.f32.mrb[0].mxu0
        %683 = vmatprep.mubr.f32.mxu0 %v524
        %684 = vmatmul.mubr.f32.gmra.mrb[0].mxu0 %v522
        %v685 = vpop.f32.mrb[0].mxu0
        %v686 = vadd.f32 0.0, %v685
        %v687 = vpop.f32.mrb[0].mxu0
        %688 = vdwg.mxu0
        %689 = vmatprep.subr.mxu0 0.0
        %690 = vmatpush1.msra.mxu0 %v599
        %691 = vmatprep.subr.mxu0 0.0
        %692 = vmatpush1.msra.mxu0 %v600
        %693 = vmatprep.subr.mxu0 0.0
        %694 = vmatpush1.msra.mxu0 %v601
        %695 = vmatprep.subr.mxu0 0.0
        %696 = vmatpush1.msra.mxu0 %v602
        %697 = vmatprep.subr.mxu0 0.0
        %698 = vmatpush1.msra.mxu0 %v603
        %699 = vmatprep.subr.mxu0 0.0
        %700 = vmatpush1.msra.mxu0 %v604
        %701 = vmatprep.subr.mxu0 0.0
        %702 = vmatpush1.msra.mxu0 %v605
        %703 = vmatprep.subr.mxu0 0.0
        %704 = vmatpush1.msra.mxu0 %v606
        %705 = vmatprep.subr.mxu0 0.0
        %706 = vmatpush1.msra.mxu0 0.0
        %707 = vmatprep.subr.mxu0 0.0
        %708 = vmatpush1.msra.mxu0 0.0
        %709 = vmatprep.subr.mxu0 0.0
        %710 = vmatpush1.msra.mxu0 0.0
        %711 = vmatprep.subr.mxu0 0.0
        %712 = vmatpush1.msra.mxu0 0.0
        %713 = vmatprep.subr.mxu0 0.0
        %714 = vmatpush1.msra.mxu0 0.0
        %715 = vmatprep.subr.mxu0 0.0
        %716 = vmatpush1.msra.mxu0 0.0
        %717 = vmatprep.subr.mxu0 0.0
        %718 = vmatpush1.msra.mxu0 0.0
        %719 = vmatprep.subr.mxu0 0.0
        %720 = vmatpush1.msra.mxu0 0.0
        %721 = vmatprep.subr.mxu0 0.0
        %722 = vmatpush1.msra.mxu0 0.0
        %723 = vmatprep.subr.mxu0 0.0
        %724 = vmatpush1.msra.mxu0 0.0
        %725 = vmatprep.subr.mxu0 0.0
        %726 = vmatpush1.msra.mxu0 0.0
        %727 = vmatprep.subr.mxu0 0.0
        %728 = vmatpush1.msra.mxu0 0.0
        %729 = vmatprep.subr.mxu0 0.0
        %730 = vmatpush1.msra.mxu0 0.0
        %731 = vmatprep.subr.mxu0 0.0
        %732 = vmatpush1.msra.mxu0 0.0
        %733 = vmatprep.subr.mxu0 0.0
        %734 = vmatpush1.msra.mxu0 0.0
        %735 = vmatprep.subr.mxu0 0.0
        %736 = vmatpush1.msra.mxu0 0.0
        %737 = vmatprep.subr.mxu0 0.0
        %738 = vmatpush1.msra.mxu0 0.0
        %739 = vmatprep.subr.mxu0 0.0
        %740 = vmatpush1.msra.mxu0 0.0
        %741 = vmatprep.subr.mxu0 0.0
        %742 = vmatpush1.msra.mxu0 0.0
        %743 = vmatprep.subr.mxu0 0.0
        %744 = vmatpush1.msra.mxu0 0.0
        %745 = vmatprep.subr.mxu0 0.0
        %746 = vmatpush1.msra.mxu0 0.0
        %747 = vmatprep.subr.mxu0 0.0
        %748 = vmatpush1.msra.mxu0 0.0
        %749 = vmatprep.subr.mxu0 0.0
        %750 = vmatpush1.msra.mxu0 0.0
        %751 = vmatprep.subr.mxu0 0.0
        %752 = vmatpush1.msra.mxu0 0.0
        %753 = vmatprep.mubr.f32.mxu0 0.0
        %754 = vmatmul.mubr.f32.gmra.mrb[0].mxu0 %v609
        %v755 = vpop.f32.mrb[0].mxu0
        %v756 = vadd.f32 %v681, %v755
        %v757 = vpop.f32.mrb[0].mxu0
        %758 = vmatprep.mubr.f32.mxu0 0.0
        %759 = vmatmul.mubr.f32.gmra.mrb[0].mxu0 %v612
        %v760 = vpop.f32.mrb[0].mxu0
        %v761 = vadd.f32 %v686, %v760
        %v762 = vpop.f32.mrb[0].mxu0
        %763 = vdwg.mxu0
        %v764 = vld [vmem:[%s3] sm:$0xff]
        %v765 = vld [vmem:[%s3 + $0x8] sm:$0xff]
        %v766 = vld [vmem:[%s3 + $0x10] sm:$0xff]
        %v767 = vld [vmem:[%s3 + $0x18] sm:$0xff]
        %v768 = vld [vmem:[%s3 + $0x20] sm:$0xff]
        %v769 = vld [vmem:[%s3 + $0x28] sm:$0xff]
        %v770 = vld [vmem:[%s3 + $0x30] sm:$0xff]
        %v771 = vld [vmem:[%s3 + $0x38] sm:$0xff]
        %v772 = vld [vmem:[%s3 + $0x40] sm:$0xff]
        %v773 = vld [vmem:[%s3 + $0x48] sm:$0xff]
        %v774 = vld [vmem:[%s3 + $0x50] sm:$0xff]
        %v775 = vld [vmem:[%s3 + $0x58] sm:$0xff]
        %v776 = vld [vmem:[%s3 + $0x60] sm:$0xff]
        %v777 = vld [vmem:[%s3 + $0x68] sm:$0xff]
        %v778 = vld [vmem:[%s3 + $0x70] sm:$0xff]
        %v779 = vld [vmem:[%s3 + $0x78] sm:$0xff]
        %v780 = vld [vmem:[%s3 + $0x80] sm:$0xff]
        %v781 = vld [vmem:[%s3 + $0x88] sm:$0xff]
        %v782 = vld [vmem:[%s3 + $0x90] sm:$0xff]
        %v783 = vld [vmem:[%s3 + $0x98] sm:$0xff]
        %v784 = vld [vmem:[%s3 + $0xa0] sm:$0xff]
        %v785 = vld [vmem:[%s3 + $0xa8] sm:$0xff]
        %v786 = vld [vmem:[%s3 + $0xb0] sm:$0xff]
        %v787 = vld [vmem:[%s3 + $0xb8] sm:$0xff]
        %v788 = vld [vmem:[%s3 + $0xc0] sm:$0xff]
        %v789 = vld [vmem:[%s3 + $0xc8] sm:$0xff]
        %v790 = vld [vmem:[%s3 + $0xd0] sm:$0xff]
        %v791 = vld [vmem:[%s3 + $0xd8] sm:$0xff]
        %v792 = vld [vmem:[%s3 + $0xe0] sm:$0xff]
        %v793 = vld [vmem:[%s3 + $0xe8] sm:$0xff]
        %v794 = vld [vmem:[%s3 + $0xf0] sm:$0xff]
        %v795 = vld [vmem:[%s3 + $0xf8] sm:$0xff]
        %v796 = vld [vmem:[%s3 + $0x100] sm:$0xff]
        %v797 = vld [vmem:[%s3 + $0x108] sm:$0xff]
        %v798 = vld [vmem:[%s3 + $0x110] sm:$0xff]
        %v799 = vld [vmem:[%s3 + $0x118] sm:$0xff]
        %v800 = vld [vmem:[%s3 + $0x120] sm:$0xff]
        %v801 = vld [vmem:[%s3 + $0x128] sm:$0xff]
        %v802 = vld [vmem:[%s3 + $0x130] sm:$0xff]
        %v803 = vld [vmem:[%s3 + $0x138] sm:$0xff]
        %804 = vmatprep.subr.mxu0 0.0
        %805 = vmatpush1.msra.mxu0 %v764
        %806 = vmatprep.subr.mxu0 0.0
        %807 = vmatpush1.msra.mxu0 %v765
        %808 = vmatprep.subr.mxu0 0.0
        %809 = vmatpush1.msra.mxu0 %v766
        %810 = vmatprep.subr.mxu0 0.0
        %811 = vmatpush1.msra.mxu0 %v767
        %812 = vmatprep.subr.mxu0 0.0
        %813 = vmatpush1.msra.mxu0 %v768
        %814 = vmatprep.subr.mxu0 0.0
        %815 = vmatpush1.msra.mxu0 %v769
        %816 = vmatprep.subr.mxu0 0.0
        %817 = vmatpush1.msra.mxu0 %v770
        %818 = vmatprep.subr.mxu0 0.0
        %819 = vmatpush1.msra.mxu0 %v771
        %820 = vmatprep.subr.mxu0 0.0
        %821 = vmatpush1.msra.mxu0 %v772
        %822 = vmatprep.subr.mxu0 0.0
        %823 = vmatpush1.msra.mxu0 %v773
        %824 = vmatprep.subr.mxu0 0.0
        %825 = vmatpush1.msra.mxu0 %v774
        %826 = vmatprep.subr.mxu0 0.0
        %827 = vmatpush1.msra.mxu0 %v775
        %828 = vmatprep.subr.mxu0 0.0
        %829 = vmatpush1.msra.mxu0 %v776
        %830 = vmatprep.subr.mxu0 0.0
        %831 = vmatpush1.msra.mxu0 %v777
        %832 = vmatprep.subr.mxu0 0.0
        %833 = vmatpush1.msra.mxu0 %v778
        %834 = vmatprep.subr.mxu0 0.0
        %835 = vmatpush1.msra.mxu0 %v779
        %836 = vmatprep.subr.mxu0 0.0
        %837 = vmatpush1.msra.mxu0 %v780
        %838 = vmatprep.subr.mxu0 0.0
        %839 = vmatpush1.msra.mxu0 %v781
        %840 = vmatprep.subr.mxu0 0.0
        %841 = vmatpush1.msra.mxu0 %v782
        %842 = vmatprep.subr.mxu0 0.0
        %843 = vmatpush1.msra.mxu0 %v783
        %844 = vmatprep.subr.mxu0 0.0
        %845 = vmatpush1.msra.mxu0 %v784
        %846 = vmatprep.subr.mxu0 0.0
        %847 = vmatpush1.msra.mxu0 %v785
        %848 = vmatprep.subr.mxu0 0.0
        %849 = vmatpush1.msra.mxu0 %v786
        %850 = vmatprep.subr.mxu0 0.0
        %851 = vmatpush1.msra.mxu0 %v787
        %852 = vmatprep.subr.mxu0 0.0
        %853 = vmatpush1.msra.mxu0 %v788
        %854 = vmatprep.subr.mxu0 0.0
        %855 = vmatpush1.msra.mxu0 %v789
        %856 = vmatprep.subr.mxu0 0.0
        %857 = vmatpush1.msra.mxu0 %v790
        %858 = vmatprep.subr.mxu0 0.0
        %859 = vmatpush1.msra.mxu0 %v791
        %860 = vmatprep.subr.mxu0 0.0
        %861 = vmatpush1.msra.mxu0 %v792
        %862 = vmatprep.subr.mxu0 0.0
        %863 = vmatpush1.msra.mxu0 %v793
        %864 = vmatprep.subr.mxu0 0.0
        %865 = vmatpush1.msra.mxu0 %v794
        %866 = vmatprep.subr.mxu0 0.0
        %867 = vmatpush1.msra.mxu0 %v795
        %868 = vmatprep.mubr.f32.mxu0 %v520
        %869 = vmatmul.mubr.f32.gmra.mrb[0].mxu0 %v518
        %v870 = vpop.f32.mrb[0].mxu0
        %v871 = vadd.f32 0.0, %v870
        %v872 = vpop.f32.mrb[0].mxu0
        %873 = vmatprep.mubr.f32.mxu0 %v524
        %874 = vmatmul.mubr.f32.gmra.mrb[0].mxu0 %v522
        %v875 = vpop.f32.mrb[0].mxu0
        %v876 = vadd.f32 0.0, %v875
        %v877 = vpop.f32.mrb[0].mxu0
        %878 = vdwg.mxu0
        %879 = vmatprep.subr.mxu0 0.0
        %880 = vmatpush1.msra.mxu0 %v796
        %881 = vmatprep.subr.mxu0 0.0
        %882 = vmatpush1.msra.mxu0 %v797
        %883 = vmatprep.subr.mxu0 0.0
        %884 = vmatpush1.msra.mxu0 %v798
        %885 = vmatprep.subr.mxu0 0.0
        %886 = vmatpush1.msra.mxu0 %v799
        %887 = vmatprep.subr.mxu0 0.0
        %888 = vmatpush1.msra.mxu0 %v800
        %889 = vmatprep.subr.mxu0 0.0
        %890 = vmatpush1.msra.mxu0 %v801
        %891 = vmatprep.subr.mxu0 0.0
        %892 = vmatpush1.msra.mxu0 %v802
        %893 = vmatprep.subr.mxu0 0.0
        %894 = vmatpush1.msra.mxu0 %v803
        %895 = vmatprep.subr.mxu0 0.0
        %896 = vmatpush1.msra.mxu0 0.0
        %897 = vmatprep.subr.mxu0 0.0
        %898 = vmatpush1.msra.mxu0 0.0
        %899 = vmatprep.subr.mxu0 0.0
        %900 = vmatpush1.msra.mxu0 0.0
        %901 = vmatprep.subr.mxu0 0.0
        %902 = vmatpush1.msra.mxu0 0.0
        %903 = vmatprep.subr.mxu0 0.0
        %904 = vmatpush1.msra.mxu0 0.0
        %905 = vmatprep.subr.mxu0 0.0
        %906 = vmatpush1.msra.mxu0 0.0
        %907 = vmatprep.subr.mxu0 0.0
        %908 = vmatpush1.msra.mxu0 0.0
        %909 = vmatprep.subr.mxu0 0.0
        %910 = vmatpush1.msra.mxu0 0.0
        %911 = vmatprep.subr.mxu0 0.0
        %912 = vmatpush1.msra.mxu0 0.0
        %913 = vmatprep.subr.mxu0 0.0
        %914 = vmatpush1.msra.mxu0 0.0
        %915 = vmatprep.subr.mxu0 0.0
        %916 = vmatpush1.msra.mxu0 0.0
        %917 = vmatprep.subr.mxu0 0.0
        %918 = vmatpush1.msra.mxu0 0.0
        %919 = vmatprep.subr.mxu0 0.0
        %920 = vmatpush1.msra.mxu0 0.0
        %921 = vmatprep.subr.mxu0 0.0
        %922 = vmatpush1.msra.mxu0 0.0
        %923 = vmatprep.subr.mxu0 0.0
        %924 = vmatpush1.msra.mxu0 0.0
        %925 = vmatprep.subr.mxu0 0.0
        %926 = vmatpush1.msra.mxu0 0.0
        %927 = vmatprep.subr.mxu0 0.0
        %928 = vmatpush1.msra.mxu0 0.0
        %929 = vmatprep.subr.mxu0 0.0
        %930 = vmatpush1.msra.mxu0 0.0
        %931 = vmatprep.subr.mxu0 0.0
        %932 = vmatpush1.msra.mxu0 0.0
        %933 = vmatprep.subr.mxu0 0.0
        %934 = vmatpush1.msra.mxu0 0.0
        %935 = vmatprep.subr.mxu0 0.0
        %936 = vmatpush1.msra.mxu0 0.0
        %937 = vmatprep.subr.mxu0 0.0
        %938 = vmatpush1.msra.mxu0 0.0
        %939 = vmatprep.subr.mxu0 0.0
        %940 = vmatpush1.msra.mxu0 0.0
        %941 = vmatprep.subr.mxu0 0.0
        %942 = vmatpush1.msra.mxu0 0.0
        %943 = vmatprep.mubr.f32.mxu0 0.0
        %944 = vmatmul.mubr.f32.gmra.mrb[0].mxu0 %v609
        %v945 = vpop.f32.mrb[0].mxu0
        %v946 = vadd.f32 %v871, %v945
        %v947 = vpop.f32.mrb[0].mxu0
        %948 = vmatprep.mubr.f32.mxu0 0.0
        %949 = vmatmul.mubr.f32.gmra.mrb[0].mxu0 %v612
        %v950 = vpop.f32.mrb[0].mxu0
        %v951 = vadd.f32 %v876, %v950
        %v952 = vpop.f32.mrb[0].mxu0
        %953 = vdwg.mxu0
        %954 = vxpose.xlu0.b32.start [1/16] %v756, 128
        %955 = vxpose.xlu0.b32.cont [2/16] %v761, 128
        %956 = vxpose.xlu0.b32.cont [3/16] 0.0, 128
        %957 = vxpose.xlu0.b32.cont [4/16] 0.0, 128
        %958 = vxpose.xlu0.b32.cont [5/16] 0.0, 128
        %959 = vxpose.xlu0.b32.cont [6/16] 0.0, 128
        %960 = vxpose.xlu0.b32.cont [7/16] 0.0, 128
        %961 = vxpose.xlu0.b32.cont [8/16] 0.0, 128
        %962 = vxpose.xlu0.b32.cont [9/16] 0.0, 128
        %963 = vxpose.xlu0.b32.cont [10/16] 0.0, 128
        %964 = vxpose.xlu0.b32.cont [11/16] 0.0, 128
        %965 = vxpose.xlu0.b32.cont [12/16] 0.0, 128
        %966 = vxpose.xlu0.b32.cont [13/16] 0.0, 128
        %967 = vxpose.xlu0.b32.cont [14/16] 0.0, 128
        %968 = vxpose.xlu0.b32.cont [15/16] 0.0, 128
        %969 = vxpose.xlu0.b32.end [16/16] 0.0, 128
        %v970 = vpop.trf.xlu0
        %v971 = vpop.trf.xlu0
        %v972 = vpop.trf.xlu0
        %v973 = vpop.trf.xlu0
        %v974 = vpop.trf.xlu0
        %v975 = vpop.trf.xlu0
        %v976 = vpop.trf.xlu0
        %v977 = vpop.trf.xlu0
        %v978 = vpop.trf.xlu0
        %v979 = vpop.trf.xlu0
        %v980 = vpop.trf.xlu0
        %v981 = vpop.trf.xlu0
        %v982 = vpop.trf.xlu0
        %v983 = vpop.trf.xlu0
        %v984 = vpop.trf.xlu0
        %v985 = vpop.trf.xlu0
        %v986 = vlaneseq
        %v987 = vshrl.u32 %v986, 7
        %v988 = vsub.s32 0, %v987
        %v989 = vrot.slane %v970, %v988
        %991 = vbcast.lane.b32.xlu0 %v989, 256
        %v992 = vpop.permute.xlu0 %991
        %s994 = sor.u32 256, 8
        %995 = vbcast.lane.b32.xlu0 %v989, %s994
        %v996 = vpop.permute.xlu0 %995
        %v997 = vlaneseq
        %v998 = vshrl.u32 %v997, 7
        %v999 = vsub.s32 1, %v998
        %v1000 = vrot.slane %v970, %v999
        %1002 = vbcast.lane.b32.xlu0 %v1000, 256
        %v1003 = vpop.permute.xlu0 %1002
        %s1005 = sor.u32 256, 8
        %1006 = vbcast.lane.b32.xlu0 %v1000, %s1005
        %v1007 = vpop.permute.xlu0 %1006
        %v1008 = vlaneseq
        %v1009 = vshrl.u32 %v1008, 7
        %v1010 = vsub.s32 2, %v1009
        %v1011 = vrot.slane %v970, %v1010
        %1013 = vbcast.lane.b32.xlu0 %v1011, 256
        %v1014 = vpop.permute.xlu0 %1013
        %s1016 = sor.u32 256, 8
        %1017 = vbcast.lane.b32.xlu0 %v1011, %s1016
        %v1018 = vpop.permute.xlu0 %1017
        %v1019 = vlaneseq
        %v1020 = vshrl.u32 %v1019, 7
        %v1021 = vsub.s32 3, %v1020
        %v1022 = vrot.slane %v970, %v1021
        %1024 = vbcast.lane.b32.xlu0 %v1022, 256
        %v1025 = vpop.permute.xlu0 %1024
        %s1027 = sor.u32 256, 8
        %1028 = vbcast.lane.b32.xlu0 %v1022, %s1027
        %v1029 = vpop.permute.xlu0 %1028
        %v1030 = vlaneseq
        %v1031 = vshrl.u32 %v1030, 7
        %v1032 = vsub.s32 4, %v1031
        %v1033 = vrot.slane %v970, %v1032
        %1035 = vbcast.lane.b32.xlu0 %v1033, 256
        %v1036 = vpop.permute.xlu0 %1035
        %s1038 = sor.u32 256, 8
        %1039 = vbcast.lane.b32.xlu0 %v1033, %s1038
        %v1040 = vpop.permute.xlu0 %1039
        %v1041 = vlaneseq
        %v1042 = vshrl.u32 %v1041, 7
        %v1043 = vsub.s32 5, %v1042
        %v1044 = vrot.slane %v970, %v1043
        %1046 = vbcast.lane.b32.xlu0 %v1044, 256
        %v1047 = vpop.permute.xlu0 %1046
        %s1049 = sor.u32 256, 8
        %1050 = vbcast.lane.b32.xlu0 %v1044, %s1049
        %v1051 = vpop.permute.xlu0 %1050
        %v1052 = vlaneseq
        %v1053 = vshrl.u32 %v1052, 7
        %v1054 = vsub.s32 6, %v1053
        %v1055 = vrot.slane %v970, %v1054
        %1057 = vbcast.lane.b32.xlu0 %v1055, 256
        %v1058 = vpop.permute.xlu0 %1057
        %s1060 = sor.u32 256, 8
        %1061 = vbcast.lane.b32.xlu0 %v1055, %s1060
        %v1062 = vpop.permute.xlu0 %1061
        %v1063 = vlaneseq
        %v1064 = vshrl.u32 %v1063, 7
        %v1065 = vsub.s32 7, %v1064
        %v1066 = vrot.slane %v970, %v1065
        %1068 = vbcast.lane.b32.xlu0 %v1066, 256
        %v1069 = vpop.permute.xlu0 %1068
        %s1071 = sor.u32 256, 8
        %1072 = vbcast.lane.b32.xlu0 %v1066, %s1071
        %v1073 = vpop.permute.xlu0 %1072
        %v1074 = vlaneseq
        %v1075 = vshrl.u32 %v1074, 7
        %v1076 = vsub.s32 0, %v1075
        %v1077 = vrot.slane %v971, %v1076
        %1079 = vbcast.lane.b32.xlu0 %v1077, 256
        %v1080 = vpop.permute.xlu0 %1079
        %s1082 = sor.u32 256, 8
        %1083 = vbcast.lane.b32.xlu0 %v1077, %s1082
        %v1084 = vpop.permute.xlu0 %1083
        %v1085 = vlaneseq
        %v1086 = vshrl.u32 %v1085, 7
        %v1087 = vsub.s32 1, %v1086
        %v1088 = vrot.slane %v971, %v1087
        %1090 = vbcast.lane.b32.xlu0 %v1088, 256
        %v1091 = vpop.permute.xlu0 %1090
        %s1093 = sor.u32 256, 8
        %1094 = vbcast.lane.b32.xlu0 %v1088, %s1093
        %v1095 = vpop.permute.xlu0 %1094
        %1096 = vxpose.xlu0.b32.start [1/16] %v946, 128
        %1097 = vxpose.xlu0.b32.cont [2/16] %v951, 128
        %1098 = vxpose.xlu0.b32.cont [3/16] 0.0, 128
        %1099 = vxpose.xlu0.b32.cont [4/16] 0.0, 128
        %1100 = vxpose.xlu0.b32.cont [5/16] 0.0, 128
        %1101 = vxpose.xlu0.b32.cont [6/16] 0.0, 128
        %1102 = vxpose.xlu0.b32.cont [7/16] 0.0, 128
        %1103 = vxpose.xlu0.b32.cont [8/16] 0.0, 128
        %1104 = vxpose.xlu0.b32.cont [9/16] 0.0, 128
        %1105 = vxpose.xlu0.b32.cont [10/16] 0.0, 128
        %1106 = vxpose.xlu0.b32.cont [11/16] 0.0, 128
        %1107 = vxpose.xlu0.b32.cont [12/16] 0.0, 128
        %1108 = vxpose.xlu0.b32.cont [13/16] 0.0, 128
        %1109 = vxpose.xlu0.b32.cont [14/16] 0.0, 128
        %1110 = vxpose.xlu0.b32.cont [15/16] 0.0, 128
        %1111 = vxpose.xlu0.b32.end [16/16] 0.0, 128
        %v1112 = vpop.trf.xlu0
        %v1113 = vpop.trf.xlu0
        %v1114 = vpop.trf.xlu0
        %v1115 = vpop.trf.xlu0
        %v1116 = vpop.trf.xlu0
        %v1117 = vpop.trf.xlu0
        %v1118 = vpop.trf.xlu0
        %v1119 = vpop.trf.xlu0
        %v1120 = vpop.trf.xlu0
        %v1121 = vpop.trf.xlu0
        %v1122 = vpop.trf.xlu0
        %v1123 = vpop.trf.xlu0
        %v1124 = vpop.trf.xlu0
        %v1125 = vpop.trf.xlu0
        %v1126 = vpop.trf.xlu0
        %v1127 = vpop.trf.xlu0
        %v1130 = vcombine.high %v1112, %v1112
        %v1132 = vunpack.c.l.s4 1966171168
        %v1133 = vunpack.c.0.s8 %v1132
        %v1134 = vlaneseq
        %v1135 = vshrl.u32 %v1134, 7
        %v1136 = vsub.s32 %v1133, %v1135
        %v1137 = vrot.slane %v1112, %v1136
        %v1139 = vunpack.c.l.s4 1966171168
        %v1140 = vunpack.c.0.s8 %v1139
        %v1141 = vlaneseq
        %v1142 = vshrl.u32 %v1141, 7
        %v1143 = vsub.s32 %v1140, %v1142
        %v1144 = vrot.slane %v1130, %v1143
        %v1145 = vcombine.high %v1137, %v1137
        %v1146 = vcombine.high %v1144, %v1144
        %v1148 = vunpack.c.l.s4 1966171168
        %v1149 = vunpack.c.0.s8 %v1148
        %v1150 = vlaneseq
        %v1151 = vshrl.u32 %v1150, 7
        %v1152 = vsub.s32 %v1149, %v1151
        %v1153 = vrot.slane %v1137, %v1152
        %v1155 = vunpack.c.l.s4 1966171168
        %v1156 = vunpack.c.0.s8 %v1155
        %v1157 = vlaneseq
        %v1158 = vshrl.u32 %v1157, 7
        %v1159 = vsub.s32 %v1156, %v1158
        %v1160 = vrot.slane %v1144, %v1159
        %v1162 = vunpack.c.l.s4 1966171168
        %v1163 = vunpack.c.0.s8 %v1162
        %v1164 = vlaneseq
        %v1165 = vshrl.u32 %v1164, 7
        %v1166 = vsub.s32 %v1163, %v1165
        %v1167 = vrot.slane %v1145, %v1166
        %v1169 = vunpack.c.l.s4 1966171168
        %v1170 = vunpack.c.0.s8 %v1169
        %v1171 = vlaneseq
        %v1172 = vshrl.u32 %v1171, 7
        %v1173 = vsub.s32 %v1170, %v1172
        %v1174 = vrot.slane %v1146, %v1173
        %v1175 = vcombine.high %v1153, %v1153
        %v1176 = vcombine.high %v1160, %v1160
        %v1177 = vcombine.high %v1167, %v1167
        %v1178 = vcombine.high %v1174, %v1174
        %v1180 = vunpack.c.l.s4 1966171168
        %v1181 = vunpack.c.0.s8 %v1180
        %v1182 = vlaneseq
        %v1183 = vshrl.u32 %v1182, 7
        %v1184 = vsub.s32 %v1181, %v1183
        %v1185 = vrot.slane %v1113, %v1184
        %v1186 = vcombine.high %v1185, %v1185
        %v1188 = vunpack.c.l.s4 1966171168
        %v1189 = vunpack.c.0.s8 %v1188
        %v1190 = vlaneseq
        %v1191 = vshrl.u32 %v1190, 7
        %v1192 = vsub.s32 %v1189, %v1191
        %v1193 = vrot.slane %v1185, %v1192
        %v1195 = vunpack.c.l.s4 1966171168
        %v1196 = vunpack.c.0.s8 %v1195
        %v1197 = vlaneseq
        %v1198 = vshrl.u32 %v1197, 7
        %v1199 = vsub.s32 %v1196, %v1198
        %v1200 = vrot.slane %v1186, %v1199
        %v1201 = vlaneseq
        %v1202 = vshrl.u32 %v1201, 7
        %v1203 = vsub.s32 0, %v1202
        %v1204 = vrot.slane %v1153, %v1203
        %v1205 = vlaneseq
        %v1206 = vshrl.u32 %v1205, 7
        %v1207 = vsub.s32 0, %v1206
        %v1208 = vrot.slane %v1167, %v1207
        %v1209 = vlaneseq
        %v1210 = vshrl.u32 %v1209, 7
        %v1211 = vsub.s32 0, %v1210
        %v1212 = vrot.slane %v1175, %v1211
        %v1213 = vlaneseq
        %v1214 = vshrl.u32 %v1213, 7
        %v1215 = vsub.s32 0, %v1214
        %v1216 = vrot.slane %v1177, %v1215
        %v1217 = vlaneseq
        %v1218 = vshrl.u32 %v1217, 7
        %v1219 = vsub.s32 0, %v1218
        %v1220 = vrot.slane %v1160, %v1219
        %v1221 = vlaneseq
        %v1222 = vshrl.u32 %v1221, 7
        %v1223 = vsub.s32 0, %v1222
        %v1224 = vrot.slane %v1174, %v1223
        %v1225 = vlaneseq
        %v1226 = vshrl.u32 %v1225, 7
        %v1227 = vsub.s32 0, %v1226
        %v1228 = vrot.slane %v1176, %v1227
        %v1229 = vlaneseq
        %v1230 = vshrl.u32 %v1229, 7
        %v1231 = vsub.s32 0, %v1230
        %v1232 = vrot.slane %v1178, %v1231
        %v1233 = vlaneseq
        %v1234 = vshrl.u32 %v1233, 7
        %v1235 = vsub.s32 0, %v1234
        %v1236 = vrot.slane %v1193, %v1235
        %v1237 = vlaneseq
        %v1238 = vshrl.u32 %v1237, 7
        %v1239 = vsub.s32 0, %v1238
        %v1240 = vrot.slane %v1200, %v1239
        %v1251 = vadd.f32 %v992, %v1204
        %v1252 = vadd.f32 %v996, %v1204
        %v1253 = vadd.f32 %v1003, %v1208
        %v1254 = vadd.f32 %v1007, %v1208
        %v1255 = vadd.f32 %v1014, %v1212
        %v1256 = vadd.f32 %v1018, %v1212
        %v1257 = vadd.f32 %v1025, %v1216
        %v1258 = vadd.f32 %v1029, %v1216
        %v1259 = vadd.f32 %v1036, %v1220
        %v1260 = vadd.f32 %v1040, %v1220
        %v1261 = vadd.f32 %v1047, %v1224
        %v1262 = vadd.f32 %v1051, %v1224
        %v1263 = vadd.f32 %v1058, %v1228
        %v1264 = vadd.f32 %v1062, %v1228
        %v1265 = vadd.f32 %v1069, %v1232
        %v1266 = vadd.f32 %v1073, %v1232
        %v1267 = vadd.f32 %v1080, %v1236
        %v1268 = vadd.f32 %v1084, %v1236
        %v1269 = vadd.f32 %v1091, %v1240
        %v1270 = vadd.f32 %v1095, %v1240
        %vm1271 = vcmp.gt.f32.partialorder %v1251, 0.0
        %vm1272 = vcmp.gt.f32.partialorder %v1252, 0.0
        %vm1273 = vcmp.gt.f32.partialorder %v1253, 0.0
        %vm1274 = vcmp.gt.f32.partialorder %v1254, 0.0
        %vm1275 = vcmp.gt.f32.partialorder %v1255, 0.0
        %vm1276 = vcmp.gt.f32.partialorder %v1256, 0.0
        %vm1277 = vcmp.gt.f32.partialorder %v1257, 0.0
        %vm1278 = vcmp.gt.f32.partialorder %v1258, 0.0
        %vm1279 = vcmp.gt.f32.partialorder %v1259, 0.0
        %vm1280 = vcmp.gt.f32.partialorder %v1260, 0.0
        %vm1281 = vcmp.gt.f32.partialorder %v1261, 0.0
        %vm1282 = vcmp.gt.f32.partialorder %v1262, 0.0
        %vm1283 = vcmp.gt.f32.partialorder %v1263, 0.0
        %vm1284 = vcmp.gt.f32.partialorder %v1264, 0.0
        %vm1285 = vcmp.gt.f32.partialorder %v1265, 0.0
        %vm1286 = vcmp.gt.f32.partialorder %v1266, 0.0
        %vm1287 = vcmp.gt.f32.partialorder %v1267, 0.0
        %vm1288 = vcmp.gt.f32.partialorder %v1268, 0.0
        %vm1289 = vcmp.gt.f32.partialorder %v1269, 0.0
        %vm1290 = vcmp.gt.f32.partialorder %v1270, 0.0
        %v1291 = vmul.f32 %v1251, 0.2
        %v1292 = vmul.f32 %v1252, 0.2
        %v1293 = vmul.f32 %v1253, 0.2
        %v1294 = vmul.f32 %v1254, 0.2
        %v1295 = vmul.f32 %v1255, 0.2
        %v1296 = vmul.f32 %v1256, 0.2
        %v1297 = vmul.f32 %v1257, 0.2
        %v1298 = vmul.f32 %v1258, 0.2
        %v1299 = vmul.f32 %v1259, 0.2
        %v1300 = vmul.f32 %v1260, 0.2
        %v1301 = vmul.f32 %v1261, 0.2
        %v1302 = vmul.f32 %v1262, 0.2
        %v1303 = vmul.f32 %v1263, 0.2
        %v1304 = vmul.f32 %v1264, 0.2
        %v1305 = vmul.f32 %v1265, 0.2
        %v1306 = vmul.f32 %v1266, 0.2
        %v1307 = vmul.f32 %v1267, 0.2
        %v1308 = vmul.f32 %v1268, 0.2
        %v1309 = vmul.f32 %v1269, 0.2
        %v1310 = vmul.f32 %v1270, 0.2
        %v1311 = vsel %vm1271, %v1251, %v1291
        %v1312 = vsel %vm1272, %v1252, %v1292
        %v1313 = vsel %vm1273, %v1253, %v1293
        %v1314 = vsel %vm1274, %v1254, %v1294
        %v1315 = vsel %vm1275, %v1255, %v1295
        %v1316 = vsel %vm1276, %v1256, %v1296
        %v1317 = vsel %vm1277, %v1257, %v1297
        %v1318 = vsel %vm1278, %v1258, %v1298
        %v1319 = vsel %vm1279, %v1259, %v1299
        %v1320 = vsel %vm1280, %v1260, %v1300
        %v1321 = vsel %vm1281, %v1261, %v1301
        %v1322 = vsel %vm1282, %v1262, %v1302
        %v1323 = vsel %vm1283, %v1263, %v1303
        %v1324 = vsel %vm1284, %v1264, %v1304
        %v1325 = vsel %vm1285, %v1265, %v1305
        %v1326 = vsel %vm1286, %v1266, %v1306
        %v1327 = vsel %vm1287, %v1267, %v1307
        %v1328 = vsel %vm1288, %v1268, %v1308
        %v1329 = vsel %vm1289, %v1269, %v1309
        %v1330 = vsel %vm1290, %v1270, %v1310
        %v1331 = vsel %vm436, 1, 0
        %v1332 = vsel %vm437, 1, 0
        %vm1333 = vcmp.eq.s32.totalorder %v1331, 1
        %vm1334 = vcmp.eq.s32.totalorder %v1332, 1
        %v1335 = vsel %vm1333, %v1311, -1e+30
        %v1336 = vsel %vm1334, %v1312, -1e+30
        %v1337 = vsel %vm1333, %v1313, -1e+30
        %v1338 = vsel %vm1334, %v1314, -1e+30
        %v1339 = vsel %vm1333, %v1315, -1e+30
        %v1340 = vsel %vm1334, %v1316, -1e+30
        %v1341 = vsel %vm1333, %v1317, -1e+30
        %v1342 = vsel %vm1334, %v1318, -1e+30
        %v1343 = vsel %vm1333, %v1319, -1e+30
        %v1344 = vsel %vm1334, %v1320, -1e+30
        %v1345 = vsel %vm1333, %v1321, -1e+30
        %v1346 = vsel %vm1334, %v1322, -1e+30
        %v1347 = vsel %vm1333, %v1323, -1e+30
        %v1348 = vsel %vm1334, %v1324, -1e+30
        %v1349 = vsel %vm1333, %v1325, -1e+30
        %v1350 = vsel %vm1334, %v1326, -1e+30
        %v1351 = vsel %vm1333, %v1327, -1e+30
        %v1352 = vsel %vm1334, %v1328, -1e+30
        %v1353 = vsel %vm1333, %v1329, -1e+30
        %v1354 = vsel %vm1334, %v1330, -1e+30
        %vm1355 = vcmask 130048
        %v1356 = vsel %vm1355, %v1335, -inf
        %1357 = vmax.xlane.f32.xlu0 %v1356
        %v1358 = vpop.xlane.xlu0 %1357
        %v1359 = vsel %vm1355, %v1336, -inf
        %1360 = vmax.xlane.f32.xlu0 %v1359
        %v1361 = vpop.xlane.xlu0 %1360
        %v1362 = vsel %vm1355, %v1337, -inf
        %1363 = vmax.xlane.f32.xlu0 %v1362
        %v1364 = vpop.xlane.xlu0 %1363
        %v1365 = vsel %vm1355, %v1338, -inf
        %1366 = vmax.xlane.f32.xlu0 %v1365
        %v1367 = vpop.xlane.xlu0 %1366
        %v1368 = vsel %vm1355, %v1339, -inf
        %1369 = vmax.xlane.f32.xlu0 %v1368
        %v1370 = vpop.xlane.xlu0 %1369
        %v1371 = vsel %vm1355, %v1340, -inf
        %1372 = vmax.xlane.f32.xlu0 %v1371
        %v1373 = vpop.xlane.xlu0 %1372
        %v1374 = vsel %vm1355, %v1341, -inf
        %1375 = vmax.xlane.f32.xlu0 %v1374
        %v1376 = vpop.xlane.xlu0 %1375
        %v1377 = vsel %vm1355, %v1342, -inf
        %1378 = vmax.xlane.f32.xlu0 %v1377
        %v1379 = vpop.xlane.xlu0 %1378
        %v1380 = vsel %vm1355, %v1343, -inf
        %1381 = vmax.xlane.f32.xlu0 %v1380
        %v1382 = vpop.xlane.xlu0 %1381
        %v1383 = vsel %vm1355, %v1344, -inf
        %1384 = vmax.xlane.f32.xlu0 %v1383
        %v1385 = vpop.xlane.xlu0 %1384
        %v1386 = vsel %vm1355, %v1345, -inf
        %1387 = vmax.xlane.f32.xlu0 %v1386
        %v1388 = vpop.xlane.xlu0 %1387
        %v1389 = vsel %vm1355, %v1346, -inf
        %1390 = vmax.xlane.f32.xlu0 %v1389
        %v1391 = vpop.xlane.xlu0 %1390
        %v1392 = vsel %vm1355, %v1347, -inf
        %1393 = vmax.xlane.f32.xlu0 %v1392
        %v1394 = vpop.xlane.xlu0 %1393
        %v1395 = vsel %vm1355, %v1348, -inf
        %1396 = vmax.xlane.f32.xlu0 %v1395
        %v1397 = vpop.xlane.xlu0 %1396
        %v1398 = vsel %vm1355, %v1349, -inf
        %1399 = vmax.xlane.f32.xlu0 %v1398
        %v1400 = vpop.xlane.xlu0 %1399
        %v1401 = vsel %vm1355, %v1350, -inf
        %1402 = vmax.xlane.f32.xlu0 %v1401
        %v1403 = vpop.xlane.xlu0 %1402
        %v1404 = vsel %vm1355, %v1351, -inf
        %1405 = vmax.xlane.f32.xlu0 %v1404
        %v1406 = vpop.xlane.xlu0 %1405
        %v1407 = vsel %vm1355, %v1352, -inf
        %1408 = vmax.xlane.f32.xlu0 %v1407
        %v1409 = vpop.xlane.xlu0 %1408
        %v1410 = vsel %vm1355, %v1353, -inf
        %1411 = vmax.xlane.f32.xlu0 %v1410
        %v1412 = vpop.xlane.xlu0 %1411
        %v1413 = vsel %vm1355, %v1354, -inf
        %1414 = vmax.xlane.f32.xlu0 %v1413
        %v1415 = vpop.xlane.xlu0 %1414
        %v1416 = vsub.f32 %v1335, %v1358
        %v1417 = vsub.f32 %v1336, %v1361
        %v1418 = vsub.f32 %v1337, %v1364
        %v1419 = vsub.f32 %v1338, %v1367
        %v1420 = vsub.f32 %v1339, %v1370
        %v1421 = vsub.f32 %v1340, %v1373
        %v1422 = vsub.f32 %v1341, %v1376
        %v1423 = vsub.f32 %v1342, %v1379
        %v1424 = vsub.f32 %v1343, %v1382
        %v1425 = vsub.f32 %v1344, %v1385
        %v1426 = vsub.f32 %v1345, %v1388
        %v1427 = vsub.f32 %v1346, %v1391
        %v1428 = vsub.f32 %v1347, %v1394
        %v1429 = vsub.f32 %v1348, %v1397
        %v1430 = vsub.f32 %v1349, %v1400
        %v1431 = vsub.f32 %v1350, %v1403
        %v1432 = vsub.f32 %v1351, %v1406
        %v1433 = vsub.f32 %v1352, %v1409
        %v1434 = vsub.f32 %v1353, %v1412
        %v1435 = vsub.f32 %v1354, %v1415
        %v1436 = vmul.f32 %v1416, 1.442695
        %v1437 = vpow.pop %v1436
        %v1438 = vmul.f32 %v1417, 1.442695
        %v1439 = vpow.pop %v1438
        %v1440 = vmul.f32 %v1418, 1.442695
        %v1441 = vpow.pop %v1440
        %v1442 = vmul.f32 %v1419, 1.442695
        %v1443 = vpow.pop %v1442
        %v1444 = vmul.f32 %v1420, 1.442695
        %v1445 = vpow.pop %v1444
        %v1446 = vmul.f32 %v1421, 1.442695
        %v1447 = vpow.pop %v1446
        %v1448 = vmul.f32 %v1422, 1.442695
        %v1449 = vpow.pop %v1448
        %v1450 = vmul.f32 %v1423, 1.442695
        %v1451 = vpow.pop %v1450
        %v1452 = vmul.f32 %v1424, 1.442695
        %v1453 = vpow.pop %v1452
        %v1454 = vmul.f32 %v1425, 1.442695
        %v1455 = vpow.pop %v1454
        %v1456 = vmul.f32 %v1426, 1.442695
        %v1457 = vpow.pop %v1456
        %v1458 = vmul.f32 %v1427, 1.442695
        %v1459 = vpow.pop %v1458
        %v1460 = vmul.f32 %v1428, 1.442695
        %v1461 = vpow.pop %v1460
        %v1462 = vmul.f32 %v1429, 1.442695
        %v1463 = vpow.pop %v1462
        %v1464 = vmul.f32 %v1430, 1.442695
        %v1465 = vpow.pop %v1464
        %v1466 = vmul.f32 %v1431, 1.442695
        %v1467 = vpow.pop %v1466
        %v1468 = vmul.f32 %v1432, 1.442695
        %v1469 = vpow.pop %v1468
        %v1470 = vmul.f32 %v1433, 1.442695
        %v1471 = vpow.pop %v1470
        %v1472 = vmul.f32 %v1434, 1.442695
        %v1473 = vpow.pop %v1472
        %v1474 = vmul.f32 %v1435, 1.442695
        %v1475 = vpow.pop %v1474
        %v1476 = vsel %vm1355, %v1437, 0.0
        %1477 = vadd.xlane.f32.xlu0 %v1476
        %v1478 = vpop.xlane.xlu0 %1477
        %v1479 = vsel %vm1355, %v1439, 0.0
        %1480 = vadd.xlane.f32.xlu0 %v1479
        %v1481 = vpop.xlane.xlu0 %1480
        %v1482 = vsel %vm1355, %v1441, 0.0
        %1483 = vadd.xlane.f32.xlu0 %v1482
        %v1484 = vpop.xlane.xlu0 %1483
        %v1485 = vsel %vm1355, %v1443, 0.0
        %1486 = vadd.xlane.f32.xlu0 %v1485
        %v1487 = vpop.xlane.xlu0 %1486
        %v1488 = vsel %vm1355, %v1445, 0.0
        %1489 = vadd.xlane.f32.xlu0 %v1488
        %v1490 = vpop.xlane.xlu0 %1489
        %v1491 = vsel %vm1355, %v1447, 0.0
        %1492 = vadd.xlane.f32.xlu0 %v1491
        %v1493 = vpop.xlane.xlu0 %1492
        %v1494 = vsel %vm1355, %v1449, 0.0
        %1495 = vadd.xlane.f32.xlu0 %v1494
        %v1496 = vpop.xlane.xlu0 %1495
        %v1497 = vsel %vm1355, %v1451, 0.0
        %1498 = vadd.xlane.f32.xlu0 %v1497
        %v1499 = vpop.xlane.xlu0 %1498
        %v1500 = vsel %vm1355, %v1453, 0.0
        %1501 = vadd.xlane.f32.xlu0 %v1500
        %v1502 = vpop.xlane.xlu0 %1501
        %v1503 = vsel %vm1355, %v1455, 0.0
        %1504 = vadd.xlane.f32.xlu0 %v1503
        %v1505 = vpop.xlane.xlu0 %1504
        %v1506 = vsel %vm1355, %v1457, 0.0
        %1507 = vadd.xlane.f32.xlu0 %v1506
        %v1508 = vpop.xlane.xlu0 %1507
        %v1509 = vsel %vm1355, %v1459, 0.0
        %1510 = vadd.xlane.f32.xlu0 %v1509
        %v1511 = vpop.xlane.xlu0 %1510
        %v1512 = vsel %vm1355, %v1461, 0.0
        %1513 = vadd.xlane.f32.xlu0 %v1512
        %v1514 = vpop.xlane.xlu0 %1513
        %v1515 = vsel %vm1355, %v1463, 0.0
        %1516 = vadd.xlane.f32.xlu0 %v1515
        %v1517 = vpop.xlane.xlu0 %1516
        %v1518 = vsel %vm1355, %v1465, 0.0
        %1519 = vadd.xlane.f32.xlu0 %v1518
        %v1520 = vpop.xlane.xlu0 %1519
        %v1521 = vsel %vm1355, %v1467, 0.0
        %1522 = vadd.xlane.f32.xlu0 %v1521
        %v1523 = vpop.xlane.xlu0 %1522
        %v1524 = vsel %vm1355, %v1469, 0.0
        %1525 = vadd.xlane.f32.xlu0 %v1524
        %v1526 = vpop.xlane.xlu0 %1525
        %v1527 = vsel %vm1355, %v1471, 0.0
        %1528 = vadd.xlane.f32.xlu0 %v1527
        %v1529 = vpop.xlane.xlu0 %1528
        %v1530 = vsel %vm1355, %v1473, 0.0
        %1531 = vadd.xlane.f32.xlu0 %v1530
        %v1532 = vpop.xlane.xlu0 %1531
        %v1533 = vsel %vm1355, %v1475, 0.0
        %1534 = vadd.xlane.f32.xlu0 %v1533
        %v1535 = vpop.xlane.xlu0 %1534
        %v1536 = vrcp.pop %v1478
        %v1537 = vmul.f32 %v1437, %v1536
        %v1538 = vrcp.pop %v1481
        %v1539 = vmul.f32 %v1439, %v1538
        %v1540 = vrcp.pop %v1484
        %v1541 = vmul.f32 %v1441, %v1540
        %v1542 = vrcp.pop %v1487
        %v1543 = vmul.f32 %v1443, %v1542
        %v1544 = vrcp.pop %v1490
        %v1545 = vmul.f32 %v1445, %v1544
        %v1546 = vrcp.pop %v1493
        %v1547 = vmul.f32 %v1447, %v1546
        %v1548 = vrcp.pop %v1496
        %v1549 = vmul.f32 %v1449, %v1548
        %v1550 = vrcp.pop %v1499
        %v1551 = vmul.f32 %v1451, %v1550
        %v1552 = vrcp.pop %v1502
        %v1553 = vmul.f32 %v1453, %v1552
        %v1554 = vrcp.pop %v1505
        %v1555 = vmul.f32 %v1455, %v1554
        %v1556 = vrcp.pop %v1508
        %v1557 = vmul.f32 %v1457, %v1556
        %v1558 = vrcp.pop %v1511
        %v1559 = vmul.f32 %v1459, %v1558
        %v1560 = vrcp.pop %v1514
        %v1561 = vmul.f32 %v1461, %v1560
        %v1562 = vrcp.pop %v1517
        %v1563 = vmul.f32 %v1463, %v1562
        %v1564 = vrcp.pop %v1520
        %v1565 = vmul.f32 %v1465, %v1564
        %v1566 = vrcp.pop %v1523
        %v1567 = vmul.f32 %v1467, %v1566
        %v1568 = vrcp.pop %v1526
        %v1569 = vmul.f32 %v1469, %v1568
        %v1570 = vrcp.pop %v1529
        %v1571 = vmul.f32 %v1471, %v1570
        %v1572 = vrcp.pop %v1532
        %v1573 = vmul.f32 %v1473, %v1572
        %v1574 = vrcp.pop %v1535
        %v1575 = vmul.f32 %v1475, %v1574
        %v1577 = vsel %vm1355, %v1537, 0
        %v1580 = vsel %vm1355, %v1539, 0
        %1582 = vmatprep.subr.mxu0 0.0
        %1583 = vmatpush1.msra.mxu0 %v518
        %1584 = vmatprep.subr.mxu0 0.0
        %1585 = vmatpush1.msra.mxu0 %v522
        %1586 = vmatprep.subr.mxu0 0.0
        %1587 = vmatpush1.msra.mxu0 0.0
        %1588 = vmatprep.subr.mxu0 0.0
        %1589 = vmatpush1.msra.mxu0 0.0
        %1590 = vmatprep.subr.mxu0 0.0
        %1591 = vmatpush1.msra.mxu0 0.0
        %1592 = vmatprep.subr.mxu0 0.0
        %1593 = vmatpush1.msra.mxu0 0.0
        %1594 = vmatprep.subr.mxu0 0.0
        %1595 = vmatpush1.msra.mxu0 0.0
        %1596 = vmatprep.subr.mxu0 0.0
        %1597 = vmatpush1.msra.mxu0 0.0
        %1598 = vmatprep.subr.mxu0 0.0
        %1599 = vmatpush1.msra.mxu0 0.0
        %1600 = vmatprep.subr.mxu0 0.0
        %1601 = vmatpush1.msra.mxu0 0.0
        %1602 = vmatprep.subr.mxu0 0.0
        %1603 = vmatpush1.msra.mxu0 0.0
        %1604 = vmatprep.subr.mxu0 0.0
        %1605 = vmatpush1.msra.mxu0 0.0
        %1606 = vmatprep.subr.mxu0 0.0
        %1607 = vmatpush1.msra.mxu0 0.0
        %1608 = vmatprep.subr.mxu0 0.0
        %1609 = vmatpush1.msra.mxu0 0.0
        %1610 = vmatprep.subr.mxu0 0.0
        %1611 = vmatpush1.msra.mxu0 0.0
        %1612 = vmatprep.subr.mxu0 0.0
        %1613 = vmatpush1.msra.mxu0 0.0
        %1614 = vmatprep.subr.mxu0 0.0
        %1615 = vmatpush1.msra.mxu0 0.0
        %1616 = vmatprep.subr.mxu0 0.0
        %1617 = vmatpush1.msra.mxu0 0.0
        %1618 = vmatprep.subr.mxu0 0.0
        %1619 = vmatpush1.msra.mxu0 0.0
        %1620 = vmatprep.subr.mxu0 0.0
        %1621 = vmatpush1.msra.mxu0 0.0
        %1622 = vmatprep.subr.mxu0 0.0
        %1623 = vmatpush1.msra.mxu0 0.0
        %1624 = vmatprep.subr.mxu0 0.0
        %1625 = vmatpush1.msra.mxu0 0.0
        %1626 = vmatprep.subr.mxu0 0.0
        %1627 = vmatpush1.msra.mxu0 0.0
        %1628 = vmatprep.subr.mxu0 0.0
        %1629 = vmatpush1.msra.mxu0 0.0
        %1630 = vmatprep.subr.mxu0 0.0
        %1631 = vmatpush1.msra.mxu0 0.0
        %1632 = vmatprep.subr.mxu0 0.0
        %1633 = vmatpush1.msra.mxu0 0.0
        %1634 = vmatprep.subr.mxu0 0.0
        %1635 = vmatpush1.msra.mxu0 0.0
        %1636 = vmatprep.subr.mxu0 0.0
        %1637 = vmatpush1.msra.mxu0 0.0
        %1638 = vmatprep.subr.mxu0 0.0
        %1639 = vmatpush1.msra.mxu0 0.0
        %1640 = vmatprep.subr.mxu0 0.0
        %1641 = vmatpush1.msra.mxu0 0.0
        %1642 = vmatprep.subr.mxu0 0.0
        %1643 = vmatpush1.msra.mxu0 0.0
        %1644 = vmatprep.subr.mxu0 0.0
        %1645 = vmatpush1.msra.mxu0 0.0
        %1646 = vmatprep.mubr.f32.mxu0 0.0
        %1647 = vmatmul.mubr.f32.gmra.mrb[0].mxu0 %v1577
        %v1648 = vpop.f32.mrb[0].mxu0
        %v1649 = vadd.f32 0.0, %v1648
        %v1650 = vpop.f32.mrb[0].mxu0
        %1651 = vmatprep.mubr.f32.mxu0 0.0
        %1652 = vmatmul.mubr.f32.gmra.mrb[0].mxu0 %v1580
        %v1653 = vpop.f32.mrb[0].mxu0
        %v1654 = vadd.f32 0.0, %v1653
        %v1655 = vpop.f32.mrb[0].mxu0
        %1656 = vdwg.mxu0
        %1659 = vrot.lane.b32.xlu0 %v518, 96
        %v1660 = vpop.permute.xlu0 %1659
        %1661 = vrot.lane.b32.xlu0 %v522, 96
        %v1662 = vpop.permute.xlu0 %1661
        %v1666 = vsel %vm1355, %v1541, 0
        %v1669 = vsel %vm1355, %v1543, 0
        %1671 = vmatprep.subr.mxu0 0.0
        %1672 = vmatpush1.msra.mxu0 %v1660
        %1673 = vmatprep.subr.mxu0 0.0
        %1674 = vmatpush1.msra.mxu0 %v1662
        %1675 = vmatprep.subr.mxu0 0.0
        %1676 = vmatpush1.msra.mxu0 0.0
        %1677 = vmatprep.subr.mxu0 0.0
        %1678 = vmatpush1.msra.mxu0 0.0
        %1679 = vmatprep.subr.mxu0 0.0
        %1680 = vmatpush1.msra.mxu0 0.0
        %1681 = vmatprep.subr.mxu0 0.0
        %1682 = vmatpush1.msra.mxu0 0.0
        %1683 = vmatprep.subr.mxu0 0.0
        %1684 = vmatpush1.msra.mxu0 0.0
        %1685 = vmatprep.subr.mxu0 0.0
        %1686 = vmatpush1.msra.mxu0 0.0
        %1687 = vmatprep.subr.mxu0 0.0
        %1688 = vmatpush1.msra.mxu0 0.0
        %1689 = vmatprep.subr.mxu0 0.0
        %1690 = vmatpush1.msra.mxu0 0.0
        %1691 = vmatprep.subr.mxu0 0.0
        %1692 = vmatpush1.msra.mxu0 0.0
        %1693 = vmatprep.subr.mxu0 0.0
        %1694 = vmatpush1.msra.mxu0 0.0
        %1695 = vmatprep.subr.mxu0 0.0
        %1696 = vmatpush1.msra.mxu0 0.0
        %1697 = vmatprep.subr.mxu0 0.0
        %1698 = vmatpush1.msra.mxu0 0.0
        %1699 = vmatprep.subr.mxu0 0.0
        %1700 = vmatpush1.msra.mxu0 0.0
        %1701 = vmatprep.subr.mxu0 0.0
        %1702 = vmatpush1.msra.mxu0 0.0
        %1703 = vmatprep.subr.mxu0 0.0
        %1704 = vmatpush1.msra.mxu0 0.0
        %1705 = vmatprep.subr.mxu0 0.0
        %1706 = vmatpush1.msra.mxu0 0.0
        %1707 = vmatprep.subr.mxu0 0.0
        %1708 = vmatpush1.msra.mxu0 0.0
        %1709 = vmatprep.subr.mxu0 0.0
        %1710 = vmatpush1.msra.mxu0 0.0
        %1711 = vmatprep.subr.mxu0 0.0
        %1712 = vmatpush1.msra.mxu0 0.0
        %1713 = vmatprep.subr.mxu0 0.0
        %1714 = vmatpush1.msra.mxu0 0.0
        %1715 = vmatprep.subr.mxu0 0.0
        %1716 = vmatpush1.msra.mxu0 0.0
        %1717 = vmatprep.subr.mxu0 0.0
        %1718 = vmatpush1.msra.mxu0 0.0
        %1719 = vmatprep.subr.mxu0 0.0
        %1720 = vmatpush1.msra.mxu0 0.0
        %1721 = vmatprep.subr.mxu0 0.0
        %1722 = vmatpush1.msra.mxu0 0.0
        %1723 = vmatprep.subr.mxu0 0.0
        %1724 = vmatpush1.msra.mxu0 0.0
        %1725 = vmatprep.subr.mxu0 0.0
        %1726 = vmatpush1.msra.mxu0 0.0
        %1727 = vmatprep.subr.mxu0 0.0
        %1728 = vmatpush1.msra.mxu0 0.0
        %1729 = vmatprep.subr.mxu0 0.0
        %1730 = vmatpush1.msra.mxu0 0.0
        %1731 = vmatprep.subr.mxu0 0.0
        %1732 = vmatpush1.msra.mxu0 0.0
        %1733 = vmatprep.subr.mxu0 0.0
        %1734 = vmatpush1.msra.mxu0 0.0
        %1735 = vmatprep.mubr.f32.mxu0 0.0
        %1736 = vmatmul.mubr.f32.gmra.mrb[0].mxu0 %v1666
        %v1737 = vpop.f32.mrb[0].mxu0
        %v1738 = vadd.f32 0.0, %v1737
        %v1739 = vpop.f32.mrb[0].mxu0
        %1740 = vmatprep.mubr.f32.mxu0 0.0
        %1741 = vmatmul.mubr.f32.gmra.mrb[0].mxu0 %v1669
        %v1742 = vpop.f32.mrb[0].mxu0
        %v1743 = vadd.f32 0.0, %v1742
        %v1744 = vpop.f32.mrb[0].mxu0
        %1745 = vdwg.mxu0
        %1746 = vrot.lane.b32.xlu0 %v518, 64
        %v1747 = vpop.permute.xlu0 %1746
        %1748 = vrot.lane.b32.xlu0 %v522, 64
        %v1749 = vpop.permute.xlu0 %1748
        %v1753 = vsel %vm1355, %v1545, 0
        %v1756 = vsel %vm1355, %v1547, 0
        %1758 = vmatprep.subr.mxu0 0.0
        %1759 = vmatpush1.msra.mxu0 %v1747
        %1760 = vmatprep.subr.mxu0 0.0
        %1761 = vmatpush1.msra.mxu0 %v1749
        %1762 = vmatprep.subr.mxu0 0.0
        %1763 = vmatpush1.msra.mxu0 0.0
        %1764 = vmatprep.subr.mxu0 0.0
        %1765 = vmatpush1.msra.mxu0 0.0
        %1766 = vmatprep.subr.mxu0 0.0
        %1767 = vmatpush1.msra.mxu0 0.0
        %1768 = vmatprep.subr.mxu0 0.0
        %1769 = vmatpush1.msra.mxu0 0.0
        %1770 = vmatprep.subr.mxu0 0.0
        %1771 = vmatpush1.msra.mxu0 0.0
        %1772 = vmatprep.subr.mxu0 0.0
        %1773 = vmatpush1.msra.mxu0 0.0
        %1774 = vmatprep.subr.mxu0 0.0
        %1775 = vmatpush1.msra.mxu0 0.0
        %1776 = vmatprep.subr.mxu0 0.0
        %1777 = vmatpush1.msra.mxu0 0.0
        %1778 = vmatprep.subr.mxu0 0.0
        %1779 = vmatpush1.msra.mxu0 0.0
        %1780 = vmatprep.subr.mxu0 0.0
        %1781 = vmatpush1.msra.mxu0 0.0
        %1782 = vmatprep.subr.mxu0 0.0
        %1783 = vmatpush1.msra.mxu0 0.0
        %1784 = vmatprep.subr.mxu0 0.0
        %1785 = vmatpush1.msra.mxu0 0.0
        %1786 = vmatprep.subr.mxu0 0.0
        %1787 = vmatpush1.msra.mxu0 0.0
        %1788 = vmatprep.subr.mxu0 0.0
        %1789 = vmatpush1.msra.mxu0 0.0
        %1790 = vmatprep.subr.mxu0 0.0
        %1791 = vmatpush1.msra.mxu0 0.0
        %1792 = vmatprep.subr.mxu0 0.0
        %1793 = vmatpush1.msra.mxu0 0.0
        %1794 = vmatprep.subr.mxu0 0.0
        %1795 = vmatpush1.msra.mxu0 0.0
        %1796 = vmatprep.subr.mxu0 0.0
        %1797 = vmatpush1.msra.mxu0 0.0
        %1798 = vmatprep.subr.mxu0 0.0
        %1799 = vmatpush1.msra.mxu0 0.0
        %1800 = vmatprep.subr.mxu0 0.0
        %1801 = vmatpush1.msra.mxu0 0.0
        %1802 = vmatprep.subr.mxu0 0.0
        %1803 = vmatpush1.msra.mxu0 0.0
        %1804 = vmatprep.subr.mxu0 0.0
        %1805 = vmatpush1.msra.mxu0 0.0
        %1806 = vmatprep.subr.mxu0 0.0
        %1807 = vmatpush1.msra.mxu0 0.0
        %1808 = vmatprep.subr.mxu0 0.0
        %1809 = vmatpush1.msra.mxu0 0.0
        %1810 = vmatprep.subr.mxu0 0.0
        %1811 = vmatpush1.msra.mxu0 0.0
        %1812 = vmatprep.subr.mxu0 0.0
        %1813 = vmatpush1.msra.mxu0 0.0
        %1814 = vmatprep.subr.mxu0 0.0
        %1815 = vmatpush1.msra.mxu0 0.0
        %1816 = vmatprep.subr.mxu0 0.0
        %1817 = vmatpush1.msra.mxu0 0.0
        %1818 = vmatprep.subr.mxu0 0.0
        %1819 = vmatpush1.msra.mxu0 0.0
        %1820 = vmatprep.subr.mxu0 0.0
        %1821 = vmatpush1.msra.mxu0 0.0
        %1822 = vmatprep.mubr.f32.mxu0 0.0
        %1823 = vmatmul.mubr.f32.gmra.mrb[0].mxu0 %v1753
        %v1824 = vpop.f32.mrb[0].mxu0
        %v1825 = vadd.f32 0.0, %v1824
        %v1826 = vpop.f32.mrb[0].mxu0
        %1827 = vmatprep.mubr.f32.mxu0 0.0
        %1828 = vmatmul.mubr.f32.gmra.mrb[0].mxu0 %v1756
        %v1829 = vpop.f32.mrb[0].mxu0
        %v1830 = vadd.f32 0.0, %v1829
        %v1831 = vpop.f32.mrb[0].mxu0
        %1832 = vdwg.mxu0
        %1833 = vrot.lane.b32.xlu0 %v518, 32
        %v1834 = vpop.permute.xlu0 %1833
        %1835 = vrot.lane.b32.xlu0 %v522, 32
        %v1836 = vpop.permute.xlu0 %1835
        %v1840 = vsel %vm1355, %v1549, 0
        %v1843 = vsel %vm1355, %v1551, 0
        %1845 = vmatprep.subr.mxu0 0.0
        %1846 = vmatpush1.msra.mxu0 %v1834
        %1847 = vmatprep.subr.mxu0 0.0
        %1848 = vmatpush1.msra.mxu0 %v1836
        %1849 = vmatprep.subr.mxu0 0.0
        %1850 = vmatpush1.msra.mxu0 0.0
        %1851 = vmatprep.subr.mxu0 0.0
        %1852 = vmatpush1.msra.mxu0 0.0
        %1853 = vmatprep.subr.mxu0 0.0
        %1854 = vmatpush1.msra.mxu0 0.0
        %1855 = vmatprep.subr.mxu0 0.0
        %1856 = vmatpush1.msra.mxu0 0.0
        %1857 = vmatprep.subr.mxu0 0.0
        %1858 = vmatpush1.msra.mxu0 0.0
        %1859 = vmatprep.subr.mxu0 0.0
        %1860 = vmatpush1.msra.mxu0 0.0
        %1861 = vmatprep.subr.mxu0 0.0
        %1862 = vmatpush1.msra.mxu0 0.0
        %1863 = vmatprep.subr.mxu0 0.0
        %1864 = vmatpush1.msra.mxu0 0.0
        %1865 = vmatprep.subr.mxu0 0.0
        %1866 = vmatpush1.msra.mxu0 0.0
        %1867 = vmatprep.subr.mxu0 0.0
        %1868 = vmatpush1.msra.mxu0 0.0
        %1869 = vmatprep.subr.mxu0 0.0
        %1870 = vmatpush1.msra.mxu0 0.0
        %1871 = vmatprep.subr.mxu0 0.0
        %1872 = vmatpush1.msra.mxu0 0.0
        %1873 = vmatprep.subr.mxu0 0.0
        %1874 = vmatpush1.msra.mxu0 0.0
        %1875 = vmatprep.subr.mxu0 0.0
        %1876 = vmatpush1.msra.mxu0 0.0
        %1877 = vmatprep.subr.mxu0 0.0
        %1878 = vmatpush1.msra.mxu0 0.0
        %1879 = vmatprep.subr.mxu0 0.0
        %1880 = vmatpush1.msra.mxu0 0.0
        %1881 = vmatprep.subr.mxu0 0.0
        %1882 = vmatpush1.msra.mxu0 0.0
        %1883 = vmatprep.subr.mxu0 0.0
        %1884 = vmatpush1.msra.mxu0 0.0
        %1885 = vmatprep.subr.mxu0 0.0
        %1886 = vmatpush1.msra.mxu0 0.0
        %1887 = vmatprep.subr.mxu0 0.0
        %1888 = vmatpush1.msra.mxu0 0.0
        %1889 = vmatprep.subr.mxu0 0.0
        %1890 = vmatpush1.msra.mxu0 0.0
        %1891 = vmatprep.subr.mxu0 0.0
        %1892 = vmatpush1.msra.mxu0 0.0
        %1893 = vmatprep.subr.mxu0 0.0
        %1894 = vmatpush1.msra.mxu0 0.0
        %1895 = vmatprep.subr.mxu0 0.0
        %1896 = vmatpush1.msra.mxu0 0.0
        %1897 = vmatprep.subr.mxu0 0.0
        %1898 = vmatpush1.msra.mxu0 0.0
        %1899 = vmatprep.subr.mxu0 0.0
        %1900 = vmatpush1.msra.mxu0 0.0
        %1901 = vmatprep.subr.mxu0 0.0
        %1902 = vmatpush1.msra.mxu0 0.0
        %1903 = vmatprep.subr.mxu0 0.0
        %1904 = vmatpush1.msra.mxu0 0.0
        %1905 = vmatprep.subr.mxu0 0.0
        %1906 = vmatpush1.msra.mxu0 0.0
        %1907 = vmatprep.subr.mxu0 0.0
        %1908 = vmatpush1.msra.mxu0 0.0
        %1909 = vmatprep.mubr.f32.mxu0 0.0
        %1910 = vmatmul.mubr.f32.gmra.mrb[0].mxu0 %v1840
        %v1911 = vpop.f32.mrb[0].mxu0
        %v1912 = vadd.f32 0.0, %v1911
        %v1913 = vpop.f32.mrb[0].mxu0
        %1914 = vmatprep.mubr.f32.mxu0 0.0
        %1915 = vmatmul.mubr.f32.gmra.mrb[0].mxu0 %v1843
        %v1916 = vpop.f32.mrb[0].mxu0
        %v1917 = vadd.f32 0.0, %v1916
        %v1918 = vpop.f32.mrb[0].mxu0
        %1919 = vdwg.mxu0
        %v1921 = vsel %vm1355, %v1553, 0
        %v1924 = vsel %vm1355, %v1555, 0
        %1926 = vmatprep.subr.mxu0 0.0
        %1927 = vmatpush1.msra.mxu0 %v520
        %1928 = vmatprep.subr.mxu0 0.0
        %1929 = vmatpush1.msra.mxu0 %v524
        %1930 = vmatprep.subr.mxu0 0.0
        %1931 = vmatpush1.msra.mxu0 0.0
        %1932 = vmatprep.subr.mxu0 0.0
        %1933 = vmatpush1.msra.mxu0 0.0
        %1934 = vmatprep.subr.mxu0 0.0
        %1935 = vmatpush1.msra.mxu0 0.0
        %1936 = vmatprep.subr.mxu0 0.0
        %1937 = vmatpush1.msra.mxu0 0.0
        %1938 = vmatprep.subr.mxu0 0.0
        %1939 = vmatpush1.msra.mxu0 0.0
        %1940 = vmatprep.subr.mxu0 0.0
        %1941 = vmatpush1.msra.mxu0 0.0
        %1942 = vmatprep.subr.mxu0 0.0
        %1943 = vmatpush1.msra.mxu0 0.0
        %1944 = vmatprep.subr.mxu0 0.0
        %1945 = vmatpush1.msra.mxu0 0.0
        %1946 = vmatprep.subr.mxu0 0.0
        %1947 = vmatpush1.msra.mxu0 0.0
        %1948 = vmatprep.subr.mxu0 0.0
        %1949 = vmatpush1.msra.mxu0 0.0
        %1950 = vmatprep.subr.mxu0 0.0
        %1951 = vmatpush1.msra.mxu0 0.0
        %1952 = vmatprep.subr.mxu0 0.0
        %1953 = vmatpush1.msra.mxu0 0.0
        %1954 = vmatprep.subr.mxu0 0.0
        %1955 = vmatpush1.msra.mxu0 0.0
        %1956 = vmatprep.subr.mxu0 0.0
        %1957 = vmatpush1.msra.mxu0 0.0
        %1958 = vmatprep.subr.mxu0 0.0
        %1959 = vmatpush1.msra.mxu0 0.0
        %1960 = vmatprep.subr.mxu0 0.0
        %1961 = vmatpush1.msra.mxu0 0.0
        %1962 = vmatprep.subr.mxu0 0.0
        %1963 = vmatpush1.msra.mxu0 0.0
        %1964 = vmatprep.subr.mxu0 0.0
        %1965 = vmatpush1.msra.mxu0 0.0
        %1966 = vmatprep.subr.mxu0 0.0
        %1967 = vmatpush1.msra.mxu0 0.0
        %1968 = vmatprep.subr.mxu0 0.0
        %1969 = vmatpush1.msra.mxu0 0.0
        %1970 = vmatprep.subr.mxu0 0.0
        %1971 = vmatpush1.msra.mxu0 0.0
        %1972 = vmatprep.subr.mxu0 0.0
        %1973 = vmatpush1.msra.mxu0 0.0
        %1974 = vmatprep.subr.mxu0 0.0
        %1975 = vmatpush1.msra.mxu0 0.0
        %1976 = vmatprep.subr.mxu0 0.0
        %1977 = vmatpush1.msra.mxu0 0.0
        %1978 = vmatprep.subr.mxu0 0.0
        %1979 = vmatpush1.msra.mxu0 0.0
        %1980 = vmatprep.subr.mxu0 0.0
        %1981 = vmatpush1.msra.mxu0 0.0
        %1982 = vmatprep.subr.mxu0 0.0
        %1983 = vmatpush1.msra.mxu0 0.0
        %1984 = vmatprep.subr.mxu0 0.0
        %1985 = vmatpush1.msra.mxu0 0.0
        %1986 = vmatprep.subr.mxu0 0.0
        %1987 = vmatpush1.msra.mxu0 0.0
        %1988 = vmatprep.subr.mxu0 0.0
        %1989 = vmatpush1.msra.mxu0 0.0
        %1990 = vmatprep.mubr.f32.mxu0 0.0
        %1991 = vmatmul.mubr.f32.gmra.mrb[0].mxu0 %v1921
        %v1992 = vpop.f32.mrb[0].mxu0
        %v1993 = vadd.f32 0.0, %v1992
        %v1994 = vpop.f32.mrb[0].mxu0
        %1995 = vmatprep.mubr.f32.mxu0 0.0
        %1996 = vmatmul.mubr.f32.gmra.mrb[0].mxu0 %v1924
        %v1997 = vpop.f32.mrb[0].mxu0
        %v1998 = vadd.f32 0.0, %v1997
        %v1999 = vpop.f32.mrb[0].mxu0
        %2000 = vdwg.mxu0
        %2003 = vrot.lane.b32.xlu0 %v520, 96
        %v2004 = vpop.permute.xlu0 %2003
        %2005 = vrot.lane.b32.xlu0 %v524, 96
        %v2006 = vpop.permute.xlu0 %2005
        %v2010 = vsel %vm1355, %v1557, 0
        %v2013 = vsel %vm1355, %v1559, 0
        %2015 = vmatprep.subr.mxu0 0.0
        %2016 = vmatpush1.msra.mxu0 %v2004
        %2017 = vmatprep.subr.mxu0 0.0
        %2018 = vmatpush1.msra.mxu0 %v2006
        %2019 = vmatprep.subr.mxu0 0.0
        %2020 = vmatpush1.msra.mxu0 0.0
        %2021 = vmatprep.subr.mxu0 0.0
        %2022 = vmatpush1.msra.mxu0 0.0
        %2023 = vmatprep.subr.mxu0 0.0
        %2024 = vmatpush1.msra.mxu0 0.0
        %2025 = vmatprep.subr.mxu0 0.0
        %2026 = vmatpush1.msra.mxu0 0.0
        %2027 = vmatprep.subr.mxu0 0.0
        %2028 = vmatpush1.msra.mxu0 0.0
        %2029 = vmatprep.subr.mxu0 0.0
        %2030 = vmatpush1.msra.mxu0 0.0
        %2031 = vmatprep.subr.mxu0 0.0
        %2032 = vmatpush1.msra.mxu0 0.0
        %2033 = vmatprep.subr.mxu0 0.0
        %2034 = vmatpush1.msra.mxu0 0.0
        %2035 = vmatprep.subr.mxu0 0.0
        %2036 = vmatpush1.msra.mxu0 0.0
        %2037 = vmatprep.subr.mxu0 0.0
        %2038 = vmatpush1.msra.mxu0 0.0
        %2039 = vmatprep.subr.mxu0 0.0
        %2040 = vmatpush1.msra.mxu0 0.0
        %2041 = vmatprep.subr.mxu0 0.0
        %2042 = vmatpush1.msra.mxu0 0.0
        %2043 = vmatprep.subr.mxu0 0.0
        %2044 = vmatpush1.msra.mxu0 0.0
        %2045 = vmatprep.subr.mxu0 0.0
        %2046 = vmatpush1.msra.mxu0 0.0
        %2047 = vmatprep.subr.mxu0 0.0
        %2048 = vmatpush1.msra.mxu0 0.0
        %2049 = vmatprep.subr.mxu0 0.0
        %2050 = vmatpush1.msra.mxu0 0.0
        %2051 = vmatprep.subr.mxu0 0.0
        %2052 = vmatpush1.msra.mxu0 0.0
        %2053 = vmatprep.subr.mxu0 0.0
        %2054 = vmatpush1.msra.mxu0 0.0
        %2055 = vmatprep.subr.mxu0 0.0
        %2056 = vmatpush1.msra.mxu0 0.0
        %2057 = vmatprep.subr.mxu0 0.0
        %2058 = vmatpush1.msra.mxu0 0.0
        %2059 = vmatprep.subr.mxu0 0.0
        %2060 = vmatpush1.msra.mxu0 0.0
        %2061 = vmatprep.subr.mxu0 0.0
        %2062 = vmatpush1.msra.mxu0 0.0
        %2063 = vmatprep.subr.mxu0 0.0
        %2064 = vmatpush1.msra.mxu0 0.0
        %2065 = vmatprep.subr.mxu0 0.0
        %2066 = vmatpush1.msra.mxu0 0.0
        %2067 = vmatprep.subr.mxu0 0.0
        %2068 = vmatpush1.msra.mxu0 0.0
        %2069 = vmatprep.subr.mxu0 0.0
        %2070 = vmatpush1.msra.mxu0 0.0
        %2071 = vmatprep.subr.mxu0 0.0
        %2072 = vmatpush1.msra.mxu0 0.0
        %2073 = vmatprep.subr.mxu0 0.0
        %2074 = vmatpush1.msra.mxu0 0.0
        %2075 = vmatprep.subr.mxu0 0.0
        %2076 = vmatpush1.msra.mxu0 0.0
        %2077 = vmatprep.subr.mxu0 0.0
        %2078 = vmatpush1.msra.mxu0 0.0
        %2079 = vmatprep.mubr.f32.mxu0 0.0
        %2080 = vmatmul.mubr.f32.gmra.mrb[0].mxu0 %v2010
        %v2081 = vpop.f32.mrb[0].mxu0
        %v2082 = vadd.f32 0.0, %v2081
        %v2083 = vpop.f32.mrb[0].mxu0
        %2084 = vmatprep.mubr.f32.mxu0 0.0
        %2085 = vmatmul.mubr.f32.gmra.mrb[0].mxu0 %v2013
        %v2086 = vpop.f32.mrb[0].mxu0
        %v2087 = vadd.f32 0.0, %v2086
        %v2088 = vpop.f32.mrb[0].mxu0
        %2089 = vdwg.mxu0
        %2090 = vrot.lane.b32.xlu0 %v520, 64
        %v2091 = vpop.permute.xlu0 %2090
        %2092 = vrot.lane.b32.xlu0 %v524, 64
        %v2093 = vpop.permute.xlu0 %2092
        %v2097 = vsel %vm1355, %v1561, 0
        %v2100 = vsel %vm1355, %v1563, 0
        %2102 = vmatprep.subr.mxu0 0.0
        %2103 = vmatpush1.msra.mxu0 %v2091
        %2104 = vmatprep.subr.mxu0 0.0
        %2105 = vmatpush1.msra.mxu0 %v2093
        %2106 = vmatprep.subr.mxu0 0.0
        %2107 = vmatpush1.msra.mxu0 0.0
        %2108 = vmatprep.subr.mxu0 0.0
        %2109 = vmatpush1.msra.mxu0 0.0
        %2110 = vmatprep.subr.mxu0 0.0
        %2111 = vmatpush1.msra.mxu0 0.0
        %2112 = vmatprep.subr.mxu0 0.0
        %2113 = vmatpush1.msra.mxu0 0.0
        %2114 = vmatprep.subr.mxu0 0.0
        %2115 = vmatpush1.msra.mxu0 0.0
        %2116 = vmatprep.subr.mxu0 0.0
        %2117 = vmatpush1.msra.mxu0 0.0
        %2118 = vmatprep.subr.mxu0 0.0
        %2119 = vmatpush1.msra.mxu0 0.0
        %2120 = vmatprep.subr.mxu0 0.0
        %2121 = vmatpush1.msra.mxu0 0.0
        %2122 = vmatprep.subr.mxu0 0.0
        %2123 = vmatpush1.msra.mxu0 0.0
        %2124 = vmatprep.subr.mxu0 0.0
        %2125 = vmatpush1.msra.mxu0 0.0
        %2126 = vmatprep.subr.mxu0 0.0
        %2127 = vmatpush1.msra.mxu0 0.0
        %2128 = vmatprep.subr.mxu0 0.0
        %2129 = vmatpush1.msra.mxu0 0.0
        %2130 = vmatprep.subr.mxu0 0.0
        %2131 = vmatpush1.msra.mxu0 0.0
        %2132 = vmatprep.subr.mxu0 0.0
        %2133 = vmatpush1.msra.mxu0 0.0
        %2134 = vmatprep.subr.mxu0 0.0
        %2135 = vmatpush1.msra.mxu0 0.0
        %2136 = vmatprep.subr.mxu0 0.0
        %2137 = vmatpush1.msra.mxu0 0.0
        %2138 = vmatprep.subr.mxu0 0.0
        %2139 = vmatpush1.msra.mxu0 0.0
        %2140 = vmatprep.subr.mxu0 0.0
        %2141 = vmatpush1.msra.mxu0 0.0
        %2142 = vmatprep.subr.mxu0 0.0
        %2143 = vmatpush1.msra.mxu0 0.0
        %2144 = vmatprep.subr.mxu0 0.0
        %2145 = vmatpush1.msra.mxu0 0.0
        %2146 = vmatprep.subr.mxu0 0.0
        %2147 = vmatpush1.msra.mxu0 0.0
        %2148 = vmatprep.subr.mxu0 0.0
        %2149 = vmatpush1.msra.mxu0 0.0
        %2150 = vmatprep.subr.mxu0 0.0
        %2151 = vmatpush1.msra.mxu0 0.0
        %2152 = vmatprep.subr.mxu0 0.0
        %2153 = vmatpush1.msra.mxu0 0.0
        %2154 = vmatprep.subr.mxu0 0.0
        %2155 = vmatpush1.msra.mxu0 0.0
        %2156 = vmatprep.subr.mxu0 0.0
        %2157 = vmatpush1.msra.mxu0 0.0
        %2158 = vmatprep.subr.mxu0 0.0
        %2159 = vmatpush1.msra.mxu0 0.0
        %2160 = vmatprep.subr.mxu0 0.0
        %2161 = vmatpush1.msra.mxu0 0.0
        %2162 = vmatprep.subr.mxu0 0.0
        %2163 = vmatpush1.msra.mxu0 0.0
        %2164 = vmatprep.subr.mxu0 0.0
        %2165 = vmatpush1.msra.mxu0 0.0
        %2166 = vmatprep.mubr.f32.mxu0 0.0
        %2167 = vmatmul.mubr.f32.gmra.mrb[0].mxu0 %v2097
        %v2168 = vpop.f32.mrb[0].mxu0
        %v2169 = vadd.f32 0.0, %v2168
        %v2170 = vpop.f32.mrb[0].mxu0
        %2171 = vmatprep.mubr.f32.mxu0 0.0
        %2172 = vmatmul.mubr.f32.gmra.mrb[0].mxu0 %v2100
        %v2173 = vpop.f32.mrb[0].mxu0
        %v2174 = vadd.f32 0.0, %v2173
        %v2175 = vpop.f32.mrb[0].mxu0
        %2176 = vdwg.mxu0
        %2177 = vrot.lane.b32.xlu0 %v520, 32
        %v2178 = vpop.permute.xlu0 %2177
        %2179 = vrot.lane.b32.xlu0 %v524, 32
        %v2180 = vpop.permute.xlu0 %2179
        %v2184 = vsel %vm1355, %v1565, 0
        %v2187 = vsel %vm1355, %v1567, 0
        %2189 = vmatprep.subr.mxu0 0.0
        %2190 = vmatpush1.msra.mxu0 %v2178
        %2191 = vmatprep.subr.mxu0 0.0
        %2192 = vmatpush1.msra.mxu0 %v2180
        %2193 = vmatprep.subr.mxu0 0.0
        %2194 = vmatpush1.msra.mxu0 0.0
        %2195 = vmatprep.subr.mxu0 0.0
        %2196 = vmatpush1.msra.mxu0 0.0
        %2197 = vmatprep.subr.mxu0 0.0
        %2198 = vmatpush1.msra.mxu0 0.0
        %2199 = vmatprep.subr.mxu0 0.0
        %2200 = vmatpush1.msra.mxu0 0.0
        %2201 = vmatprep.subr.mxu0 0.0
        %2202 = vmatpush1.msra.mxu0 0.0
        %2203 = vmatprep.subr.mxu0 0.0
        %2204 = vmatpush1.msra.mxu0 0.0
        %2205 = vmatprep.subr.mxu0 0.0
        %2206 = vmatpush1.msra.mxu0 0.0
        %2207 = vmatprep.subr.mxu0 0.0
        %2208 = vmatpush1.msra.mxu0 0.0
        %2209 = vmatprep.subr.mxu0 0.0
        %2210 = vmatpush1.msra.mxu0 0.0
        %2211 = vmatprep.subr.mxu0 0.0
        %2212 = vmatpush1.msra.mxu0 0.0
        %2213 = vmatprep.subr.mxu0 0.0
        %2214 = vmatpush1.msra.mxu0 0.0
        %2215 = vmatprep.subr.mxu0 0.0
        %2216 = vmatpush1.msra.mxu0 0.0
        %2217 = vmatprep.subr.mxu0 0.0
        %2218 = vmatpush1.msra.mxu0 0.0
        %2219 = vmatprep.subr.mxu0 0.0
        %2220 = vmatpush1.msra.mxu0 0.0
        %2221 = vmatprep.subr.mxu0 0.0
        %2222 = vmatpush1.msra.mxu0 0.0
        %2223 = vmatprep.subr.mxu0 0.0
        %2224 = vmatpush1.msra.mxu0 0.0
        %2225 = vmatprep.subr.mxu0 0.0
        %2226 = vmatpush1.msra.mxu0 0.0
        %2227 = vmatprep.subr.mxu0 0.0
        %2228 = vmatpush1.msra.mxu0 0.0
        %2229 = vmatprep.subr.mxu0 0.0
        %2230 = vmatpush1.msra.mxu0 0.0
        %2231 = vmatprep.subr.mxu0 0.0
        %2232 = vmatpush1.msra.mxu0 0.0
        %2233 = vmatprep.subr.mxu0 0.0
        %2234 = vmatpush1.msra.mxu0 0.0
        %2235 = vmatprep.subr.mxu0 0.0
        %2236 = vmatpush1.msra.mxu0 0.0
        %2237 = vmatprep.subr.mxu0 0.0
        %2238 = vmatpush1.msra.mxu0 0.0
        %2239 = vmatprep.subr.mxu0 0.0
        %2240 = vmatpush1.msra.mxu0 0.0
        %2241 = vmatprep.subr.mxu0 0.0
        %2242 = vmatpush1.msra.mxu0 0.0
        %2243 = vmatprep.subr.mxu0 0.0
        %2244 = vmatpush1.msra.mxu0 0.0
        %2245 = vmatprep.subr.mxu0 0.0
        %2246 = vmatpush1.msra.mxu0 0.0
        %2247 = vmatprep.subr.mxu0 0.0
        %2248 = vmatpush1.msra.mxu0 0.0
        %2249 = vmatprep.subr.mxu0 0.0
        %2250 = vmatpush1.msra.mxu0 0.0
        %2251 = vmatprep.subr.mxu0 0.0
        %2252 = vmatpush1.msra.mxu0 0.0
        %2253 = vmatprep.mubr.f32.mxu0 0.0
        %2254 = vmatmul.mubr.f32.gmra.mrb[0].mxu0 %v2184
        %v2255 = vpop.f32.mrb[0].mxu0
        %v2256 = vadd.f32 0.0, %v2255
        %v2257 = vpop.f32.mrb[0].mxu0
        %2258 = vmatprep.mubr.f32.mxu0 0.0
        %2259 = vmatmul.mubr.f32.gmra.mrb[0].mxu0 %v2187
        %v2260 = vpop.f32.mrb[0].mxu0
        %v2261 = vadd.f32 0.0, %v2260
        %v2262 = vpop.f32.mrb[0].mxu0
        %2263 = vdwg.mxu0
        %v2265 = vsel %vm1355, %v1569, 0
        %v2268 = vsel %vm1355, %v1571, 0
        %2270 = vmatprep.subr.mxu0 0.0
        %2271 = vmatpush1.msra.mxu0 %v561
        %2272 = vmatprep.subr.mxu0 0.0
        %2273 = vmatpush1.msra.mxu0 %v564
        %2274 = vmatprep.subr.mxu0 0.0
        %2275 = vmatpush1.msra.mxu0 0.0
        %2276 = vmatprep.subr.mxu0 0.0
        %2277 = vmatpush1.msra.mxu0 0.0
        %2278 = vmatprep.subr.mxu0 0.0
        %2279 = vmatpush1.msra.mxu0 0.0
        %2280 = vmatprep.subr.mxu0 0.0
        %2281 = vmatpush1.msra.mxu0 0.0
        %2282 = vmatprep.subr.mxu0 0.0
        %2283 = vmatpush1.msra.mxu0 0.0
        %2284 = vmatprep.subr.mxu0 0.0
        %2285 = vmatpush1.msra.mxu0 0.0
        %2286 = vmatprep.subr.mxu0 0.0
        %2287 = vmatpush1.msra.mxu0 0.0
        %2288 = vmatprep.subr.mxu0 0.0
        %2289 = vmatpush1.msra.mxu0 0.0
        %2290 = vmatprep.subr.mxu0 0.0
        %2291 = vmatpush1.msra.mxu0 0.0
        %2292 = vmatprep.subr.mxu0 0.0
        %2293 = vmatpush1.msra.mxu0 0.0
        %2294 = vmatprep.subr.mxu0 0.0
        %2295 = vmatpush1.msra.mxu0 0.0
        %2296 = vmatprep.subr.mxu0 0.0
        %2297 = vmatpush1.msra.mxu0 0.0
        %2298 = vmatprep.subr.mxu0 0.0
        %2299 = vmatpush1.msra.mxu0 0.0
        %2300 = vmatprep.subr.mxu0 0.0
        %2301 = vmatpush1.msra.mxu0 0.0
        %2302 = vmatprep.subr.mxu0 0.0
        %2303 = vmatpush1.msra.mxu0 0.0
        %2304 = vmatprep.subr.mxu0 0.0
        %2305 = vmatpush1.msra.mxu0 0.0
        %2306 = vmatprep.subr.mxu0 0.0
        %2307 = vmatpush1.msra.mxu0 0.0
        %2308 = vmatprep.subr.mxu0 0.0
        %2309 = vmatpush1.msra.mxu0 0.0
        %2310 = vmatprep.subr.mxu0 0.0
        %2311 = vmatpush1.msra.mxu0 0.0
        %2312 = vmatprep.subr.mxu0 0.0
        %2313 = vmatpush1.msra.mxu0 0.0
        %2314 = vmatprep.subr.mxu0 0.0
        %2315 = vmatpush1.msra.mxu0 0.0
        %2316 = vmatprep.subr.mxu0 0.0
        %2317 = vmatpush1.msra.mxu0 0.0
        %2318 = vmatprep.subr.mxu0 0.0
        %2319 = vmatpush1.msra.mxu0 0.0
        %2320 = vmatprep.subr.mxu0 0.0
        %2321 = vmatpush1.msra.mxu0 0.0
        %2322 = vmatprep.subr.mxu0 0.0
        %2323 = vmatpush1.msra.mxu0 0.0
        %2324 = vmatprep.subr.mxu0 0.0
        %2325 = vmatpush1.msra.mxu0 0.0
        %2326 = vmatprep.subr.mxu0 0.0
        %2327 = vmatpush1.msra.mxu0 0.0
        %2328 = vmatprep.subr.mxu0 0.0
        %2329 = vmatpush1.msra.mxu0 0.0
        %2330 = vmatprep.subr.mxu0 0.0
        %2331 = vmatpush1.msra.mxu0 0.0
        %2332 = vmatprep.subr.mxu0 0.0
        %2333 = vmatpush1.msra.mxu0 0.0
        %2334 = vmatprep.mubr.f32.mxu0 0.0
        %2335 = vmatmul.mubr.f32.gmra.mrb[0].mxu0 %v2265
        %v2336 = vpop.f32.mrb[0].mxu0
        %v2337 = vadd.f32 0.0, %v2336
        %v2338 = vpop.f32.mrb[0].mxu0
        %2339 = vmatprep.mubr.f32.mxu0 0.0
        %2340 = vmatmul.mubr.f32.gmra.mrb[0].mxu0 %v2268
        %v2341 = vpop.f32.mrb[0].mxu0
        %v2342 = vadd.f32 0.0, %v2341
        %v2343 = vpop.f32.mrb[0].mxu0
        %2344 = vdwg.mxu0
        %2345 = vrot.lane.b32.xlu0 %v561, 96
        %v2346 = vpop.permute.xlu0 %2345
        %2347 = vrot.lane.b32.xlu0 %v564, 96
        %v2348 = vpop.permute.xlu0 %2347
        %v2352 = vsel %vm1355, %v1573, 0
        %v2355 = vsel %vm1355, %v1575, 0
        %2357 = vmatprep.subr.mxu0 0.0
        %2358 = vmatpush1.msra.mxu0 %v2346
        %2359 = vmatprep.subr.mxu0 0.0
        %2360 = vmatpush1.msra.mxu0 %v2348
        %2361 = vmatprep.subr.mxu0 0.0
        %2362 = vmatpush1.msra.mxu0 0.0
        %2363 = vmatprep.subr.mxu0 0.0
        %2364 = vmatpush1.msra.mxu0 0.0
        %2365 = vmatprep.subr.mxu0 0.0
        %2366 = vmatpush1.msra.mxu0 0.0
        %2367 = vmatprep.subr.mxu0 0.0
        %2368 = vmatpush1.msra.mxu0 0.0
        %2369 = vmatprep.subr.mxu0 0.0
        %2370 = vmatpush1.msra.mxu0 0.0
        %2371 = vmatprep.subr.mxu0 0.0
        %2372 = vmatpush1.msra.mxu0 0.0
        %2373 = vmatprep.subr.mxu0 0.0
        %2374 = vmatpush1.msra.mxu0 0.0
        %2375 = vmatprep.subr.mxu0 0.0
        %2376 = vmatpush1.msra.mxu0 0.0
        %2377 = vmatprep.subr.mxu0 0.0
        %2378 = vmatpush1.msra.mxu0 0.0
        %2379 = vmatprep.subr.mxu0 0.0
        %2380 = vmatpush1.msra.mxu0 0.0
        %2381 = vmatprep.subr.mxu0 0.0
        %2382 = vmatpush1.msra.mxu0 0.0
        %2383 = vmatprep.subr.mxu0 0.0
        %2384 = vmatpush1.msra.mxu0 0.0
        %2385 = vmatprep.subr.mxu0 0.0
        %2386 = vmatpush1.msra.mxu0 0.0
        %2387 = vmatprep.subr.mxu0 0.0
        %2388 = vmatpush1.msra.mxu0 0.0
        %2389 = vmatprep.subr.mxu0 0.0
        %2390 = vmatpush1.msra.mxu0 0.0
        %2391 = vmatprep.subr.mxu0 0.0
        %2392 = vmatpush1.msra.mxu0 0.0
        %2393 = vmatprep.subr.mxu0 0.0
        %2394 = vmatpush1.msra.mxu0 0.0
        %2395 = vmatprep.subr.mxu0 0.0
        %2396 = vmatpush1.msra.mxu0 0.0
        %2397 = vmatprep.subr.mxu0 0.0
        %2398 = vmatpush1.msra.mxu0 0.0
        %2399 = vmatprep.subr.mxu0 0.0
        %2400 = vmatpush1.msra.mxu0 0.0
        %2401 = vmatprep.subr.mxu0 0.0
        %2402 = vmatpush1.msra.mxu0 0.0
        %2403 = vmatprep.subr.mxu0 0.0
        %2404 = vmatpush1.msra.mxu0 0.0
        %2405 = vmatprep.subr.mxu0 0.0
        %2406 = vmatpush1.msra.mxu0 0.0
        %2407 = vmatprep.subr.mxu0 0.0
        %2408 = vmatpush1.msra.mxu0 0.0
        %2409 = vmatprep.subr.mxu0 0.0
        %2410 = vmatpush1.msra.mxu0 0.0
        %2411 = vmatprep.subr.mxu0 0.0
        %2412 = vmatpush1.msra.mxu0 0.0
        %2413 = vmatprep.subr.mxu0 0.0
        %2414 = vmatpush1.msra.mxu0 0.0
        %2415 = vmatprep.subr.mxu0 0.0
        %2416 = vmatpush1.msra.mxu0 0.0
        %2417 = vmatprep.subr.mxu0 0.0
        %2418 = vmatpush1.msra.mxu0 0.0
        %2419 = vmatprep.subr.mxu0 0.0
        %2420 = vmatpush1.msra.mxu0 0.0
        %2421 = vmatprep.mubr.f32.mxu0 0.0
        %2422 = vmatmul.mubr.f32.gmra.mrb[0].mxu0 %v2352
        %v2423 = vpop.f32.mrb[0].mxu0
        %v2424 = vadd.f32 0.0, %v2423
        %v2425 = vpop.f32.mrb[0].mxu0
        %2426 = vmatprep.mubr.f32.mxu0 0.0
        %2427 = vmatmul.mubr.f32.gmra.mrb[0].mxu0 %v2355
        %v2428 = vpop.f32.mrb[0].mxu0
        %v2429 = vadd.f32 0.0, %v2428
        %v2430 = vpop.f32.mrb[0].mxu0
        %2431 = vdwg.mxu0
        %2434 = vrot.lane.b32.xlu0 %v1738, 32
        %v2435 = vpop.permute.xlu0 %2434
        %2436 = vrot.lane.b32.xlu0 %v1743, 32
        %v2437 = vpop.permute.xlu0 %2436
        %2442 = vrot.lane.b32.xlu0 %v1825, 64
        %v2443 = vpop.permute.xlu0 %2442
        %2444 = vrot.lane.b32.xlu0 %v1830, 64
        %v2445 = vpop.permute.xlu0 %2444
        %2450 = vrot.lane.b32.xlu0 %v1912, 96
        %v2451 = vpop.permute.xlu0 %2450
        %2452 = vrot.lane.b32.xlu0 %v1917, 96
        %v2453 = vpop.permute.xlu0 %2452
        %2458 = vrot.lane.b32.xlu0 %v2082, 32
        %v2459 = vpop.permute.xlu0 %2458
        %2460 = vrot.lane.b32.xlu0 %v2087, 32
        %v2461 = vpop.permute.xlu0 %2460
        %2466 = vrot.lane.b32.xlu0 %v2169, 64
        %v2467 = vpop.permute.xlu0 %2466
        %2468 = vrot.lane.b32.xlu0 %v2174, 64
        %v2469 = vpop.permute.xlu0 %2468
        %2474 = vrot.lane.b32.xlu0 %v2256, 96
        %v2475 = vpop.permute.xlu0 %2474
        %2476 = vrot.lane.b32.xlu0 %v2261, 96
        %v2477 = vpop.permute.xlu0 %2476
        %2482 = vrot.lane.b32.xlu0 %v2424, 32
        %v2483 = vpop.permute.xlu0 %2482
        %2484 = vrot.lane.b32.xlu0 %v2429, 32
        %v2485 = vpop.permute.xlu0 %2484
        %v2488 = vsel %vm479, %v1649, %v2435
        %v2489 = vsel %vm479, %v1654, %v2437
        %v2490 = vsel %vm607, %v2488, %v2443
        %v2491 = vsel %vm607, %v2489, %v2445
        %vm2492 = vcmask 785408
        %v2493 = vsel %vm2492, %v2490, %v2451
        %v2494 = vsel %vm2492, %v2491, %v2453
        %v2495 = vsel %vm479, %v1993, %v2459
        %v2496 = vsel %vm479, %v1998, %v2461
        %v2497 = vsel %vm607, %v2495, %v2467
        %v2498 = vsel %vm607, %v2496, %v2469
        %v2499 = vsel %vm2492, %v2497, %v2475
        %v2500 = vsel %vm2492, %v2498, %v2477
        %v2501 = vsel %vm479, %v2337, %v2483
        %v2502 = vsel %vm479, %v2342, %v2485
        %v2503 = vld [vmem:[%s5] sm:$0x7]
        %v2505 = vlaneseq
        %v2506 = vshrl.u32 %v2505, 7
        %v2507 = vsub.s32 0, %v2506
        %v2508 = vrot.slane %v2503, %v2507
        %v2509 = vlaneseq
        %v2510 = vshrl.u32 %v2509, 7
        %v2511 = vsub.s32 1, %v2510
        %v2512 = vrot.slane %v2503, %v2511
        %v2513 = vlaneseq
        %v2514 = vshrl.u32 %v2513, 7
        %v2515 = vsub.s32 2, %v2514
        %v2516 = vrot.slane %v2503, %v2515
        %v2520 = vadd.f32 %v2493, %v2508
        %v2521 = vadd.f32 %v2499, %v2512
        %v2522 = vadd.f32 %v2501, %v2516
        %v2523 = vadd.f32 %v2494, %v2508
        %v2524 = vadd.f32 %v2500, %v2512
        %v2525 = vadd.f32 %v2502, %v2516
        %vm2526 = vcmp.gt.f32.partialorder %v2520, 0.0
        %vm2527 = vcmp.gt.f32.partialorder %v2521, 0.0
        %vm2528 = vcmp.gt.f32.partialorder %v2522, 0.0
        %vm2529 = vcmp.gt.f32.partialorder %v2523, 0.0
        %vm2530 = vcmp.gt.f32.partialorder %v2524, 0.0
        %vm2531 = vcmp.gt.f32.partialorder %v2525, 0.0
        %v2532 = vmin.f32 %v2520, 0.0
        %v2533 = vmin.f32 %v2521, 0.0
        %v2534 = vmin.f32 %v2522, 0.0
        %v2535 = vmin.f32 %v2523, 0.0
        %v2536 = vmin.f32 %v2524, 0.0
        %v2537 = vmin.f32 %v2525, 0.0
        %v2538 = vmul.f32 %v2532, 1.442695
        %v2539 = vpow.pop %v2538
        %v2540 = vmul.f32 %v2533, 1.442695
        %v2541 = vpow.pop %v2540
        %v2542 = vmul.f32 %v2534, 1.442695
        %v2543 = vpow.pop %v2542
        %v2544 = vmul.f32 %v2535, 1.442695
        %v2545 = vpow.pop %v2544
        %v2546 = vmul.f32 %v2536, 1.442695
        %v2547 = vpow.pop %v2546
        %v2548 = vmul.f32 %v2537, 1.442695
        %v2549 = vpow.pop %v2548
        %v2550 = vsub.f32 %v2539, 1.0
        %v2551 = vsub.f32 %v2541, 1.0
        %v2552 = vsub.f32 %v2543, 1.0
        %v2553 = vsub.f32 %v2545, 1.0
        %v2554 = vsub.f32 %v2547, 1.0
        %v2555 = vsub.f32 %v2549, 1.0
        %v2556 = vsel %vm2526, %v2520, %v2550
        %v2557 = vsel %vm2527, %v2521, %v2551
        %v2558 = vsel %vm2528, %v2522, %v2552
        %v2559 = vsel %vm2529, %v2523, %v2553
        %v2560 = vsel %vm2530, %v2524, %v2554
        %v2561 = vsel %vm2531, %v2525, %v2555
        %v2562 = vpack.c.bf16 %v2559, %v2556
        %v2563 = vpack.c.bf16 %v2560, %v2557
        %v2564 = vpack.c.bf16 %v2561, %v2558
        %v2565 = vld [vmem:[%s6] sm:$0xf]
        %v2566 = vld [vmem:[%s6 + $0x4] sm:$0xf]
        %v2567 = vld [vmem:[%s6 + $0x8] sm:$0xf]
        %v2568 = vld [vmem:[%s6 + $0xc] sm:$0xf]
        %v2569 = vld [vmem:[%s6 + $0x10] sm:$0xf]
        %v2570 = vld [vmem:[%s6 + $0x14] sm:$0xf]
        %v2571 = vld [vmem:[%s6 + $0x18] sm:$0xf]
        %v2572 = vld [vmem:[%s6 + $0x1c] sm:$0xf]
        %v2573 = vld [vmem:[%s6 + $0x20] sm:$0xf]
        %v2574 = vld [vmem:[%s6 + $0x24] sm:$0xf]
        %v2575 = vld [vmem:[%s6 + $0x28] sm:$0xf]
        %v2576 = vld [vmem:[%s6 + $0x2c] sm:$0xf]
        %v2577 = vld [vmem:[%s6 + $0x30] sm:$0xf]
        %v2578 = vld [vmem:[%s6 + $0x34] sm:$0xf]
        %v2579 = vld [vmem:[%s6 + $0x38] sm:$0xf]
        %v2580 = vld [vmem:[%s6 + $0x3c] sm:$0xf]
        %v2581 = vld [vmem:[%s6 + $0x40] sm:$0xf]
        %v2582 = vld [vmem:[%s6 + $0x44] sm:$0xf]
        %v2583 = vld [vmem:[%s6 + $0x48] sm:$0xf]
        %v2584 = vld [vmem:[%s6 + $0x4c] sm:$0xf]
        %v2585 = vld [vmem:[%s6 + $0x50] sm:$0xf]
        %v2586 = vld [vmem:[%s6 + $0x54] sm:$0xf]
        %v2587 = vld [vmem:[%s6 + $0x58] sm:$0xf]
        %v2588 = vld [vmem:[%s6 + $0x5c] sm:$0xf]
        %v2589 = vld [vmem:[%s6 + $0x60] sm:$0xf]
        %v2590 = vld [vmem:[%s6 + $0x64] sm:$0xf]
        %v2591 = vld [vmem:[%s6 + $0x68] sm:$0xf]
        %v2592 = vld [vmem:[%s6 + $0x6c] sm:$0xf]
        %v2593 = vld [vmem:[%s6 + $0x70] sm:$0xf]
        %v2594 = vld [vmem:[%s6 + $0x74] sm:$0xf]
        %v2595 = vld [vmem:[%s6 + $0x78] sm:$0xf]
        %v2596 = vld [vmem:[%s6 + $0x7c] sm:$0xf]
        %v2597 = vld [vmem:[%s6 + $0x80] sm:$0xf]
        %v2598 = vld [vmem:[%s6 + $0x84] sm:$0xf]
        %v2599 = vld [vmem:[%s6 + $0x88] sm:$0xf]
        %v2600 = vld [vmem:[%s6 + $0x8c] sm:$0xf]
        %v2601 = vld [vmem:[%s6 + $0x90] sm:$0xf]
        %v2602 = vld [vmem:[%s6 + $0x94] sm:$0xf]
        %v2603 = vld [vmem:[%s6 + $0x98] sm:$0xf]
        %v2604 = vld [vmem:[%s6 + $0x9c] sm:$0xf]
        %v2645 = vunpack.c.l.b16 %v2565
        %v2646 = vunpack.c.l.b16 %v2566
        %v2647 = vunpack.c.l.b16 %v2567
        %v2648 = vunpack.c.l.b16 %v2568
        %v2649 = vunpack.c.l.b16 %v2569
        %v2650 = vunpack.c.l.b16 %v2570
        %v2651 = vunpack.c.l.b16 %v2571
        %v2652 = vunpack.c.l.b16 %v2572
        %v2653 = vunpack.c.l.b16 %v2573
        %v2654 = vunpack.c.l.b16 %v2574
        %v2655 = vunpack.c.l.b16 %v2575
        %v2656 = vunpack.c.l.b16 %v2576
        %v2657 = vunpack.c.l.b16 %v2577
        %v2658 = vunpack.c.l.b16 %v2578
        %v2659 = vunpack.c.l.b16 %v2579
        %v2660 = vunpack.c.l.b16 %v2580
        %v2661 = vunpack.c.l.b16 %v2581
        %v2662 = vunpack.c.l.b16 %v2582
        %v2663 = vunpack.c.l.b16 %v2583
        %v2664 = vunpack.c.l.b16 %v2584
        %v2665 = vunpack.c.l.b16 %v2585
        %v2666 = vunpack.c.l.b16 %v2586
        %v2667 = vunpack.c.l.b16 %v2587
        %v2668 = vunpack.c.l.b16 %v2588
        %v2669 = vunpack.c.l.b16 %v2589
        %v2670 = vunpack.c.l.b16 %v2590
        %v2671 = vunpack.c.l.b16 %v2591
        %v2672 = vunpack.c.l.b16 %v2592
        %v2673 = vunpack.c.l.b16 %v2593
        %v2674 = vunpack.c.l.b16 %v2594
        %v2675 = vunpack.c.l.b16 %v2595
        %v2676 = vunpack.c.l.b16 %v2596
        %v2677 = vunpack.c.l.b16 %v2597
        %v2678 = vunpack.c.l.b16 %v2598
        %v2679 = vunpack.c.l.b16 %v2599
        %v2680 = vunpack.c.l.b16 %v2600
        %v2681 = vunpack.c.l.b16 %v2601
        %v2682 = vunpack.c.l.b16 %v2602
        %v2683 = vunpack.c.l.b16 %v2603
        %v2684 = vunpack.c.l.b16 %v2604
        %v2685 = vpack.c.b16 %v2646, %v2645
        %v2686 = vpack.c.b16 %v2648, %v2647
        %v2687 = vpack.c.b16 %v2650, %v2649
        %v2688 = vpack.c.b16 %v2652, %v2651
        %v2689 = vpack.c.b16 %v2654, %v2653
        %v2690 = vpack.c.b16 %v2656, %v2655
        %v2691 = vpack.c.b16 %v2658, %v2657
        %v2692 = vpack.c.b16 %v2660, %v2659
        %v2693 = vpack.c.b16 %v2662, %v2661
        %v2694 = vpack.c.b16 %v2664, %v2663
        %v2695 = vpack.c.b16 %v2666, %v2665
        %v2696 = vpack.c.b16 %v2668, %v2667
        %v2697 = vpack.c.b16 %v2670, %v2669
        %v2698 = vpack.c.b16 %v2672, %v2671
        %v2699 = vpack.c.b16 %v2674, %v2673
        %v2700 = vpack.c.b16 %v2676, %v2675
        %v2701 = vpack.c.b16 %v2678, %v2677
        %v2702 = vpack.c.b16 %v2680, %v2679
        %v2703 = vpack.c.b16 %v2682, %v2681
        %v2704 = vpack.c.b16 %v2684, %v2683
        %v2726 = vsel %vm607, %v2564, 0
        %2728 = vmatprep.subr.bf16.mxu0 0
        %2729 = vmatpush1.bf16.msra.mxu0 %v2685
        %2730 = vmatprep.subr.bf16.mxu0 0
        %2731 = vmatpush1.bf16.msra.mxu0 %v2686
        %2732 = vmatprep.subr.bf16.mxu0 0
        %2733 = vmatpush1.bf16.msra.mxu0 %v2687
        %2734 = vmatprep.subr.bf16.mxu0 0
        %2735 = vmatpush1.bf16.msra.mxu0 %v2688
        %2736 = vmatprep.subr.bf16.mxu0 0
        %2737 = vmatpush1.bf16.msra.mxu0 %v2689
        %2738 = vmatprep.subr.bf16.mxu0 0
        %2739 = vmatpush1.bf16.msra.mxu0 %v2690
        %2740 = vmatprep.subr.bf16.mxu0 0
        %2741 = vmatpush1.bf16.msra.mxu0 %v2691
        %2742 = vmatprep.subr.bf16.mxu0 0
        %2743 = vmatpush1.bf16.msra.mxu0 %v2692
        %2744 = vmatprep.subr.bf16.mxu0 0
        %2745 = vmatpush1.bf16.msra.mxu0 %v2693
        %2746 = vmatprep.subr.bf16.mxu0 0
        %2747 = vmatpush1.bf16.msra.mxu0 %v2694
        %2748 = vmatprep.subr.bf16.mxu0 0
        %2749 = vmatpush1.bf16.msra.mxu0 %v2695
        %2750 = vmatprep.subr.bf16.mxu0 0
        %2751 = vmatpush1.bf16.msra.mxu0 %v2696
        %2752 = vmatprep.subr.bf16.mxu0 0
        %2753 = vmatpush1.bf16.msra.mxu0 %v2697
        %2754 = vmatprep.subr.bf16.mxu0 0
        %2755 = vmatpush1.bf16.msra.mxu0 %v2698
        %2756 = vmatprep.subr.bf16.mxu0 0
        %2757 = vmatpush1.bf16.msra.mxu0 %v2699
        %2758 = vmatprep.subr.bf16.mxu0 0
        %2759 = vmatpush1.bf16.msra.mxu0 %v2700
        %2760 = vmatprep.mubr.bf16.mxu0 %v2563
        %2761 = vmatmul.mubr.bf16.gmra.mrb[0].mxu0 %v2562
        %v2762 = vpop.f32.mrb[0].mxu0
        %v2763 = vadd.f32 0.0, %v2762
        %v2764 = vpop.f32.mrb[0].mxu0
        %v2765 = vpop.f32.mrb[0].mxu0
        %v2766 = vadd.f32 0.0, %v2765
        %v2767 = vpop.f32.mrb[0].mxu0
        %2768 = vdwg.mxu0
        %2769 = vmatprep.subr.bf16.mxu0 0
        %2770 = vmatpush1.bf16.msra.mxu0 %v2701
        %2771 = vmatprep.subr.bf16.mxu0 0
        %2772 = vmatpush1.bf16.msra.mxu0 %v2702
        %2773 = vmatprep.subr.bf16.mxu0 0
        %2774 = vmatpush1.bf16.msra.mxu0 %v2703
        %2775 = vmatprep.subr.bf16.mxu0 0
        %2776 = vmatpush1.bf16.msra.mxu0 %v2704
        %2777 = vmatprep.subr.bf16.mxu0 0
        %2778 = vmatpush1.bf16.msra.mxu0 0
        %2779 = vmatprep.subr.bf16.mxu0 0
        %2780 = vmatpush1.bf16.msra.mxu0 0
        %2781 = vmatprep.subr.bf16.mxu0 0
        %2782 = vmatpush1.bf16.msra.mxu0 0
        %2783 = vmatprep.subr.bf16.mxu0 0
        %2784 = vmatpush1.bf16.msra.mxu0 0
        %2785 = vmatprep.subr.bf16.mxu0 0
        %2786 = vmatpush1.bf16.msra.mxu0 0
        %2787 = vmatprep.subr.bf16.mxu0 0
        %2788 = vmatpush1.bf16.msra.mxu0 0
        %2789 = vmatprep.subr.bf16.mxu0 0
        %2790 = vmatpush1.bf16.msra.mxu0 0
        %2791 = vmatprep.subr.bf16.mxu0 0
        %2792 = vmatpush1.bf16.msra.mxu0 0
        %2793 = vmatprep.subr.bf16.mxu0 0
        %2794 = vmatpush1.bf16.msra.mxu0 0
        %2795 = vmatprep.subr.bf16.mxu0 0
        %2796 = vmatpush1.bf16.msra.mxu0 0
        %2797 = vmatprep.subr.bf16.mxu0 0
        %2798 = vmatpush1.bf16.msra.mxu0 0
        %2799 = vmatprep.subr.bf16.mxu0 0
        %2800 = vmatpush1.bf16.msra.mxu0 0
        %2801 = vmatprep.mubr.bf16.mxu0 0
        %2802 = vmatmul.mubr.bf16.gmra.mrb[0].mxu0 %v2726
        %v2803 = vpop.f32.mrb[0].mxu0
        %v2804 = vadd.f32 %v2763, %v2803
        %v2805 = vpop.f32.mrb[0].mxu0
        %v2806 = vpop.f32.mrb[0].mxu0
        %v2807 = vadd.f32 %v2766, %v2806
        %v2808 = vpop.f32.mrb[0].mxu0
        %2809 = vdwg.mxu0
        %v2810 = vld [vmem:[%s8] sm:$0xff]
        %v2811 = vld [vmem:[%s8 + $0x8] sm:$0xff]
        %v2812 = vld [vmem:[%s8 + $0x10] sm:$0xff]
        %v2813 = vld [vmem:[%s8 + $0x18] sm:$0xff]
        %v2814 = vld [vmem:[%s8 + $0x20] sm:$0xff]
        %v2815 = vld [vmem:[%s8 + $0x28] sm:$0xff]
        %v2816 = vld [vmem:[%s8 + $0x30] sm:$0xff]
        %v2817 = vld [vmem:[%s8 + $0x38] sm:$0xff]
        %v2818 = vld [vmem:[%s8 + $0x40] sm:$0xff]
        %v2819 = vld [vmem:[%s8 + $0x48] sm:$0xff]
        %v2820 = vld [vmem:[%s8 + $0x50] sm:$0xff]
        %v2821 = vld [vmem:[%s8 + $0x58] sm:$0xff]
        %v2822 = vld [vmem:[%s8 + $0x60] sm:$0xff]
        %v2823 = vld [vmem:[%s8 + $0x68] sm:$0xff]
        %v2824 = vld [vmem:[%s8 + $0x70] sm:$0xff]
        %v2825 = vld [vmem:[%s8 + $0x78] sm:$0xff]
        %2826 = vmatprep.subr.mxu0 0.0
        %2827 = vmatpush1.msra.mxu0 %v2810
        %2828 = vmatprep.subr.mxu0 0.0
        %2829 = vmatpush1.msra.mxu0 %v2811
        %2830 = vmatprep.subr.mxu0 0.0
        %2831 = vmatpush1.msra.mxu0 %v2812
        %2832 = vmatprep.subr.mxu0 0.0
        %2833 = vmatpush1.msra.mxu0 %v2813
        %2834 = vmatprep.subr.mxu0 0.0
        %2835 = vmatpush1.msra.mxu0 %v2814
        %2836 = vmatprep.subr.mxu0 0.0
        %2837 = vmatpush1.msra.mxu0 %v2815
        %2838 = vmatprep.subr.mxu0 0.0
        %2839 = vmatpush1.msra.mxu0 %v2816
        %2840 = vmatprep.subr.mxu0 0.0
        %2841 = vmatpush1.msra.mxu0 %v2817
        %2842 = vmatprep.subr.mxu0 0.0
        %2843 = vmatpush1.msra.mxu0 %v2818
        %2844 = vmatprep.subr.mxu0 0.0
        %2845 = vmatpush1.msra.mxu0 %v2819
        %2846 = vmatprep.subr.mxu0 0.0
        %2847 = vmatpush1.msra.mxu0 %v2820
        %2848 = vmatprep.subr.mxu0 0.0
        %2849 = vmatpush1.msra.mxu0 %v2821
        %2850 = vmatprep.subr.mxu0 0.0
        %2851 = vmatpush1.msra.mxu0 %v2822
        %2852 = vmatprep.subr.mxu0 0.0
        %2853 = vmatpush1.msra.mxu0 %v2823
        %2854 = vmatprep.subr.mxu0 0.0
        %2855 = vmatpush1.msra.mxu0 %v2824
        %2856 = vmatprep.subr.mxu0 0.0
        %2857 = vmatpush1.msra.mxu0 %v2825
        %2858 = vmatprep.subr.mxu0 0.0
        %2859 = vmatpush1.msra.mxu0 0.0
        %2860 = vmatprep.subr.mxu0 0.0
        %2861 = vmatpush1.msra.mxu0 0.0
        %2862 = vmatprep.subr.mxu0 0.0
        %2863 = vmatpush1.msra.mxu0 0.0
        %2864 = vmatprep.subr.mxu0 0.0
        %2865 = vmatpush1.msra.mxu0 0.0
        %2866 = vmatprep.subr.mxu0 0.0
        %2867 = vmatpush1.msra.mxu0 0.0
        %2868 = vmatprep.subr.mxu0 0.0
        %2869 = vmatpush1.msra.mxu0 0.0
        %2870 = vmatprep.subr.mxu0 0.0
        %2871 = vmatpush1.msra.mxu0 0.0
        %2872 = vmatprep.subr.mxu0 0.0
        %2873 = vmatpush1.msra.mxu0 0.0
        %2874 = vmatprep.subr.mxu0 0.0
        %2875 = vmatpush1.msra.mxu0 0.0
        %2876 = vmatprep.subr.mxu0 0.0
        %2877 = vmatpush1.msra.mxu0 0.0
        %2878 = vmatprep.subr.mxu0 0.0
        %2879 = vmatpush1.msra.mxu0 0.0
        %2880 = vmatprep.subr.mxu0 0.0
        %2881 = vmatpush1.msra.mxu0 0.0
        %2882 = vmatprep.subr.mxu0 0.0
        %2883 = vmatpush1.msra.mxu0 0.0
        %2884 = vmatprep.subr.mxu0 0.0
        %2885 = vmatpush1.msra.mxu0 0.0
        %2886 = vmatprep.subr.mxu0 0.0
        %2887 = vmatpush1.msra.mxu0 0.0
        %2888 = vmatprep.subr.mxu0 0.0
        %2889 = vmatpush1.msra.mxu0 0.0
        %2890 = vmatprep.mubr.f32.mxu0 0.0
        %2891 = vmatmul.mubr.f32.gmra.mrb[0].mxu0 %v2804
        %v2892 = vpop.f32.mrb[0].mxu0
        %v2893 = vadd.f32 0.0, %v2892
        %v2894 = vpop.f32.mrb[0].mxu0
        %2895 = vmatprep.mubr.f32.mxu0 0.0
        %2896 = vmatmul.mubr.f32.gmra.mrb[0].mxu0 %v2807
        %v2897 = vpop.f32.mrb[0].mxu0
        %v2898 = vadd.f32 0.0, %v2897
        %v2899 = vpop.f32.mrb[0].mxu0
        %2900 = vdwg.mxu0
        %v2901 = vld [vmem:[%s7] sm:$0xff]
        %v2902 = vld [vmem:[%s7 + $0x8] sm:$0xff]
        %v2903 = vld [vmem:[%s7 + $0x10] sm:$0xff]
        %v2904 = vld [vmem:[%s7 + $0x18] sm:$0xff]
        %v2905 = vld [vmem:[%s7 + $0x20] sm:$0xff]
        %v2906 = vld [vmem:[%s7 + $0x28] sm:$0xff]
        %v2907 = vld [vmem:[%s7 + $0x30] sm:$0xff]
        %v2908 = vld [vmem:[%s7 + $0x38] sm:$0xff]
        %v2909 = vld [vmem:[%s7 + $0x40] sm:$0xff]
        %v2910 = vld [vmem:[%s7 + $0x48] sm:$0xff]
        %v2911 = vld [vmem:[%s7 + $0x50] sm:$0xff]
        %v2912 = vld [vmem:[%s7 + $0x58] sm:$0xff]
        %v2913 = vld [vmem:[%s7 + $0x60] sm:$0xff]
        %v2914 = vld [vmem:[%s7 + $0x68] sm:$0xff]
        %v2915 = vld [vmem:[%s7 + $0x70] sm:$0xff]
        %v2916 = vld [vmem:[%s7 + $0x78] sm:$0xff]
        %2917 = vmatprep.subr.mxu0 0.0
        %2918 = vmatpush1.msra.mxu0 %v2901
        %2919 = vmatprep.subr.mxu0 0.0
        %2920 = vmatpush1.msra.mxu0 %v2902
        %2921 = vmatprep.subr.mxu0 0.0
        %2922 = vmatpush1.msra.mxu0 %v2903
        %2923 = vmatprep.subr.mxu0 0.0
        %2924 = vmatpush1.msra.mxu0 %v2904
        %2925 = vmatprep.subr.mxu0 0.0
        %2926 = vmatpush1.msra.mxu0 %v2905
        %2927 = vmatprep.subr.mxu0 0.0
        %2928 = vmatpush1.msra.mxu0 %v2906
        %2929 = vmatprep.subr.mxu0 0.0
        %2930 = vmatpush1.msra.mxu0 %v2907
        %2931 = vmatprep.subr.mxu0 0.0
        %2932 = vmatpush1.msra.mxu0 %v2908
        %2933 = vmatprep.subr.mxu0 0.0
        %2934 = vmatpush1.msra.mxu0 %v2909
        %2935 = vmatprep.subr.mxu0 0.0
        %2936 = vmatpush1.msra.mxu0 %v2910
        %2937 = vmatprep.subr.mxu0 0.0
        %2938 = vmatpush1.msra.mxu0 %v2911
        %2939 = vmatprep.subr.mxu0 0.0
        %2940 = vmatpush1.msra.mxu0 %v2912
        %2941 = vmatprep.subr.mxu0 0.0
        %2942 = vmatpush1.msra.mxu0 %v2913
        %2943 = vmatprep.subr.mxu0 0.0
        %2944 = vmatpush1.msra.mxu0 %v2914
        %2945 = vmatprep.subr.mxu0 0.0
        %2946 = vmatpush1.msra.mxu0 %v2915
        %2947 = vmatprep.subr.mxu0 0.0
        %2948 = vmatpush1.msra.mxu0 %v2916
        %2949 = vmatprep.subr.mxu0 0.0
        %2950 = vmatpush1.msra.mxu0 0.0
        %2951 = vmatprep.subr.mxu0 0.0
        %2952 = vmatpush1.msra.mxu0 0.0
        %2953 = vmatprep.subr.mxu0 0.0
        %2954 = vmatpush1.msra.mxu0 0.0
        %2955 = vmatprep.subr.mxu0 0.0
        %2956 = vmatpush1.msra.mxu0 0.0
        %2957 = vmatprep.subr.mxu0 0.0
        %2958 = vmatpush1.msra.mxu0 0.0
        %2959 = vmatprep.subr.mxu0 0.0
        %2960 = vmatpush1.msra.mxu0 0.0
        %2961 = vmatprep.subr.mxu0 0.0
        %2962 = vmatpush1.msra.mxu0 0.0
        %2963 = vmatprep.subr.mxu0 0.0
        %2964 = vmatpush1.msra.mxu0 0.0
        %2965 = vmatprep.subr.mxu0 0.0
        %2966 = vmatpush1.msra.mxu0 0.0
        %2967 = vmatprep.subr.mxu0 0.0
        %2968 = vmatpush1.msra.mxu0 0.0
        %2969 = vmatprep.subr.mxu0 0.0
        %2970 = vmatpush1.msra.mxu0 0.0
        %2971 = vmatprep.subr.mxu0 0.0
        %2972 = vmatpush1.msra.mxu0 0.0
        %2973 = vmatprep.subr.mxu0 0.0
        %2974 = vmatpush1.msra.mxu0 0.0
        %2975 = vmatprep.subr.mxu0 0.0
        %2976 = vmatpush1.msra.mxu0 0.0
        %2977 = vmatprep.subr.mxu0 0.0
        %2978 = vmatpush1.msra.mxu0 0.0
        %2979 = vmatprep.subr.mxu0 0.0
        %2980 = vmatpush1.msra.mxu0 0.0
        %2981 = vmatprep.mubr.f32.mxu0 0.0
        %2982 = vmatmul.mubr.f32.gmra.mrb[0].mxu0 %v2804
        %v2983 = vpop.f32.mrb[0].mxu0
        %v2984 = vadd.f32 0.0, %v2983
        %v2985 = vpop.f32.mrb[0].mxu0
        %2986 = vmatprep.mubr.f32.mxu0 0.0
        %2987 = vmatmul.mubr.f32.gmra.mrb[0].mxu0 %v2807
        %v2988 = vpop.f32.mrb[0].mxu0
        %v2989 = vadd.f32 0.0, %v2988
        %v2990 = vpop.f32.mrb[0].mxu0
        %2991 = vdwg.mxu0
        %2992 = vxpose.xlu0.b32.start [1/16] %v2893, 128
        %2993 = vxpose.xlu0.b32.cont [2/16] %v2898, 128
        %2994 = vxpose.xlu0.b32.cont [3/16] 0.0, 128
        %2995 = vxpose.xlu0.b32.cont [4/16] 0.0, 128
        %2996 = vxpose.xlu0.b32.cont [5/16] 0.0, 128
        %2997 = vxpose.xlu0.b32.cont [6/16] 0.0, 128
        %2998 = vxpose.xlu0.b32.cont [7/16] 0.0, 128
        %2999 = vxpose.xlu0.b32.cont [8/16] 0.0, 128
        %3000 = vxpose.xlu0.b32.cont [9/16] 0.0, 128
        %3001 = vxpose.xlu0.b32.cont [10/16] 0.0, 128
        %3002 = vxpose.xlu0.b32.cont [11/16] 0.0, 128
        %3003 = vxpose.xlu0.b32.cont [12/16] 0.0, 128
        %3004 = vxpose.xlu0.b32.cont [13/16] 0.0, 128
        %3005 = vxpose.xlu0.b32.cont [14/16] 0.0, 128
        %3006 = vxpose.xlu0.b32.cont [15/16] 0.0, 128
        %3007 = vxpose.xlu0.b32.end [16/16] 0.0, 128
        %v3008 = vpop.trf.xlu0
        %v3009 = vpop.trf.xlu0
        %v3010 = vpop.trf.xlu0
        %v3011 = vpop.trf.xlu0
        %v3012 = vpop.trf.xlu0
        %v3013 = vpop.trf.xlu0
        %v3014 = vpop.trf.xlu0
        %v3015 = vpop.trf.xlu0
        %v3016 = vpop.trf.xlu0
        %v3017 = vpop.trf.xlu0
        %v3018 = vpop.trf.xlu0
        %v3019 = vpop.trf.xlu0
        %v3020 = vpop.trf.xlu0
        %v3021 = vpop.trf.xlu0
        %v3022 = vpop.trf.xlu0
        %v3023 = vpop.trf.xlu0
        %v3024 = vlaneseq
        %v3025 = vshrl.u32 %v3024, 7
        %v3026 = vsub.s32 0, %v3025
        %v3027 = vrot.slane %v3008, %v3026
        %3029 = vbcast.lane.b32.xlu0 %v3027, 256
        %v3030 = vpop.permute.xlu0 %3029
        %s3032 = sor.u32 256, 8
        %3033 = vbcast.lane.b32.xlu0 %v3027, %s3032
        %v3034 = vpop.permute.xlu0 %3033
        %3035 = vxpose.xlu0.b32.start [1/16] %v2984, 128
        %3036 = vxpose.xlu0.b32.cont [2/16] %v2989, 128
        %3037 = vxpose.xlu0.b32.cont [3/16] 0.0, 128
        %3038 = vxpose.xlu0.b32.cont [4/16] 0.0, 128
        %3039 = vxpose.xlu0.b32.cont [5/16] 0.0, 128
        %3040 = vxpose.xlu0.b32.cont [6/16] 0.0, 128
        %3041 = vxpose.xlu0.b32.cont [7/16] 0.0, 128
        %3042 = vxpose.xlu0.b32.cont [8/16] 0.0, 128
        %3043 = vxpose.xlu0.b32.cont [9/16] 0.0, 128
        %3044 = vxpose.xlu0.b32.cont [10/16] 0.0, 128
        %3045 = vxpose.xlu0.b32.cont [11/16] 0.0, 128
        %3046 = vxpose.xlu0.b32.cont [12/16] 0.0, 128
        %3047 = vxpose.xlu0.b32.cont [13/16] 0.0, 128
        %3048 = vxpose.xlu0.b32.cont [14/16] 0.0, 128
        %3049 = vxpose.xlu0.b32.cont [15/16] 0.0, 128
        %3050 = vxpose.xlu0.b32.end [16/16] 0.0, 128
        %v3051 = vpop.trf.xlu0
        %v3052 = vpop.trf.xlu0
        %v3053 = vpop.trf.xlu0
        %v3054 = vpop.trf.xlu0
        %v3055 = vpop.trf.xlu0
        %v3056 = vpop.trf.xlu0
        %v3057 = vpop.trf.xlu0
        %v3058 = vpop.trf.xlu0
        %v3059 = vpop.trf.xlu0
        %v3060 = vpop.trf.xlu0
        %v3061 = vpop.trf.xlu0
        %v3062 = vpop.trf.xlu0
        %v3063 = vpop.trf.xlu0
        %v3064 = vpop.trf.xlu0
        %v3065 = vpop.trf.xlu0
        %v3066 = vpop.trf.xlu0
        %v3067 = vlaneseq
        %v3068 = vshrl.u32 %v3067, 7
        %v3069 = vsub.s32 0, %v3068
        %v3070 = vrot.slane %v3051, %v3069
        %v3071 = vadd.f32 %v3030, %v3070
        %v3072 = vadd.f32 %v3034, %v3070
        %vm3073 = vcmp.gt.f32.partialorder %v3071, 0.0
        %vm3074 = vcmp.gt.f32.partialorder %v3072, 0.0
        %v3075 = vmul.f32 %v3071, 0.2
        %v3076 = vmul.f32 %v3072, 0.2
        %v3077 = vsel %vm3073, %v3071, %v3075
        %v3078 = vsel %vm3074, %v3072, %v3076
        %v3079 = vsel %vm436, %v3077, -1e+30
        %v3080 = vsel %vm437, %v3078, -1e+30
        %v3081 = vsel %vm1355, %v3079, -inf
        %3082 = vmax.xlane.f32.xlu0 %v3081
        %v3083 = vpop.xlane.xlu0 %3082
        %v3084 = vsel %vm1355, %v3080, -inf
        %3085 = vmax.xlane.f32.xlu0 %v3084
        %v3086 = vpop.xlane.xlu0 %3085
        %v3087 = vsub.f32 %v3079, %v3083
        %v3088 = vsub.f32 %v3080, %v3086
        %v3089 = vmul.f32 %v3087, 1.442695
        %v3090 = vpow.pop %v3089
        %v3091 = vmul.f32 %v3088, 1.442695
        %v3092 = vpow.pop %v3091
        %v3093 = vsel %vm1355, %v3090, 0.0
        %3094 = vadd.xlane.f32.xlu0 %v3093
        %v3095 = vpop.xlane.xlu0 %3094
        %v3096 = vsel %vm1355, %v3092, 0.0
        %3097 = vadd.xlane.f32.xlu0 %v3096
        %v3098 = vpop.xlane.xlu0 %3097
        %v3099 = vrcp.pop %v3095
        %v3100 = vmul.f32 %v3090, %v3099
        %v3101 = vrcp.pop %v3098
        %v3102 = vmul.f32 %v3092, %v3101
        %v3103 = vld [vmem:[%s9] sm:$0x1]
        %v3105 = vlaneseq
        %v3106 = vshrl.u32 %v3105, 7
        %v3107 = vsub.s32 0, %v3106
        %v3108 = vrot.slane %v3103, %v3107
        %v3111 = vsel %vm1355, %v3100, 0
        %v3114 = vsel %vm1355, %v3102, 0
        %3116 = vmatprep.subr.mxu0 0.0
        %3117 = vmatpush1.msra.mxu0 %v2804
        %3118 = vmatprep.subr.mxu0 0.0
        %3119 = vmatpush1.msra.mxu0 %v2807
        %3120 = vmatprep.subr.mxu0 0.0
        %3121 = vmatpush1.msra.mxu0 0.0
        %3122 = vmatprep.subr.mxu0 0.0
        %3123 = vmatpush1.msra.mxu0 0.0
        %3124 = vmatprep.subr.mxu0 0.0
        %3125 = vmatpush1.msra.mxu0 0.0
        %3126 = vmatprep.subr.mxu0 0.0
        %3127 = vmatpush1.msra.mxu0 0.0
        %3128 = vmatprep.subr.mxu0 0.0
        %3129 = vmatpush1.msra.mxu0 0.0
        %3130 = vmatprep.subr.mxu0 0.0
        %3131 = vmatpush1.msra.mxu0 0.0
        %3132 = vmatprep.subr.mxu0 0.0
        %3133 = vmatpush1.msra.mxu0 0.0
        %3134 = vmatprep.subr.mxu0 0.0
        %3135 = vmatpush1.msra.mxu0 0.0
        %3136 = vmatprep.subr.mxu0 0.0
        %3137 = vmatpush1.msra.mxu0 0.0
        %3138 = vmatprep.subr.mxu0 0.0
        %3139 = vmatpush1.msra.mxu0 0.0
        %3140 = vmatprep.subr.mxu0 0.0
        %3141 = vmatpush1.msra.mxu0 0.0
        %3142 = vmatprep.subr.mxu0 0.0
        %3143 = vmatpush1.msra.mxu0 0.0
        %3144 = vmatprep.subr.mxu0 0.0
        %3145 = vmatpush1.msra.mxu0 0.0
        %3146 = vmatprep.subr.mxu0 0.0
        %3147 = vmatpush1.msra.mxu0 0.0
        %3148 = vmatprep.subr.mxu0 0.0
        %3149 = vmatpush1.msra.mxu0 0.0
        %3150 = vmatprep.subr.mxu0 0.0
        %3151 = vmatpush1.msra.mxu0 0.0
        %3152 = vmatprep.subr.mxu0 0.0
        %3153 = vmatpush1.msra.mxu0 0.0
        %3154 = vmatprep.subr.mxu0 0.0
        %3155 = vmatpush1.msra.mxu0 0.0
        %3156 = vmatprep.subr.mxu0 0.0
        %3157 = vmatpush1.msra.mxu0 0.0
        %3158 = vmatprep.subr.mxu0 0.0
        %3159 = vmatpush1.msra.mxu0 0.0
        %3160 = vmatprep.subr.mxu0 0.0
        %3161 = vmatpush1.msra.mxu0 0.0
        %3162 = vmatprep.subr.mxu0 0.0
        %3163 = vmatpush1.msra.mxu0 0.0
        %3164 = vmatprep.subr.mxu0 0.0
        %3165 = vmatpush1.msra.mxu0 0.0
        %3166 = vmatprep.subr.mxu0 0.0
        %3167 = vmatpush1.msra.mxu0 0.0
        %3168 = vmatprep.subr.mxu0 0.0
        %3169 = vmatpush1.msra.mxu0 0.0
        %3170 = vmatprep.subr.mxu0 0.0
        %3171 = vmatpush1.msra.mxu0 0.0
        %3172 = vmatprep.subr.mxu0 0.0
        %3173 = vmatpush1.msra.mxu0 0.0
        %3174 = vmatprep.subr.mxu0 0.0
        %3175 = vmatpush1.msra.mxu0 0.0
        %3176 = vmatprep.subr.mxu0 0.0
        %3177 = vmatpush1.msra.mxu0 0.0
        %3178 = vmatprep.subr.mxu0 0.0
        %3179 = vmatpush1.msra.mxu0 0.0
        %3180 = vmatprep.mubr.f32.mxu0 0.0
        %3181 = vmatmul.mubr.f32.gmra.mrb[0].mxu0 %v3111
        %v3182 = vpop.f32.mrb[0].mxu0
        %v3183 = vadd.f32 %v3108, %v3182
        %v3184 = vpop.f32.mrb[0].mxu0
        %3185 = vmatprep.mubr.f32.mxu0 0.0
        %3186 = vmatmul.mubr.f32.gmra.mrb[0].mxu0 %v3114
        %v3187 = vpop.f32.mrb[0].mxu0
        %v3188 = vadd.f32 %v3108, %v3187
        %v3189 = vpop.f32.mrb[0].mxu0
        %3190 = vdwg.mxu0
        %v3191 = vmax.f32 %v3183, 0.0
        %v3192 = vmax.f32 %v3188, 0.0
        %v3193 = vmax.f32 %v3191, %v3192
        %v3194 = vrot.slane %v3193, 4
        %v3195 = vmax.f32 %v3193, %v3194
        %v3196 = vrot.slane %v3195, 2
        %v3197 = vmax.f32 %v3195, %v3196
        %v3198 = vrot.slane %v3197, 1
        %v3199 = vmax.f32 %v3197, %v3198
        %v3200 = vpack.c.bf16 %v3199, %v3199
        %v3201 = vld [vmem:[%s10] sm:$0xf]
        %v3202 = vld [vmem:[%s10 + $0x4] sm:$0xf]
        %v3203 = vld [vmem:[%s10 + $0x8] sm:$0xf]
        %v3204 = vld [vmem:[%s10 + $0xc] sm:$0xf]
        %v3205 = vld [vmem:[%s10 + $0x10] sm:$0xf]
        %v3206 = vld [vmem:[%s10 + $0x14] sm:$0xf]
        %v3207 = vld [vmem:[%s10 + $0x18] sm:$0xf]
        %v3208 = vld [vmem:[%s10 + $0x1c] sm:$0xf]
        %v3209 = vld [vmem:[%s10 + $0x20] sm:$0xf]
        %v3210 = vld [vmem:[%s10 + $0x24] sm:$0xf]
        %v3211 = vld [vmem:[%s10 + $0x28] sm:$0xf]
        %v3212 = vld [vmem:[%s10 + $0x2c] sm:$0xf]
        %v3213 = vld [vmem:[%s10 + $0x30] sm:$0xf]
        %v3214 = vld [vmem:[%s10 + $0x34] sm:$0xf]
        %v3215 = vld [vmem:[%s10 + $0x38] sm:$0xf]
        %v3216 = vld [vmem:[%s10 + $0x3c] sm:$0xf]
        %v3217 = vld [vmem:[%s11] sm:$0x1]
        %v3234 = vunpack.c.l.b16 %v3201
        %v3235 = vunpack.c.l.b16 %v3202
        %v3236 = vunpack.c.l.b16 %v3203
        %v3237 = vunpack.c.l.b16 %v3204
        %v3238 = vunpack.c.l.b16 %v3205
        %v3239 = vunpack.c.l.b16 %v3206
        %v3240 = vunpack.c.l.b16 %v3207
        %v3241 = vunpack.c.l.b16 %v3208
        %v3242 = vunpack.c.l.b16 %v3209
        %v3243 = vunpack.c.l.b16 %v3210
        %v3244 = vunpack.c.l.b16 %v3211
        %v3245 = vunpack.c.l.b16 %v3212
        %v3246 = vunpack.c.l.b16 %v3213
        %v3247 = vunpack.c.l.b16 %v3214
        %v3248 = vunpack.c.l.b16 %v3215
        %v3249 = vunpack.c.l.b16 %v3216
        %v3250 = vpack.c.b16 %v3235, %v3234
        %v3251 = vpack.c.b16 %v3237, %v3236
        %v3252 = vpack.c.b16 %v3239, %v3238
        %v3253 = vpack.c.b16 %v3241, %v3240
        %v3254 = vpack.c.b16 %v3243, %v3242
        %v3255 = vpack.c.b16 %v3245, %v3244
        %v3256 = vpack.c.b16 %v3247, %v3246
        %v3257 = vpack.c.b16 %v3249, %v3248
        %3266 = vmatprep.subr.bf16.mxu0 0
        %3267 = vmatpush1.bf16.msra.mxu0 %v3250
        %3268 = vmatprep.subr.bf16.mxu0 0
        %3269 = vmatpush1.bf16.msra.mxu0 %v3251
        %3270 = vmatprep.subr.bf16.mxu0 0
        %3271 = vmatpush1.bf16.msra.mxu0 %v3252
        %3272 = vmatprep.subr.bf16.mxu0 0
        %3273 = vmatpush1.bf16.msra.mxu0 %v3253
        %3274 = vmatprep.subr.bf16.mxu0 0
        %3275 = vmatpush1.bf16.msra.mxu0 %v3254
        %3276 = vmatprep.subr.bf16.mxu0 0
        %3277 = vmatpush1.bf16.msra.mxu0 %v3255
        %3278 = vmatprep.subr.bf16.mxu0 0
        %3279 = vmatpush1.bf16.msra.mxu0 %v3256
        %3280 = vmatprep.subr.bf16.mxu0 0
        %3281 = vmatpush1.bf16.msra.mxu0 %v3257
        %3282 = vmatprep.subr.bf16.mxu0 0
        %3283 = vmatpush1.bf16.msra.mxu0 0
        %3284 = vmatprep.subr.bf16.mxu0 0
        %3285 = vmatpush1.bf16.msra.mxu0 0
        %3286 = vmatprep.subr.bf16.mxu0 0
        %3287 = vmatpush1.bf16.msra.mxu0 0
        %3288 = vmatprep.subr.bf16.mxu0 0
        %3289 = vmatpush1.bf16.msra.mxu0 0
        %3290 = vmatprep.subr.bf16.mxu0 0
        %3291 = vmatpush1.bf16.msra.mxu0 0
        %3292 = vmatprep.subr.bf16.mxu0 0
        %3293 = vmatpush1.bf16.msra.mxu0 0
        %3294 = vmatprep.subr.bf16.mxu0 0
        %3295 = vmatpush1.bf16.msra.mxu0 0
        %3296 = vmatprep.subr.bf16.mxu0 0
        %3297 = vmatpush1.bf16.msra.mxu0 0
        %3298 = vmatprep.mubr.bf16.mxu0 0
        %3299 = vmatmul.mubr.bf16.gmra.mrb[0].mxu0 %v3200
        %v3300 = vpop.f32.mrb[0].mxu0
        %v3301 = vadd.f32 %v3217, %v3300
        %v3302 = vpop.f32.mrb[0].mxu0
        %v3303 = vpop.f32.mrb[0].mxu0
        %v3304 = vpop.f32.mrb[0].mxu0
        %3305 = vdwg.mxu0
        %v3306 = vmax.f32 %v3301, 0.0
        %3307 = vst [vmem:[%s420] sm:$0x1] %v3306
        %s3308 = sand.u32 %s296, 1
        %s3309 = scalar_lea.sflag [#allocation3], %s3308
        %s3310 = sand.u32 %s296, 1
        %s3311 = scalar_lea.vmem [#allocation2], %s3310
        // Predicated region
        $region69: #{tpu_custom_call.1} parent=67 // pred_check
          %p3312 = pneg %p306
        $region70: #{tpu_custom_call.1} parent=67 // pred_check_branch
          %3314 = sbr.rel (%p3312) target = $region72
        $region71: #{tpu_custom_call.1} parent=67 // pred_region
          %s3316 = ssub.s32 16, 16
          %3317 = vsyncadd %s3309, %s3316
          %s3318 = smul.addr %s26, 16
          %s3319 = scalar_lea.hbm %s12, %s3318
          %s3321 = sshll.u32 %s3311, 4
          %s3322 = int_to_ptr.vmem [resolvable:$true] %s3321
          %3324 = dma.vmem_to_hbm [thread:$0]  %s3322, 16, %s3319, %s3309
        $region72: #{tpu_custom_call.1} parent=67 // pred_fallthru
          _
      $region68: #{tpu_custom_call.1} parent=5 // pred_fallthru
        _
      %p3325 = scmp.le.s32.totalorder 2, %s21
      // Predicated region
      $region73: #{tpu_custom_call.1} parent=5 // pred_check
        %p3326 = pneg %p3325
      $region74: #{tpu_custom_call.1} parent=5 // pred_check_branch
        %3328 = sbr.rel (%p3326) target = $region76
      $region75: #{tpu_custom_call.1} parent=5 // pred_region
        %s3329 = ssub.s32 %s21, 2
        // Predicated region
        $region77: #{tpu_custom_call.1} parent=75 // pred_check
          %p3330 = pneg %p312
        $region78: #{tpu_custom_call.1} parent=75 // pred_check_branch
          %3332 = sbr.rel (%p3330) target = $region80
        $region79: #{tpu_custom_call.1} parent=75 // pred_region
          %s3333 = sand.u32 %s297, 1
          %s3334 = scalar_lea.sflag [#allocation3], %s3333
          %s3335 = sand.u32 %s297, 1
          %s3336 = scalar_lea.vmem [#allocation2], %s3335
          %3337 = dma.done %s3334, 16
        $region80: #{tpu_custom_call.1} parent=75 // pred_fallthru
          _
      $region76: #{tpu_custom_call.1} parent=5 // pred_fallthru
        _
    $region6: #{tpu_custom_call.1} parent=1 // loop_footer
      %s25 = sadd.s32 1, %s21
    $region7: #{tpu_custom_call.1} parent=1 // loop_footer_branch
      %20 = sbr.rel target = $region3
    $region8: #{tpu_custom_call.1} parent=1 // loop_exit
      _
    %3338 = vsyncpa [#allocation3], 1
    %s3339 = scalar_lea.sflag [#allocation3], 1
    %3340 = vsyncpa %s3339, 1

</llo_original>
